<compile_context>
chip_gen: v6e
topology: v6e:2x2x1
jax: 0.10.0
libtpu: 0.0.40
codegen_flags: <defaults>
</compile_context>

<pallas_src>
import functools

import jax
import jax.numpy as jnp
from jax.experimental import pallas as pl
from jax.experimental.pallas import tpu as pltpu


# ---------------------------------------------------------------------------
# Fused per-batch-block kernel: qkv proj -> attention -> output proj in VMEM.
# ---------------------------------------------------------------------------

def _fused_mqa_kernel(x_ref, wqkv_ref, wo_ref, y_ref, *,
                      num_heads, key_dim, value_dim):
    """One batch block of BB batches.

    x_ref   : (BB, C, P)          caller dtype   (P = H*W, row-major pixels)
    wqkv_ref: (NH*KD+KD+VD, C)    bf16           (wq rows pre-scaled 1/sqrt(KD))
    wo_ref  : (C, NH*KD)          bf16
    y_ref   : (BB, C, P)          caller dtype
    """
    nhkd = num_heads * key_dim
    kd, vd = key_dim, value_dim
    bb, _, p = x_ref.shape
    g = p // kd                                    # pixel chunks of KD (static)

    wqkv = wqkv_ref[...]
    wo = wo_ref[...]

    for b in range(bb):                            # batch block (static unroll)
        x = x_ref[b].astype(jnp.bfloat16)          # (C, P)

        # Stacked q/k/v 1x1-conv projection: one matmul, f32 accumulation.
        qkv = jnp.dot(wqkv, x, preferred_element_type=jnp.float32)    # (QKV, P)
        q = qkv[:nhkd, :].astype(jnp.bfloat16)                        # (NH*KD, P)
        k = qkv[nhkd:nhkd + kd, :].astype(jnp.bfloat16)               # (KD, P)
        # One small f32 transpose per batch so the inner attn@v matmul is a
        # plain (M,K)x(K,N) contraction with K = P.
        v_t = jnp.transpose(
            qkv[nhkd + kd:nhkd + kd + vd, :]).astype(jnp.bfloat16)    # (P, VD)

        # torch q.view(B, NH, P, KD): row l = u*G + j of head h is channel
        # h*KD+u, pixel chunk j of the projected q; the matching output view
        # puts row (h*KD+u, chunk j) back at channels h*KD+u, pixels
        # j*KD:(j+1)*KD.  So: loop over pixel chunks j, processing all
        # heads/channels of that chunk with lane-dense matmuls.
        for j in range(g):
            qj = q[:, j * kd:(j + 1) * kd]                           # (NH*KD, KD)
            sim = jnp.dot(qj, k, preferred_element_type=jnp.float32)  # (NH*KD, P)
            sim = sim - jnp.max(sim, axis=-1, keepdims=True)
            e = jnp.exp(sim)
            attn = e * pl.reciprocal(jnp.sum(e, axis=-1, keepdims=True),
                                     approx=True)
            oj = jnp.dot(attn.astype(jnp.bfloat16), v_t,
                         preferred_element_type=jnp.float32)          # (NH*KD, VD)
            yj = jnp.dot(wo, oj.astype(jnp.bfloat16),
                         preferred_element_type=jnp.float32)          # (C, KD)
            y_ref[b, :, j * kd:(j + 1) * kd] = yj.astype(y_ref.dtype)


# ---------------------------------------------------------------------------
# Wrapper
# ---------------------------------------------------------------------------

def _pick_batch_block(batch):
    # Largest block that still leaves >= 2 grid steps (one per TensorCore on
    # v7x), capped at 8 batches per step.
    for bb in (8, 4, 2):
        if batch % bb == 0 and batch // bb >= 2:
            return bb
    return 1


def mqa_with_downsampling(x, params, *, num_heads, key_dim, value_dim,
                          query_h_strides=1, query_w_strides=1, kv_strides=1,
                          batch_block=None, out_dtype=None):
    assert query_h_strides == 1 and query_w_strides == 1 and kv_strides == 1, (
        "only the identity (stride=1) configuration is implemented")
    assert value_dim == key_dim, (
        "torch's output view + output_proj require value_dim == key_dim")

    B, C, H, W = x.shape
    assert H == W, "torch's q.view(..., px*px, key_dim) requires square inputs"
    P = H * W
    assert P % key_dim == 0, (
        "pixel-chunk decomposition requires (H*W) % key_dim == 0")

    NHKD = num_heads * key_dim
    QKV = NHKD + key_dim + value_dim
    out_dtype = out_dtype or x.dtype      # pass jnp.bfloat16 to halve writeback

    # Fold score normalization (1/sqrt(key_dim)) into wq; stack q/k/v weights.
    wq = params["wq"] * (1.0 / key_dim ** 0.5)
    wqkv = jnp.concatenate([wq, params["wk"], params["wv"]],
                           axis=0).astype(jnp.bfloat16)            # (QKV, C)
    wo = params["wo"].astype(jnp.bfloat16)                          # (C, NH*KD)
    xf = x.reshape(B, C, P)                                         # free reshape

    BB = batch_block or _pick_batch_block(B)
    assert B % BB == 0, (B, BB)
    grid = (B // BB,)

    # Explicit VMEM budget (v5e default scoped limit is only 16 MiB): pipelined
    # x/y blocks + in-kernel intermediates + lane-padded weights, 2x slack.
    x_bytes = jnp.dtype(x.dtype).itemsize
    y_bytes = jnp.dtype(out_dtype).itemsize
    work = (2 * BB * C * P * (x_bytes + y_bytes)       # double-buffered blocks
            + QKV * max(P, 128) * 12                   # qkv slab + bf16 copies
            + (NHKD + C) * max(P, 128) * 8             # sim/attn chunk + misc
            + (QKV + NHKD) * 128 * 2)                  # weights (lane-padded)
    vmem_limit = int(min(64 * 2 ** 20, max(4 * 2 ** 20, 2 * work)))

    kernel = functools.partial(_fused_mqa_kernel, num_heads=num_heads,
                               key_dim=key_dim, value_dim=value_dim)

    y = pl.pallas_call(
        kernel,
        grid=grid,
        in_specs=[
            pl.BlockSpec((BB, C, P), lambda i: (i, 0, 0)),
            pl.BlockSpec((QKV, C), lambda i: (0, 0)),
            pl.BlockSpec((C, NHKD), lambda i: (0, 0)),
        ],
        out_specs=pl.BlockSpec((BB, C, P), lambda i: (i, 0, 0)),
        out_shape=jax.ShapeDtypeStruct((B, C, P), out_dtype),
        compiler_params=pltpu.CompilerParams(
            # "parallel" lets the batch-block axis shard across v7x's 2 TCs;
            # _pick_batch_block keeps >= 2 steps so neither core idles.
            dimension_semantics=("parallel",),
            vmem_limit_bytes=vmem_limit),
    )(xf, wqkv, wo)

    # torch: o.view(x.shape)  (trailing-dim split, free)
    return y.reshape(x.shape)


# ---------------------------------------------------------------------------
# Pure-JAX fp32 reference mirroring the PyTorch forward (regression check)
# ---------------------------------------------------------------------------

def mqa_reference(x, params, *, num_heads, key_dim, value_dim):
    B, C, H, W = x.shape
    px = H
    wq, wk, wv, wo = params["wq"], params["wk"], params["wv"], params["wo"]
    q = jnp.einsum('oc,bchw->bohw', wq, x)
    q = q.reshape(B, num_heads, px * px, key_dim)
    k = jnp.einsum('oc,bchw->bohw', wk, x).reshape(B, key_dim, -1)
    sim = jnp.einsum('bhlk,bkp->bhlp', q, k)
    attn = jax.nn.softmax(sim / key_dim ** 0.5, axis=-1)
    v = jnp.einsum('oc,bchw->bohw', wv, x).reshape(B, value_dim, -1)
    o = jnp.einsum('bhlp,bkp->bhlk', attn, v)
    o = o.reshape(B, value_dim * num_heads, px, px)
    o = jnp.einsum('oc,bchw->bohw', wo, o)
    return o.reshape(x.shape)


if __name__ == "__main__":
    # Module hyperparameters (strides = 1 -> downsampling / dw-conv = Identity)
    B, C, H, W = 2, 8, 16, 16                 # P = 256 -> lane-dense stores
    num_heads, key_dim, value_dim = 2, 16, 16

    key = jax.random.PRNGKey(0)
    kx, kq, kk, kv, ko = jax.random.split(key, 5)
    x = jax.random.normal(kx, (B, C, H, W), jnp.float32)

    # 1x1-conv weights (PyTorch weight (out, in, 1, 1) -> (out, in))
    params = {
        "wq": 0.1 * jax.random.normal(kq, (num_heads * key_dim, C), jnp.float32),
        "wk": 0.1 * jax.random.normal(kk, (key_dim, C), jnp.float32),
        "wv": 0.1 * jax.random.normal(kv, (value_dim, C), jnp.float32),
        "wo": 0.1 * jax.random.normal(ko, (C, num_heads * key_dim), jnp.float32),
    }

    fwd = jax.jit(functools.partial(
        mqa_with_downsampling,
        num_heads=num_heads, key_dim=key_dim, value_dim=value_dim))

    out = jax.block_until_ready(fwd(x, params))

    ref = mqa_reference(
        x, params, num_heads=num_heads, key_dim=key_dim, value_dim=value_dim)

    assert out.shape == x.shape, (out.shape, x.shape)
    max_err = float(jnp.max(jnp.abs(out - ref)))
    # bf16 matmul operands (f32 accumulation) vs. an fp32 reference.
    assert jnp.allclose(out, ref, atol=1e-2, rtol=1e-2), max_err
    print("KERNEL_OK")
</pallas_src>

<mosaic_0001>
module attributes {stable_mosaic.version = 11 : i64} {
  func.func @_fused_mqa_kernel(%arg0: i32, %arg1: memref<1x8x256xf32, #tpu.memory_space<vmem>>, %arg2: memref<64x8xbf16, #tpu.memory_space<vmem>>, %arg3: memref<8x32xbf16, #tpu.memory_space<vmem>>, %arg4: memref<1x8x256xf32, #tpu.memory_space<vmem>>) attributes {dimension_semantics = [#tpu.dimension_semantics<parallel>], iteration_bounds = array<i64: 2>, scalar_prefetch = 0 : i64, scratch_operands = 0 : i64, tpu.core_type = #tpu.core_type<tc>, window_params = [{transform_indices = @transform_0, window_bounds = array<i64: 1, 8, 256>}, {pipeline_mode = #tpu.pipeline_mode<synchronous>, transform_indices = @transform_1, window_bounds = array<i64: 64, 8>}, {pipeline_mode = #tpu.pipeline_mode<synchronous>, transform_indices = @transform_2, window_bounds = array<i64: 8, 32>}, {transform_indices = @transform_3, window_bounds = array<i64: 1, 8, 256>}]} {
    %c0 = arith.constant 0 : index
    %c0_0 = arith.constant 0 : index
    %0 = vector.load %arg2[%c0, %c0_0] : memref<64x8xbf16, #tpu.memory_space<vmem>>, vector<64x8xbf16>
    %c0_1 = arith.constant 0 : index
    %c0_2 = arith.constant 0 : index
    %1 = vector.load %arg3[%c0_1, %c0_2] : memref<8x32xbf16, #tpu.memory_space<vmem>>, vector<8x32xbf16>
    %c0_3 = arith.constant 0 : index
    %c0_4 = arith.constant 0 : index
    %c0_5 = arith.constant 0 : index
    %2 = vector.load %arg1[%c0_3, %c0_4, %c0_5] : memref<1x8x256xf32, #tpu.memory_space<vmem>>, vector<1x8x256xf32>
    %3 = vector.shape_cast %2 : vector<1x8x256xf32> to vector<8x256xf32>
    %4 = arith.truncf %3 : vector<8x256xf32> to vector<8x256xbf16>
    %cst = arith.constant dense<0.000000e+00> : vector<64x256xf32>
    %5 = tpu.matmul %0, %4, %cst {dimension_numbers = #tpu.dot_dimension_numbers<[1], [0], [0], [1], [0, 0, 1, 1], [], []>} : vector<64x8xbf16>, vector<8x256xbf16>, vector<64x256xf32> -> vector<64x256xf32>
    %6 = vector.extract_strided_slice %5 {offsets = [0, 0], sizes = [32, 256], strides = [1, 1]} : vector<64x256xf32> to vector<32x256xf32>
    %7 = arith.truncf %6 : vector<32x256xf32> to vector<32x256xbf16>
    %8 = vector.extract_strided_slice %5 {offsets = [32, 0], sizes = [16, 256], strides = [1, 1]} : vector<64x256xf32> to vector<16x256xf32>
    %9 = arith.truncf %8 : vector<16x256xf32> to vector<16x256xbf16>
    %10 = vector.extract_strided_slice %5 {offsets = [48, 0], sizes = [16, 256], strides = [1, 1]} : vector<64x256xf32> to vector<16x256xf32>
    %11 = tpu.transpose %10, [1, 0] : vector<16x256xf32> -> vector<256x16xf32>
    %12 = arith.truncf %11 : vector<256x16xf32> to vector<256x16xbf16>
    %13 = vector.extract_strided_slice %7 {offsets = [0, 0], sizes = [32, 16], strides = [1, 1]} : vector<32x256xbf16> to vector<32x16xbf16>
    %cst_6 = arith.constant dense<0.000000e+00> : vector<32x256xf32>
    %14 = tpu.matmul %13, %9, %cst_6 {dimension_numbers = #tpu.dot_dimension_numbers<[1], [0], [0], [1], [0, 0, 1, 1], [], []>} : vector<32x16xbf16>, vector<16x256xbf16>, vector<32x256xf32> -> vector<32x256xf32>
    %cst_7 = arith.constant dense<0xFF800000> : vector<32xf32>
    %15 = vector.multi_reduction <maximumf>, %14, %cst_7 [1] : vector<32x256xf32> to vector<32xf32>
    %16 = vector.shape_cast %15 : vector<32xf32> to vector<32x1xf32>
    %17 = vector.broadcast %16 : vector<32x1xf32> to vector<32x256xf32>
    %18 = arith.subf %14, %17 : vector<32x256xf32>
    %19 = math.exp %18 : vector<32x256xf32>
    %cst_8 = arith.constant dense<0.000000e+00> : vector<32xf32>
    %20 = vector.multi_reduction <add>, %19, %cst_8 [1] : vector<32x256xf32> to vector<32xf32>
    %21 = vector.shape_cast %20 : vector<32xf32> to vector<32x1xf32>
    %22 = tpu.reciprocal %21 {approx = true} : vector<32x1xf32> -> vector<32x1xf32>
    %23 = vector.broadcast %22 : vector<32x1xf32> to vector<32x256xf32>
    %24 = arith.mulf %19, %23 : vector<32x256xf32>
    %25 = arith.truncf %24 : vector<32x256xf32> to vector<32x256xbf16>
    %cst_9 = arith.constant dense<0.000000e+00> : vector<32x16xf32>
    %26 = tpu.matmul %25, %12, %cst_9 {dimension_numbers = #tpu.dot_dimension_numbers<[1], [0], [0], [1], [0, 0, 1, 1], [], []>} : vector<32x256xbf16>, vector<256x16xbf16>, vector<32x16xf32> -> vector<32x16xf32>
    %27 = arith.truncf %26 : vector<32x16xf32> to vector<32x16xbf16>
    %cst_10 = arith.constant dense<0.000000e+00> : vector<8x16xf32>
    %28 = tpu.matmul %1, %27, %cst_10 {dimension_numbers = #tpu.dot_dimension_numbers<[1], [0], [0], [1], [0, 0, 1, 1], [], []>} : vector<8x32xbf16>, vector<32x16xbf16>, vector<8x16xf32> -> vector<8x16xf32>
    %c0_11 = arith.constant 0 : index
    %c0_12 = arith.constant 0 : index
    %c0_13 = arith.constant 0 : index
    %29 = vector.load %arg4[%c0_11, %c0_12, %c0_13] : memref<1x8x256xf32, #tpu.memory_space<vmem>>, vector<1x8x16xf32>
    %30 = vector.shape_cast %29 : vector<1x8x16xf32> to vector<8x16xf32>
    %31 = vector.shape_cast %28 : vector<8x16xf32> to vector<1x8x16xf32>
    tpu.vector_store %arg4[%c0_11, %c0_12, %c0_13], %31 {strides = array<i32>} : memref<1x8x256xf32, #tpu.memory_space<vmem>>, vector<1x8x16xf32>,
    %32 = vector.extract_strided_slice %7 {offsets = [0, 16], sizes = [32, 16], strides = [1, 1]} : vector<32x256xbf16> to vector<32x16xbf16>
    %cst_14 = arith.constant dense<0.000000e+00> : vector<32x256xf32>
    %33 = tpu.matmul %32, %9, %cst_14 {dimension_numbers = #tpu.dot_dimension_numbers<[1], [0], [0], [1], [0, 0, 1, 1], [], []>} : vector<32x16xbf16>, vector<16x256xbf16>, vector<32x256xf32> -> vector<32x256xf32>
    %cst_15 = arith.constant dense<0xFF800000> : vector<32xf32>
    %34 = vector.multi_reduction <maximumf>, %33, %cst_15 [1] : vector<32x256xf32> to vector<32xf32>
    %35 = vector.shape_cast %34 : vector<32xf32> to vector<32x1xf32>
    %36 = vector.broadcast %35 : vector<32x1xf32> to vector<32x256xf32>
    %37 = arith.subf %33, %36 : vector<32x256xf32>
    %38 = math.exp %37 : vector<32x256xf32>
    %cst_16 = arith.constant dense<0.000000e+00> : vector<32xf32>
    %39 = vector.multi_reduction <add>, %38, %cst_16 [1] : vector<32x256xf32> to vector<32xf32>
    %40 = vector.shape_cast %39 : vector<32xf32> to vector<32x1xf32>
    %41 = tpu.reciprocal %40 {approx = true} : vector<32x1xf32> -> vector<32x1xf32>
    %42 = vector.broadcast %41 : vector<32x1xf32> to vector<32x256xf32>
    %43 = arith.mulf %38, %42 : vector<32x256xf32>
    %44 = arith.truncf %43 : vector<32x256xf32> to vector<32x256xbf16>
    %cst_17 = arith.constant dense<0.000000e+00> : vector<32x16xf32>
    %45 = tpu.matmul %44, %12, %cst_17 {dimension_numbers = #tpu.dot_dimension_numbers<[1], [0], [0], [1], [0, 0, 1, 1], [], []>} : vector<32x256xbf16>, vector<256x16xbf16>, vector<32x16xf32> -> vector<32x16xf32>
    %46 = arith.truncf %45 : vector<32x16xf32> to vector<32x16xbf16>
    %cst_18 = arith.constant dense<0.000000e+00> : vector<8x16xf32>
    %47 = tpu.matmul %1, %46, %cst_18 {dimension_numbers = #tpu.dot_dimension_numbers<[1], [0], [0], [1], [0, 0, 1, 1], [], []>} : vector<8x32xbf16>, vector<32x16xbf16>, vector<8x16xf32> -> vector<8x16xf32>
    %c0_19 = arith.constant 0 : index
    %c0_20 = arith.constant 0 : index
    %c16 = arith.constant 16 : index
    %48 = vector.load %arg4[%c0_19, %c0_20, %c16] : memref<1x8x256xf32, #tpu.memory_space<vmem>>, vector<1x8x16xf32>
    %49 = vector.shape_cast %48 : vector<1x8x16xf32> to vector<8x16xf32>
    %50 = vector.shape_cast %47 : vector<8x16xf32> to vector<1x8x16xf32>
    tpu.vector_store %arg4[%c0_19, %c0_20, %c16], %50 {strides = array<i32>} : memref<1x8x256xf32, #tpu.memory_space<vmem>>, vector<1x8x16xf32>,
    %51 = vector.extract_strided_slice %7 {offsets = [0, 32], sizes = [32, 16], strides = [1, 1]} : vector<32x256xbf16> to vector<32x16xbf16>
    %cst_21 = arith.constant dense<0.000000e+00> : vector<32x256xf32>
    %52 = tpu.matmul %51, %9, %cst_21 {dimension_numbers = #tpu.dot_dimension_numbers<[1], [0], [0], [1], [0, 0, 1, 1], [], []>} : vector<32x16xbf16>, vector<16x256xbf16>, vector<32x256xf32> -> vector<32x256xf32>
    %cst_22 = arith.constant dense<0xFF800000> : vector<32xf32>
    %53 = vector.multi_reduction <maximumf>, %52, %cst_22 [1] : vector<32x256xf32> to vector<32xf32>
    %54 = vector.shape_cast %53 : vector<32xf32> to vector<32x1xf32>
    %55 = vector.broadcast %54 : vector<32x1xf32> to vector<32x256xf32>
    %56 = arith.subf %52, %55 : vector<32x256xf32>
    %57 = math.exp %56 : vector<32x256xf32>
    %cst_23 = arith.constant dense<0.000000e+00> : vector<32xf32>
    %58 = vector.multi_reduction <add>, %57, %cst_23 [1] : vector<32x256xf32> to vector<32xf32>
    %59 = vector.shape_cast %58 : vector<32xf32> to vector<32x1xf32>
    %60 = tpu.reciprocal %59 {approx = true} : vector<32x1xf32> -> vector<32x1xf32>
    %61 = vector.broadcast %60 : vector<32x1xf32> to vector<32x256xf32>
    %62 = arith.mulf %57, %61 : vector<32x256xf32>
    %63 = arith.truncf %62 : vector<32x256xf32> to vector<32x256xbf16>
    %cst_24 = arith.constant dense<0.000000e+00> : vector<32x16xf32>
    %64 = tpu.matmul %63, %12, %cst_24 {dimension_numbers = #tpu.dot_dimension_numbers<[1], [0], [0], [1], [0, 0, 1, 1], [], []>} : vector<32x256xbf16>, vector<256x16xbf16>, vector<32x16xf32> -> vector<32x16xf32>
    %65 = arith.truncf %64 : vector<32x16xf32> to vector<32x16xbf16>
    %cst_25 = arith.constant dense<0.000000e+00> : vector<8x16xf32>
    %66 = tpu.matmul %1, %65, %cst_25 {dimension_numbers = #tpu.dot_dimension_numbers<[1], [0], [0], [1], [0, 0, 1, 1], [], []>} : vector<8x32xbf16>, vector<32x16xbf16>, vector<8x16xf32> -> vector<8x16xf32>
    %c0_26 = arith.constant 0 : index
    %c0_27 = arith.constant 0 : index
    %c32 = arith.constant 32 : index
    %67 = vector.load %arg4[%c0_26, %c0_27, %c32] : memref<1x8x256xf32, #tpu.memory_space<vmem>>, vector<1x8x16xf32>
    %68 = vector.shape_cast %67 : vector<1x8x16xf32> to vector<8x16xf32>
    %69 = vector.shape_cast %66 : vector<8x16xf32> to vector<1x8x16xf32>
    tpu.vector_store %arg4[%c0_26, %c0_27, %c32], %69 {strides = array<i32>} : memref<1x8x256xf32, #tpu.memory_space<vmem>>, vector<1x8x16xf32>,
    %70 = vector.extract_strided_slice %7 {offsets = [0, 48], sizes = [32, 16], strides = [1, 1]} : vector<32x256xbf16> to vector<32x16xbf16>
    %cst_28 = arith.constant dense<0.000000e+00> : vector<32x256xf32>
    %71 = tpu.matmul %70, %9, %cst_28 {dimension_numbers = #tpu.dot_dimension_numbers<[1], [0], [0], [1], [0, 0, 1, 1], [], []>} : vector<32x16xbf16>, vector<16x256xbf16>, vector<32x256xf32> -> vector<32x256xf32>
    %cst_29 = arith.constant dense<0xFF800000> : vector<32xf32>
    %72 = vector.multi_reduction <maximumf>, %71, %cst_29 [1] : vector<32x256xf32> to vector<32xf32>
    %73 = vector.shape_cast %72 : vector<32xf32> to vector<32x1xf32>
    %74 = vector.broadcast %73 : vector<32x1xf32> to vector<32x256xf32>
    %75 = arith.subf %71, %74 : vector<32x256xf32>
    %76 = math.exp %75 : vector<32x256xf32>
    %cst_30 = arith.constant dense<0.000000e+00> : vector<32xf32>
    %77 = vector.multi_reduction <add>, %76, %cst_30 [1] : vector<32x256xf32> to vector<32xf32>
    %78 = vector.shape_cast %77 : vector<32xf32> to vector<32x1xf32>
    %79 = tpu.reciprocal %78 {approx = true} : vector<32x1xf32> -> vector<32x1xf32>
    %80 = vector.broadcast %79 : vector<32x1xf32> to vector<32x256xf32>
    %81 = arith.mulf %76, %80 : vector<32x256xf32>
    %82 = arith.truncf %81 : vector<32x256xf32> to vector<32x256xbf16>
    %cst_31 = arith.constant dense<0.000000e+00> : vector<32x16xf32>
    %83 = tpu.matmul %82, %12, %cst_31 {dimension_numbers = #tpu.dot_dimension_numbers<[1], [0], [0], [1], [0, 0, 1, 1], [], []>} : vector<32x256xbf16>, vector<256x16xbf16>, vector<32x16xf32> -> vector<32x16xf32>
    %84 = arith.truncf %83 : vector<32x16xf32> to vector<32x16xbf16>
    %cst_32 = arith.constant dense<0.000000e+00> : vector<8x16xf32>
    %85 = tpu.matmul %1, %84, %cst_32 {dimension_numbers = #tpu.dot_dimension_numbers<[1], [0], [0], [1], [0, 0, 1, 1], [], []>} : vector<8x32xbf16>, vector<32x16xbf16>, vector<8x16xf32> -> vector<8x16xf32>
    %c0_33 = arith.constant 0 : index
    %c0_34 = arith.constant 0 : index
    %c48 = arith.constant 48 : index
    %86 = vector.load %arg4[%c0_33, %c0_34, %c48] : memref<1x8x256xf32, #tpu.memory_space<vmem>>, vector<1x8x16xf32>
    %87 = vector.shape_cast %86 : vector<1x8x16xf32> to vector<8x16xf32>
    %88 = vector.shape_cast %85 : vector<8x16xf32> to vector<1x8x16xf32>
    tpu.vector_store %arg4[%c0_33, %c0_34, %c48], %88 {strides = array<i32>} : memref<1x8x256xf32, #tpu.memory_space<vmem>>, vector<1x8x16xf32>,
    %89 = vector.extract_strided_slice %7 {offsets = [0, 64], sizes = [32, 16], strides = [1, 1]} : vector<32x256xbf16> to vector<32x16xbf16>
    %cst_35 = arith.constant dense<0.000000e+00> : vector<32x256xf32>
    %90 = tpu.matmul %89, %9, %cst_35 {dimension_numbers = #tpu.dot_dimension_numbers<[1], [0], [0], [1], [0, 0, 1, 1], [], []>} : vector<32x16xbf16>, vector<16x256xbf16>, vector<32x256xf32> -> vector<32x256xf32>
    %cst_36 = arith.constant dense<0xFF800000> : vector<32xf32>
    %91 = vector.multi_reduction <maximumf>, %90, %cst_36 [1] : vector<32x256xf32> to vector<32xf32>
    %92 = vector.shape_cast %91 : vector<32xf32> to vector<32x1xf32>
    %93 = vector.broadcast %92 : vector<32x1xf32> to vector<32x256xf32>
    %94 = arith.subf %90, %93 : vector<32x256xf32>
    %95 = math.exp %94 : vector<32x256xf32>
    %cst_37 = arith.constant dense<0.000000e+00> : vector<32xf32>
    %96 = vector.multi_reduction <add>, %95, %cst_37 [1] : vector<32x256xf32> to vector<32xf32>
    %97 = vector.shape_cast %96 : vector<32xf32> to vector<32x1xf32>
    %98 = tpu.reciprocal %97 {approx = true} : vector<32x1xf32> -> vector<32x1xf32>
    %99 = vector.broadcast %98 : vector<32x1xf32> to vector<32x256xf32>
    %100 = arith.mulf %95, %99 : vector<32x256xf32>
    %101 = arith.truncf %100 : vector<32x256xf32> to vector<32x256xbf16>
    %cst_38 = arith.constant dense<0.000000e+00> : vector<32x16xf32>
    %102 = tpu.matmul %101, %12, %cst_38 {dimension_numbers = #tpu.dot_dimension_numbers<[1], [0], [0], [1], [0, 0, 1, 1], [], []>} : vector<32x256xbf16>, vector<256x16xbf16>, vector<32x16xf32> -> vector<32x16xf32>
    %103 = arith.truncf %102 : vector<32x16xf32> to vector<32x16xbf16>
    %cst_39 = arith.constant dense<0.000000e+00> : vector<8x16xf32>
    %104 = tpu.matmul %1, %103, %cst_39 {dimension_numbers = #tpu.dot_dimension_numbers<[1], [0], [0], [1], [0, 0, 1, 1], [], []>} : vector<8x32xbf16>, vector<32x16xbf16>, vector<8x16xf32> -> vector<8x16xf32>
    %c0_40 = arith.constant 0 : index
    %c0_41 = arith.constant 0 : index
    %c64 = arith.constant 64 : index
    %105 = vector.load %arg4[%c0_40, %c0_41, %c64] : memref<1x8x256xf32, #tpu.memory_space<vmem>>, vector<1x8x16xf32>
    %106 = vector.shape_cast %105 : vector<1x8x16xf32> to vector<8x16xf32>
    %107 = vector.shape_cast %104 : vector<8x16xf32> to vector<1x8x16xf32>
    tpu.vector_store %arg4[%c0_40, %c0_41, %c64], %107 {strides = array<i32>} : memref<1x8x256xf32, #tpu.memory_space<vmem>>, vector<1x8x16xf32>,
    %108 = vector.extract_strided_slice %7 {offsets = [0, 80], sizes = [32, 16], strides = [1, 1]} : vector<32x256xbf16> to vector<32x16xbf16>
    %cst_42 = arith.constant dense<0.000000e+00> : vector<32x256xf32>
    %109 = tpu.matmul %108, %9, %cst_42 {dimension_numbers = #tpu.dot_dimension_numbers<[1], [0], [0], [1], [0, 0, 1, 1], [], []>} : vector<32x16xbf16>, vector<16x256xbf16>, vector<32x256xf32> -> vector<32x256xf32>
    %cst_43 = arith.constant dense<0xFF800000> : vector<32xf32>
    %110 = vector.multi_reduction <maximumf>, %109, %cst_43 [1] : vector<32x256xf32> to vector<32xf32>
    %111 = vector.shape_cast %110 : vector<32xf32> to vector<32x1xf32>
    %112 = vector.broadcast %111 : vector<32x1xf32> to vector<32x256xf32>
    %113 = arith.subf %109, %112 : vector<32x256xf32>
    %114 = math.exp %113 : vector<32x256xf32>
    %cst_44 = arith.constant dense<0.000000e+00> : vector<32xf32>
    %115 = vector.multi_reduction <add>, %114, %cst_44 [1] : vector<32x256xf32> to vector<32xf32>
    %116 = vector.shape_cast %115 : vector<32xf32> to vector<32x1xf32>
    %117 = tpu.reciprocal %116 {approx = true} : vector<32x1xf32> -> vector<32x1xf32>
    %118 = vector.broadcast %117 : vector<32x1xf32> to vector<32x256xf32>
    %119 = arith.mulf %114, %118 : vector<32x256xf32>
    %120 = arith.truncf %119 : vector<32x256xf32> to vector<32x256xbf16>
    %cst_45 = arith.constant dense<0.000000e+00> : vector<32x16xf32>
    %121 = tpu.matmul %120, %12, %cst_45 {dimension_numbers = #tpu.dot_dimension_numbers<[1], [0], [0], [1], [0, 0, 1, 1], [], []>} : vector<32x256xbf16>, vector<256x16xbf16>, vector<32x16xf32> -> vector<32x16xf32>
    %122 = arith.truncf %121 : vector<32x16xf32> to vector<32x16xbf16>
    %cst_46 = arith.constant dense<0.000000e+00> : vector<8x16xf32>
    %123 = tpu.matmul %1, %122, %cst_46 {dimension_numbers = #tpu.dot_dimension_numbers<[1], [0], [0], [1], [0, 0, 1, 1], [], []>} : vector<8x32xbf16>, vector<32x16xbf16>, vector<8x16xf32> -> vector<8x16xf32>
    %c0_47 = arith.constant 0 : index
    %c0_48 = arith.constant 0 : index
    %c80 = arith.constant 80 : index
    %124 = vector.load %arg4[%c0_47, %c0_48, %c80] : memref<1x8x256xf32, #tpu.memory_space<vmem>>, vector<1x8x16xf32>
    %125 = vector.shape_cast %124 : vector<1x8x16xf32> to vector<8x16xf32>
    %126 = vector.shape_cast %123 : vector<8x16xf32> to vector<1x8x16xf32>
    tpu.vector_store %arg4[%c0_47, %c0_48, %c80], %126 {strides = array<i32>} : memref<1x8x256xf32, #tpu.memory_space<vmem>>, vector<1x8x16xf32>,
    %127 = vector.extract_strided_slice %7 {offsets = [0, 96], sizes = [32, 16], strides = [1, 1]} : vector<32x256xbf16> to vector<32x16xbf16>
    %cst_49 = arith.constant dense<0.000000e+00> : vector<32x256xf32>
    %128 = tpu.matmul %127, %9, %cst_49 {dimension_numbers = #tpu.dot_dimension_numbers<[1], [0], [0], [1], [0, 0, 1, 1], [], []>} : vector<32x16xbf16>, vector<16x256xbf16>, vector<32x256xf32> -> vector<32x256xf32>
    %cst_50 = arith.constant dense<0xFF800000> : vector<32xf32>
    %129 = vector.multi_reduction <maximumf>, %128, %cst_50 [1] : vector<32x256xf32> to vector<32xf32>
    %130 = vector.shape_cast %129 : vector<32xf32> to vector<32x1xf32>
    %131 = vector.broadcast %130 : vector<32x1xf32> to vector<32x256xf32>
    %132 = arith.subf %128, %131 : vector<32x256xf32>
    %133 = math.exp %132 : vector<32x256xf32>
    %cst_51 = arith.constant dense<0.000000e+00> : vector<32xf32>
    %134 = vector.multi_reduction <add>, %133, %cst_51 [1] : vector<32x256xf32> to vector<32xf32>
    %135 = vector.shape_cast %134 : vector<32xf32> to vector<32x1xf32>
    %136 = tpu.reciprocal %135 {approx = true} : vector<32x1xf32> -> vector<32x1xf32>
    %137 = vector.broadcast %136 : vector<32x1xf32> to vector<32x256xf32>
    %138 = arith.mulf %133, %137 : vector<32x256xf32>
    %139 = arith.truncf %138 : vector<32x256xf32> to vector<32x256xbf16>
    %cst_52 = arith.constant dense<0.000000e+00> : vector<32x16xf32>
    %140 = tpu.matmul %139, %12, %cst_52 {dimension_numbers = #tpu.dot_dimension_numbers<[1], [0], [0], [1], [0, 0, 1, 1], [], []>} : vector<32x256xbf16>, vector<256x16xbf16>, vector<32x16xf32> -> vector<32x16xf32>
    %141 = arith.truncf %140 : vector<32x16xf32> to vector<32x16xbf16>
    %cst_53 = arith.constant dense<0.000000e+00> : vector<8x16xf32>
    %142 = tpu.matmul %1, %141, %cst_53 {dimension_numbers = #tpu.dot_dimension_numbers<[1], [0], [0], [1], [0, 0, 1, 1], [], []>} : vector<8x32xbf16>, vector<32x16xbf16>, vector<8x16xf32> -> vector<8x16xf32>
    %c0_54 = arith.constant 0 : index
    %c0_55 = arith.constant 0 : index
    %c96 = arith.constant 96 : index
    %143 = vector.load %arg4[%c0_54, %c0_55, %c96] : memref<1x8x256xf32, #tpu.memory_space<vmem>>, vector<1x8x16xf32>
    %144 = vector.shape_cast %143 : vector<1x8x16xf32> to vector<8x16xf32>
    %145 = vector.shape_cast %142 : vector<8x16xf32> to vector<1x8x16xf32>
    tpu.vector_store %arg4[%c0_54, %c0_55, %c96], %145 {strides = array<i32>} : memref<1x8x256xf32, #tpu.memory_space<vmem>>, vector<1x8x16xf32>,
    %146 = vector.extract_strided_slice %7 {offsets = [0, 112], sizes = [32, 16], strides = [1, 1]} : vector<32x256xbf16> to vector<32x16xbf16>
    %cst_56 = arith.constant dense<0.000000e+00> : vector<32x256xf32>
    %147 = tpu.matmul %146, %9, %cst_56 {dimension_numbers = #tpu.dot_dimension_numbers<[1], [0], [0], [1], [0, 0, 1, 1], [], []>} : vector<32x16xbf16>, vector<16x256xbf16>, vector<32x256xf32> -> vector<32x256xf32>
    %cst_57 = arith.constant dense<0xFF800000> : vector<32xf32>
    %148 = vector.multi_reduction <maximumf>, %147, %cst_57 [1] : vector<32x256xf32> to vector<32xf32>
    %149 = vector.shape_cast %148 : vector<32xf32> to vector<32x1xf32>
    %150 = vector.broadcast %149 : vector<32x1xf32> to vector<32x256xf32>
    %151 = arith.subf %147, %150 : vector<32x256xf32>
    %152 = math.exp %151 : vector<32x256xf32>
    %cst_58 = arith.constant dense<0.000000e+00> : vector<32xf32>
    %153 = vector.multi_reduction <add>, %152, %cst_58 [1] : vector<32x256xf32> to vector<32xf32>
    %154 = vector.shape_cast %153 : vector<32xf32> to vector<32x1xf32>
    %155 = tpu.reciprocal %154 {approx = true} : vector<32x1xf32> -> vector<32x1xf32>
    %156 = vector.broadcast %155 : vector<32x1xf32> to vector<32x256xf32>
    %157 = arith.mulf %152, %156 : vector<32x256xf32>
    %158 = arith.truncf %157 : vector<32x256xf32> to vector<32x256xbf16>
    %cst_59 = arith.constant dense<0.000000e+00> : vector<32x16xf32>
    %159 = tpu.matmul %158, %12, %cst_59 {dimension_numbers = #tpu.dot_dimension_numbers<[1], [0], [0], [1], [0, 0, 1, 1], [], []>} : vector<32x256xbf16>, vector<256x16xbf16>, vector<32x16xf32> -> vector<32x16xf32>
    %160 = arith.truncf %159 : vector<32x16xf32> to vector<32x16xbf16>
    %cst_60 = arith.constant dense<0.000000e+00> : vector<8x16xf32>
    %161 = tpu.matmul %1, %160, %cst_60 {dimension_numbers = #tpu.dot_dimension_numbers<[1], [0], [0], [1], [0, 0, 1, 1], [], []>} : vector<8x32xbf16>, vector<32x16xbf16>, vector<8x16xf32> -> vector<8x16xf32>
    %c0_61 = arith.constant 0 : index
    %c0_62 = arith.constant 0 : index
    %c112 = arith.constant 112 : index
    %162 = vector.load %arg4[%c0_61, %c0_62, %c112] : memref<1x8x256xf32, #tpu.memory_space<vmem>>, vector<1x8x16xf32>
    %163 = vector.shape_cast %162 : vector<1x8x16xf32> to vector<8x16xf32>
    %164 = vector.shape_cast %161 : vector<8x16xf32> to vector<1x8x16xf32>
    tpu.vector_store %arg4[%c0_61, %c0_62, %c112], %164 {strides = array<i32>} : memref<1x8x256xf32, #tpu.memory_space<vmem>>, vector<1x8x16xf32>,
    %165 = vector.extract_strided_slice %7 {offsets = [0, 128], sizes = [32, 16], strides = [1, 1]} : vector<32x256xbf16> to vector<32x16xbf16>
    %cst_63 = arith.constant dense<0.000000e+00> : vector<32x256xf32>
    %166 = tpu.matmul %165, %9, %cst_63 {dimension_numbers = #tpu.dot_dimension_numbers<[1], [0], [0], [1], [0, 0, 1, 1], [], []>} : vector<32x16xbf16>, vector<16x256xbf16>, vector<32x256xf32> -> vector<32x256xf32>
    %cst_64 = arith.constant dense<0xFF800000> : vector<32xf32>
    %167 = vector.multi_reduction <maximumf>, %166, %cst_64 [1] : vector<32x256xf32> to vector<32xf32>
    %168 = vector.shape_cast %167 : vector<32xf32> to vector<32x1xf32>
    %169 = vector.broadcast %168 : vector<32x1xf32> to vector<32x256xf32>
    %170 = arith.subf %166, %169 : vector<32x256xf32>
    %171 = math.exp %170 : vector<32x256xf32>
    %cst_65 = arith.constant dense<0.000000e+00> : vector<32xf32>
    %172 = vector.multi_reduction <add>, %171, %cst_65 [1] : vector<32x256xf32> to vector<32xf32>
    %173 = vector.shape_cast %172 : vector<32xf32> to vector<32x1xf32>
    %174 = tpu.reciprocal %173 {approx = true} : vector<32x1xf32> -> vector<32x1xf32>
    %175 = vector.broadcast %174 : vector<32x1xf32> to vector<32x256xf32>
    %176 = arith.mulf %171, %175 : vector<32x256xf32>
    %177 = arith.truncf %176 : vector<32x256xf32> to vector<32x256xbf16>
    %cst_66 = arith.constant dense<0.000000e+00> : vector<32x16xf32>
    %178 = tpu.matmul %177, %12, %cst_66 {dimension_numbers = #tpu.dot_dimension_numbers<[1], [0], [0], [1], [0, 0, 1, 1], [], []>} : vector<32x256xbf16>, vector<256x16xbf16>, vector<32x16xf32> -> vector<32x16xf32>
    %179 = arith.truncf %178 : vector<32x16xf32> to vector<32x16xbf16>
    %cst_67 = arith.constant dense<0.000000e+00> : vector<8x16xf32>
    %180 = tpu.matmul %1, %179, %cst_67 {dimension_numbers = #tpu.dot_dimension_numbers<[1], [0], [0], [1], [0, 0, 1, 1], [], []>} : vector<8x32xbf16>, vector<32x16xbf16>, vector<8x16xf32> -> vector<8x16xf32>
    %c0_68 = arith.constant 0 : index
    %c0_69 = arith.constant 0 : index
    %c128 = arith.constant 128 : index
    %181 = vector.load %arg4[%c0_68, %c0_69, %c128] : memref<1x8x256xf32, #tpu.memory_space<vmem>>, vector<1x8x16xf32>
    %182 = vector.shape_cast %181 : vector<1x8x16xf32> to vector<8x16xf32>
    %183 = vector.shape_cast %180 : vector<8x16xf32> to vector<1x8x16xf32>
    tpu.vector_store %arg4[%c0_68, %c0_69, %c128], %183 {strides = array<i32>} : memref<1x8x256xf32, #tpu.memory_space<vmem>>, vector<1x8x16xf32>,
    %184 = vector.extract_strided_slice %7 {offsets = [0, 144], sizes = [32, 16], strides = [1, 1]} : vector<32x256xbf16> to vector<32x16xbf16>
    %cst_70 = arith.constant dense<0.000000e+00> : vector<32x256xf32>
    %185 = tpu.matmul %184, %9, %cst_70 {dimension_numbers = #tpu.dot_dimension_numbers<[1], [0], [0], [1], [0, 0, 1, 1], [], []>} : vector<32x16xbf16>, vector<16x256xbf16>, vector<32x256xf32> -> vector<32x256xf32>
    %cst_71 = arith.constant dense<0xFF800000> : vector<32xf32>
    %186 = vector.multi_reduction <maximumf>, %185, %cst_71 [1] : vector<32x256xf32> to vector<32xf32>
    %187 = vector.shape_cast %186 : vector<32xf32> to vector<32x1xf32>
    %188 = vector.broadcast %187 : vector<32x1xf32> to vector<32x256xf32>
    %189 = arith.subf %185, %188 : vector<32x256xf32>
    %190 = math.exp %189 : vector<32x256xf32>
    %cst_72 = arith.constant dense<0.000000e+00> : vector<32xf32>
    %191 = vector.multi_reduction <add>, %190, %cst_72 [1] : vector<32x256xf32> to vector<32xf32>
    %192 = vector.shape_cast %191 : vector<32xf32> to vector<32x1xf32>
    %193 = tpu.reciprocal %192 {approx = true} : vector<32x1xf32> -> vector<32x1xf32>
    %194 = vector.broadcast %193 : vector<32x1xf32> to vector<32x256xf32>
    %195 = arith.mulf %190, %194 : vector<32x256xf32>
    %196 = arith.truncf %195 : vector<32x256xf32> to vector<32x256xbf16>
    %cst_73 = arith.constant dense<0.000000e+00> : vector<32x16xf32>
    %197 = tpu.matmul %196, %12, %cst_73 {dimension_numbers = #tpu.dot_dimension_numbers<[1], [0], [0], [1], [0, 0, 1, 1], [], []>} : vector<32x256xbf16>, vector<256x16xbf16>, vector<32x16xf32> -> vector<32x16xf32>
    %198 = arith.truncf %197 : vector<32x16xf32> to vector<32x16xbf16>
    %cst_74 = arith.constant dense<0.000000e+00> : vector<8x16xf32>
    %199 = tpu.matmul %1, %198, %cst_74 {dimension_numbers = #tpu.dot_dimension_numbers<[1], [0], [0], [1], [0, 0, 1, 1], [], []>} : vector<8x32xbf16>, vector<32x16xbf16>, vector<8x16xf32> -> vector<8x16xf32>
    %c0_75 = arith.constant 0 : index
    %c0_76 = arith.constant 0 : index
    %c144 = arith.constant 144 : index
    %200 = vector.load %arg4[%c0_75, %c0_76, %c144] : memref<1x8x256xf32, #tpu.memory_space<vmem>>, vector<1x8x16xf32>
    %201 = vector.shape_cast %200 : vector<1x8x16xf32> to vector<8x16xf32>
    %202 = vector.shape_cast %199 : vector<8x16xf32> to vector<1x8x16xf32>
    tpu.vector_store %arg4[%c0_75, %c0_76, %c144], %202 {strides = array<i32>} : memref<1x8x256xf32, #tpu.memory_space<vmem>>, vector<1x8x16xf32>,
    %203 = vector.extract_strided_slice %7 {offsets = [0, 160], sizes = [32, 16], strides = [1, 1]} : vector<32x256xbf16> to vector<32x16xbf16>
    %cst_77 = arith.constant dense<0.000000e+00> : vector<32x256xf32>
    %204 = tpu.matmul %203, %9, %cst_77 {dimension_numbers = #tpu.dot_dimension_numbers<[1], [0], [0], [1], [0, 0, 1, 1], [], []>} : vector<32x16xbf16>, vector<16x256xbf16>, vector<32x256xf32> -> vector<32x256xf32>
    %cst_78 = arith.constant dense<0xFF800000> : vector<32xf32>
    %205 = vector.multi_reduction <maximumf>, %204, %cst_78 [1] : vector<32x256xf32> to vector<32xf32>
    %206 = vector.shape_cast %205 : vector<32xf32> to vector<32x1xf32>
    %207 = vector.broadcast %206 : vector<32x1xf32> to vector<32x256xf32>
    %208 = arith.subf %204, %207 : vector<32x256xf32>
    %209 = math.exp %208 : vector<32x256xf32>
    %cst_79 = arith.constant dense<0.000000e+00> : vector<32xf32>
    %210 = vector.multi_reduction <add>, %209, %cst_79 [1] : vector<32x256xf32> to vector<32xf32>
    %211 = vector.shape_cast %210 : vector<32xf32> to vector<32x1xf32>
    %212 = tpu.reciprocal %211 {approx = true} : vector<32x1xf32> -> vector<32x1xf32>
    %213 = vector.broadcast %212 : vector<32x1xf32> to vector<32x256xf32>
    %214 = arith.mulf %209, %213 : vector<32x256xf32>
    %215 = arith.truncf %214 : vector<32x256xf32> to vector<32x256xbf16>
    %cst_80 = arith.constant dense<0.000000e+00> : vector<32x16xf32>
    %216 = tpu.matmul %215, %12, %cst_80 {dimension_numbers = #tpu.dot_dimension_numbers<[1], [0], [0], [1], [0, 0, 1, 1], [], []>} : vector<32x256xbf16>, vector<256x16xbf16>, vector<32x16xf32> -> vector<32x16xf32>
    %217 = arith.truncf %216 : vector<32x16xf32> to vector<32x16xbf16>
    %cst_81 = arith.constant dense<0.000000e+00> : vector<8x16xf32>
    %218 = tpu.matmul %1, %217, %cst_81 {dimension_numbers = #tpu.dot_dimension_numbers<[1], [0], [0], [1], [0, 0, 1, 1], [], []>} : vector<8x32xbf16>, vector<32x16xbf16>, vector<8x16xf32> -> vector<8x16xf32>
    %c0_82 = arith.constant 0 : index
    %c0_83 = arith.constant 0 : index
    %c160 = arith.constant 160 : index
    %219 = vector.load %arg4[%c0_82, %c0_83, %c160] : memref<1x8x256xf32, #tpu.memory_space<vmem>>, vector<1x8x16xf32>
    %220 = vector.shape_cast %219 : vector<1x8x16xf32> to vector<8x16xf32>
    %221 = vector.shape_cast %218 : vector<8x16xf32> to vector<1x8x16xf32>
    tpu.vector_store %arg4[%c0_82, %c0_83, %c160], %221 {strides = array<i32>} : memref<1x8x256xf32, #tpu.memory_space<vmem>>, vector<1x8x16xf32>,
    %222 = vector.extract_strided_slice %7 {offsets = [0, 176], sizes = [32, 16], strides = [1, 1]} : vector<32x256xbf16> to vector<32x16xbf16>
    %cst_84 = arith.constant dense<0.000000e+00> : vector<32x256xf32>
    %223 = tpu.matmul %222, %9, %cst_84 {dimension_numbers = #tpu.dot_dimension_numbers<[1], [0], [0], [1], [0, 0, 1, 1], [], []>} : vector<32x16xbf16>, vector<16x256xbf16>, vector<32x256xf32> -> vector<32x256xf32>
    %cst_85 = arith.constant dense<0xFF800000> : vector<32xf32>
    %224 = vector.multi_reduction <maximumf>, %223, %cst_85 [1] : vector<32x256xf32> to vector<32xf32>
    %225 = vector.shape_cast %224 : vector<32xf32> to vector<32x1xf32>
    %226 = vector.broadcast %225 : vector<32x1xf32> to vector<32x256xf32>
    %227 = arith.subf %223, %226 : vector<32x256xf32>
    %228 = math.exp %227 : vector<32x256xf32>
    %cst_86 = arith.constant dense<0.000000e+00> : vector<32xf32>
    %229 = vector.multi_reduction <add>, %228, %cst_86 [1] : vector<32x256xf32> to vector<32xf32>
    %230 = vector.shape_cast %229 : vector<32xf32> to vector<32x1xf32>
    %231 = tpu.reciprocal %230 {approx = true} : vector<32x1xf32> -> vector<32x1xf32>
    %232 = vector.broadcast %231 : vector<32x1xf32> to vector<32x256xf32>
    %233 = arith.mulf %228, %232 : vector<32x256xf32>
    %234 = arith.truncf %233 : vector<32x256xf32> to vector<32x256xbf16>
    %cst_87 = arith.constant dense<0.000000e+00> : vector<32x16xf32>
    %235 = tpu.matmul %234, %12, %cst_87 {dimension_numbers = #tpu.dot_dimension_numbers<[1], [0], [0], [1], [0, 0, 1, 1], [], []>} : vector<32x256xbf16>, vector<256x16xbf16>, vector<32x16xf32> -> vector<32x16xf32>
    %236 = arith.truncf %235 : vector<32x16xf32> to vector<32x16xbf16>
    %cst_88 = arith.constant dense<0.000000e+00> : vector<8x16xf32>
    %237 = tpu.matmul %1, %236, %cst_88 {dimension_numbers = #tpu.dot_dimension_numbers<[1], [0], [0], [1], [0, 0, 1, 1], [], []>} : vector<8x32xbf16>, vector<32x16xbf16>, vector<8x16xf32> -> vector<8x16xf32>
    %c0_89 = arith.constant 0 : index
    %c0_90 = arith.constant 0 : index
    %c176 = arith.constant 176 : index
    %238 = vector.load %arg4[%c0_89, %c0_90, %c176] : memref<1x8x256xf32, #tpu.memory_space<vmem>>, vector<1x8x16xf32>
    %239 = vector.shape_cast %238 : vector<1x8x16xf32> to vector<8x16xf32>
    %240 = vector.shape_cast %237 : vector<8x16xf32> to vector<1x8x16xf32>
    tpu.vector_store %arg4[%c0_89, %c0_90, %c176], %240 {strides = array<i32>} : memref<1x8x256xf32, #tpu.memory_space<vmem>>, vector<1x8x16xf32>,
    %241 = vector.extract_strided_slice %7 {offsets = [0, 192], sizes = [32, 16], strides = [1, 1]} : vector<32x256xbf16> to vector<32x16xbf16>
    %cst_91 = arith.constant dense<0.000000e+00> : vector<32x256xf32>
    %242 = tpu.matmul %241, %9, %cst_91 {dimension_numbers = #tpu.dot_dimension_numbers<[1], [0], [0], [1], [0, 0, 1, 1], [], []>} : vector<32x16xbf16>, vector<16x256xbf16>, vector<32x256xf32> -> vector<32x256xf32>
    %cst_92 = arith.constant dense<0xFF800000> : vector<32xf32>
    %243 = vector.multi_reduction <maximumf>, %242, %cst_92 [1] : vector<32x256xf32> to vector<32xf32>
    %244 = vector.shape_cast %243 : vector<32xf32> to vector<32x1xf32>
    %245 = vector.broadcast %244 : vector<32x1xf32> to vector<32x256xf32>
    %246 = arith.subf %242, %245 : vector<32x256xf32>
    %247 = math.exp %246 : vector<32x256xf32>
    %cst_93 = arith.constant dense<0.000000e+00> : vector<32xf32>
    %248 = vector.multi_reduction <add>, %247, %cst_93 [1] : vector<32x256xf32> to vector<32xf32>
    %249 = vector.shape_cast %248 : vector<32xf32> to vector<32x1xf32>
    %250 = tpu.reciprocal %249 {approx = true} : vector<32x1xf32> -> vector<32x1xf32>
    %251 = vector.broadcast %250 : vector<32x1xf32> to vector<32x256xf32>
    %252 = arith.mulf %247, %251 : vector<32x256xf32>
    %253 = arith.truncf %252 : vector<32x256xf32> to vector<32x256xbf16>
    %cst_94 = arith.constant dense<0.000000e+00> : vector<32x16xf32>
    %254 = tpu.matmul %253, %12, %cst_94 {dimension_numbers = #tpu.dot_dimension_numbers<[1], [0], [0], [1], [0, 0, 1, 1], [], []>} : vector<32x256xbf16>, vector<256x16xbf16>, vector<32x16xf32> -> vector<32x16xf32>
    %255 = arith.truncf %254 : vector<32x16xf32> to vector<32x16xbf16>
    %cst_95 = arith.constant dense<0.000000e+00> : vector<8x16xf32>
    %256 = tpu.matmul %1, %255, %cst_95 {dimension_numbers = #tpu.dot_dimension_numbers<[1], [0], [0], [1], [0, 0, 1, 1], [], []>} : vector<8x32xbf16>, vector<32x16xbf16>, vector<8x16xf32> -> vector<8x16xf32>
    %c0_96 = arith.constant 0 : index
    %c0_97 = arith.constant 0 : index
    %c192 = arith.constant 192 : index
    %257 = vector.load %arg4[%c0_96, %c0_97, %c192] : memref<1x8x256xf32, #tpu.memory_space<vmem>>, vector<1x8x16xf32>
    %258 = vector.shape_cast %257 : vector<1x8x16xf32> to vector<8x16xf32>
    %259 = vector.shape_cast %256 : vector<8x16xf32> to vector<1x8x16xf32>
    tpu.vector_store %arg4[%c0_96, %c0_97, %c192], %259 {strides = array<i32>} : memref<1x8x256xf32, #tpu.memory_space<vmem>>, vector<1x8x16xf32>,
    %260 = vector.extract_strided_slice %7 {offsets = [0, 208], sizes = [32, 16], strides = [1, 1]} : vector<32x256xbf16> to vector<32x16xbf16>
    %cst_98 = arith.constant dense<0.000000e+00> : vector<32x256xf32>
    %261 = tpu.matmul %260, %9, %cst_98 {dimension_numbers = #tpu.dot_dimension_numbers<[1], [0], [0], [1], [0, 0, 1, 1], [], []>} : vector<32x16xbf16>, vector<16x256xbf16>, vector<32x256xf32> -> vector<32x256xf32>
    %cst_99 = arith.constant dense<0xFF800000> : vector<32xf32>
    %262 = vector.multi_reduction <maximumf>, %261, %cst_99 [1] : vector<32x256xf32> to vector<32xf32>
    %263 = vector.shape_cast %262 : vector<32xf32> to vector<32x1xf32>
    %264 = vector.broadcast %263 : vector<32x1xf32> to vector<32x256xf32>
    %265 = arith.subf %261, %264 : vector<32x256xf32>
    %266 = math.exp %265 : vector<32x256xf32>
    %cst_100 = arith.constant dense<0.000000e+00> : vector<32xf32>
    %267 = vector.multi_reduction <add>, %266, %cst_100 [1] : vector<32x256xf32> to vector<32xf32>
    %268 = vector.shape_cast %267 : vector<32xf32> to vector<32x1xf32>
    %269 = tpu.reciprocal %268 {approx = true} : vector<32x1xf32> -> vector<32x1xf32>
    %270 = vector.broadcast %269 : vector<32x1xf32> to vector<32x256xf32>
    %271 = arith.mulf %266, %270 : vector<32x256xf32>
    %272 = arith.truncf %271 : vector<32x256xf32> to vector<32x256xbf16>
    %cst_101 = arith.constant dense<0.000000e+00> : vector<32x16xf32>
    %273 = tpu.matmul %272, %12, %cst_101 {dimension_numbers = #tpu.dot_dimension_numbers<[1], [0], [0], [1], [0, 0, 1, 1], [], []>} : vector<32x256xbf16>, vector<256x16xbf16>, vector<32x16xf32> -> vector<32x16xf32>
    %274 = arith.truncf %273 : vector<32x16xf32> to vector<32x16xbf16>
    %cst_102 = arith.constant dense<0.000000e+00> : vector<8x16xf32>
    %275 = tpu.matmul %1, %274, %cst_102 {dimension_numbers = #tpu.dot_dimension_numbers<[1], [0], [0], [1], [0, 0, 1, 1], [], []>} : vector<8x32xbf16>, vector<32x16xbf16>, vector<8x16xf32> -> vector<8x16xf32>
    %c0_103 = arith.constant 0 : index
    %c0_104 = arith.constant 0 : index
    %c208 = arith.constant 208 : index
    %276 = vector.load %arg4[%c0_103, %c0_104, %c208] : memref<1x8x256xf32, #tpu.memory_space<vmem>>, vector<1x8x16xf32>
    %277 = vector.shape_cast %276 : vector<1x8x16xf32> to vector<8x16xf32>
    %278 = vector.shape_cast %275 : vector<8x16xf32> to vector<1x8x16xf32>
    tpu.vector_store %arg4[%c0_103, %c0_104, %c208], %278 {strides = array<i32>} : memref<1x8x256xf32, #tpu.memory_space<vmem>>, vector<1x8x16xf32>,
    %279 = vector.extract_strided_slice %7 {offsets = [0, 224], sizes = [32, 16], strides = [1, 1]} : vector<32x256xbf16> to vector<32x16xbf16>
    %cst_105 = arith.constant dense<0.000000e+00> : vector<32x256xf32>
    %280 = tpu.matmul %279, %9, %cst_105 {dimension_numbers = #tpu.dot_dimension_numbers<[1], [0], [0], [1], [0, 0, 1, 1], [], []>} : vector<32x16xbf16>, vector<16x256xbf16>, vector<32x256xf32> -> vector<32x256xf32>
    %cst_106 = arith.constant dense<0xFF800000> : vector<32xf32>
    %281 = vector.multi_reduction <maximumf>, %280, %cst_106 [1] : vector<32x256xf32> to vector<32xf32>
    %282 = vector.shape_cast %281 : vector<32xf32> to vector<32x1xf32>
    %283 = vector.broadcast %282 : vector<32x1xf32> to vector<32x256xf32>
    %284 = arith.subf %280, %283 : vector<32x256xf32>
    %285 = math.exp %284 : vector<32x256xf32>
    %cst_107 = arith.constant dense<0.000000e+00> : vector<32xf32>
    %286 = vector.multi_reduction <add>, %285, %cst_107 [1] : vector<32x256xf32> to vector<32xf32>
    %287 = vector.shape_cast %286 : vector<32xf32> to vector<32x1xf32>
    %288 = tpu.reciprocal %287 {approx = true} : vector<32x1xf32> -> vector<32x1xf32>
    %289 = vector.broadcast %288 : vector<32x1xf32> to vector<32x256xf32>
    %290 = arith.mulf %285, %289 : vector<32x256xf32>
    %291 = arith.truncf %290 : vector<32x256xf32> to vector<32x256xbf16>
    %cst_108 = arith.constant dense<0.000000e+00> : vector<32x16xf32>
    %292 = tpu.matmul %291, %12, %cst_108 {dimension_numbers = #tpu.dot_dimension_numbers<[1], [0], [0], [1], [0, 0, 1, 1], [], []>} : vector<32x256xbf16>, vector<256x16xbf16>, vector<32x16xf32> -> vector<32x16xf32>
    %293 = arith.truncf %292 : vector<32x16xf32> to vector<32x16xbf16>
    %cst_109 = arith.constant dense<0.000000e+00> : vector<8x16xf32>
    %294 = tpu.matmul %1, %293, %cst_109 {dimension_numbers = #tpu.dot_dimension_numbers<[1], [0], [0], [1], [0, 0, 1, 1], [], []>} : vector<8x32xbf16>, vector<32x16xbf16>, vector<8x16xf32> -> vector<8x16xf32>
    %c0_110 = arith.constant 0 : index
    %c0_111 = arith.constant 0 : index
    %c224 = arith.constant 224 : index
    %295 = vector.load %arg4[%c0_110, %c0_111, %c224] : memref<1x8x256xf32, #tpu.memory_space<vmem>>, vector<1x8x16xf32>
    %296 = vector.shape_cast %295 : vector<1x8x16xf32> to vector<8x16xf32>
    %297 = vector.shape_cast %294 : vector<8x16xf32> to vector<1x8x16xf32>
    tpu.vector_store %arg4[%c0_110, %c0_111, %c224], %297 {strides = array<i32>} : memref<1x8x256xf32, #tpu.memory_space<vmem>>, vector<1x8x16xf32>,
    %298 = vector.extract_strided_slice %7 {offsets = [0, 240], sizes = [32, 16], strides = [1, 1]} : vector<32x256xbf16> to vector<32x16xbf16>
    %cst_112 = arith.constant dense<0.000000e+00> : vector<32x256xf32>
    %299 = tpu.matmul %298, %9, %cst_112 {dimension_numbers = #tpu.dot_dimension_numbers<[1], [0], [0], [1], [0, 0, 1, 1], [], []>} : vector<32x16xbf16>, vector<16x256xbf16>, vector<32x256xf32> -> vector<32x256xf32>
    %cst_113 = arith.constant dense<0xFF800000> : vector<32xf32>
    %300 = vector.multi_reduction <maximumf>, %299, %cst_113 [1] : vector<32x256xf32> to vector<32xf32>
    %301 = vector.shape_cast %300 : vector<32xf32> to vector<32x1xf32>
    %302 = vector.broadcast %301 : vector<32x1xf32> to vector<32x256xf32>
    %303 = arith.subf %299, %302 : vector<32x256xf32>
    %304 = math.exp %303 : vector<32x256xf32>
    %cst_114 = arith.constant dense<0.000000e+00> : vector<32xf32>
    %305 = vector.multi_reduction <add>, %304, %cst_114 [1] : vector<32x256xf32> to vector<32xf32>
    %306 = vector.shape_cast %305 : vector<32xf32> to vector<32x1xf32>
    %307 = tpu.reciprocal %306 {approx = true} : vector<32x1xf32> -> vector<32x1xf32>
    %308 = vector.broadcast %307 : vector<32x1xf32> to vector<32x256xf32>
    %309 = arith.mulf %304, %308 : vector<32x256xf32>
    %310 = arith.truncf %309 : vector<32x256xf32> to vector<32x256xbf16>
    %cst_115 = arith.constant dense<0.000000e+00> : vector<32x16xf32>
    %311 = tpu.matmul %310, %12, %cst_115 {dimension_numbers = #tpu.dot_dimension_numbers<[1], [0], [0], [1], [0, 0, 1, 1], [], []>} : vector<32x256xbf16>, vector<256x16xbf16>, vector<32x16xf32> -> vector<32x16xf32>
    %312 = arith.truncf %311 : vector<32x16xf32> to vector<32x16xbf16>
    %cst_116 = arith.constant dense<0.000000e+00> : vector<8x16xf32>
    %313 = tpu.matmul %1, %312, %cst_116 {dimension_numbers = #tpu.dot_dimension_numbers<[1], [0], [0], [1], [0, 0, 1, 1], [], []>} : vector<8x32xbf16>, vector<32x16xbf16>, vector<8x16xf32> -> vector<8x16xf32>
    %c0_117 = arith.constant 0 : index
    %c0_118 = arith.constant 0 : index
    %c240 = arith.constant 240 : index
    %314 = vector.load %arg4[%c0_117, %c0_118, %c240] : memref<1x8x256xf32, #tpu.memory_space<vmem>>, vector<1x8x16xf32>
    %315 = vector.shape_cast %314 : vector<1x8x16xf32> to vector<8x16xf32>
    %316 = vector.shape_cast %313 : vector<8x16xf32> to vector<1x8x16xf32>
    tpu.vector_store %arg4[%c0_117, %c0_118, %c240], %316 {strides = array<i32>} : memref<1x8x256xf32, #tpu.memory_space<vmem>>, vector<1x8x16xf32>,
    return
  }
  func.func @transform_0(%arg0: i32) -> (i32, i32, i32) {
    %c0_i32 = arith.constant 0 : i32
    %c0_i32_0 = arith.constant 0 : i32
    %c0_i32_1 = arith.constant 0 : i32
    return %arg0, %c0_i32, %c0_i32_0 : i32, i32, i32
  }
  func.func @transform_1(%arg0: i32) -> (i32, i32) {
    %c0_i32 = arith.constant 0 : i32
    %c0_i32_0 = arith.constant 0 : i32
    %c0_i32_1 = arith.constant 0 : i32
    return %c0_i32, %c0_i32_0 : i32, i32
  }
  func.func @transform_2(%arg0: i32) -> (i32, i32) {
    %c0_i32 = arith.constant 0 : i32
    %c0_i32_0 = arith.constant 0 : i32
    %c0_i32_1 = arith.constant 0 : i32
    return %c0_i32, %c0_i32_0 : i32, i32
  }
  func.func @transform_3(%arg0: i32) -> (i32, i32, i32) {
    %c0_i32 = arith.constant 0 : i32
    %c0_i32_0 = arith.constant 0 : i32
    %c0_i32_1 = arith.constant 0 : i32
    return %arg0, %c0_i32, %c0_i32_0 : i32, i32, i32
  }
}

</mosaic_0001>

<llo_original>
// kernel: mqa_with_downsampling.1
$region0: #{mqa_with_downsampling.1}
  #allocation0 [shape = 'u32[]', space=smem, size = 0x4, offset = 0x4, fixed_abs, tag = 'smem constant byte address 0x4 - core index']
  #allocation1 [shape = 'u32[144,128]{1,0:T(1,128)}', space=vmem, size = 0x12000, scoped, tag = 'internal scratch']
  %s0 = inlined_call_operand.vmem [shape: f32[2,8,256], index: 0, kind: input, shape index: {}]
  %s1 = inlined_call_operand.vmem [shape: bf16[64,8], index: 1, kind: input, shape index: {}]
  %s2 = inlined_call_operand.vmem [shape: bf16[8,32], index: 2, kind: input, shape index: {}]
  %s3 = inlined_call_operand.vmem [shape: f32[2,8,256], index: 3, kind: output, shape index: {}]
  %s4 = sld [smem:[#allocation0]]
  $region45: #{mqa_with_downsampling.1} parent=0
    _
  %s6 = ssub.s32 1, %s4
  %s7 = scalar_select 0, %s6, %s4
  loop: start=0, step=1, limit=4
  $region2: #{mqa_with_downsampling.1} parent=0 // loop_pre_header
    _
  $region3: #{mqa_with_downsampling.1} parent=0 // loop_header
    %s9 = sphi 0, %s13
    %p10 = scmp.ge.s32.totalorder %s9, 4
    %s19 = sphi 0, %s21
    %s22 = sphi 0, %s19
    %s23 = sphi 0, %s22
    %s39 = sphi 0, %s23
    %s43 = sphi 0, %s43
    %s45 = sphi 0, %s43
    %s46 = sphi 0, %s45
    %s60 = sphi 0, %s46
    %s64 = sphi 0, %s64
    %s66 = sphi 0, %s64
    %s67 = sphi 0, %s66
    %s81 = sphi 0, %s67
    %s87 = sphi 0, %s89
    %s90 = sphi 0, %s87
    %s91 = sphi 0, %s90
    %s107 = sphi 0, %s91
  $region4: #{mqa_with_downsampling.1} parent=0 // loop_header_branch
    %12 = sbr.rel (%p10) target = $region8
  $region5: #{mqa_with_downsampling.1} parent=0 // loop_body
    %s14 = ssub.s32 %s9, 1
    %s15 = ssub.s32 %s9, 2
    %s16 = sadd.s32 %s9, 1
    %s17 = ssub.s32 %s9, %s16
    %p18 = scmp.eq.s32.totalorder %s17, 0
    %s20 = sadd.s32 %s19, 1
    %s21 = scalar_select %p18, %s19, %s20
    %p24 = pneg %p18
    %p25 = scmp.eq.s32.totalorder %s9, 1
    %p26 = por %p24, %p25
    %p27 = scmp.ne.s32.totalorder %s19, %s22
    %p28 = scmp.eq.s32.totalorder %s9, 0
    %p29 = por %p27, %p28
    %p30 = scmp.ne.s32.totalorder %s19, %s22
    %p31 = scmp.eq.s32.totalorder %s14, 1
    %p32 = por %p30, %p31
    %p33 = scmp.ne.s32.totalorder %s22, %s23
    %p34 = scmp.eq.s32.totalorder %s14, 0
    %p35 = por %p33, %p34
    %p36 = scmp.ne.s32.totalorder %s22, %s23
    %p37 = scmp.eq.s32.totalorder %s15, 1
    %p38 = por %p36, %p37
    %p40 = scmp.ne.s32.totalorder %s23, %s39
    %p41 = scmp.eq.s32.totalorder %s15, 0
    %p42 = por %p40, %p41
    %s44 = sadd.s32 %s43, 1
    %p47 = scmp.eq.s32.totalorder %s9, 1
    %p48 = scmp.ne.s32.totalorder %s43, %s45
    %p49 = scmp.eq.s32.totalorder %s9, 0
    %p50 = por %p48, %p49
    %p51 = scmp.ne.s32.totalorder %s43, %s45
    %p52 = scmp.eq.s32.totalorder %s14, 1
    %p53 = por %p51, %p52
    %p54 = scmp.ne.s32.totalorder %s45, %s46
    %p55 = scmp.eq.s32.totalorder %s14, 0
    %p56 = por %p54, %p55
    %p57 = scmp.ne.s32.totalorder %s45, %s46
    %p58 = scmp.eq.s32.totalorder %s15, 1
    %p59 = por %p57, %p58
    %p61 = scmp.ne.s32.totalorder %s46, %s60
    %p62 = scmp.eq.s32.totalorder %s15, 0
    %p63 = por %p61, %p62
    %s65 = sadd.s32 %s64, 1
    %p68 = scmp.eq.s32.totalorder %s9, 1
    %p69 = scmp.ne.s32.totalorder %s64, %s66
    %p70 = scmp.eq.s32.totalorder %s9, 0
    %p71 = por %p69, %p70
    %p72 = scmp.ne.s32.totalorder %s64, %s66
    %p73 = scmp.eq.s32.totalorder %s14, 1
    %p74 = por %p72, %p73
    %p75 = scmp.ne.s32.totalorder %s66, %s67
    %p76 = scmp.eq.s32.totalorder %s14, 0
    %p77 = por %p75, %p76
    %p78 = scmp.ne.s32.totalorder %s66, %s67
    %p79 = scmp.eq.s32.totalorder %s15, 1
    %p80 = por %p78, %p79
    %p82 = scmp.ne.s32.totalorder %s67, %s81
    %p83 = scmp.eq.s32.totalorder %s15, 0
    %p84 = por %p82, %p83
    %s85 = ssub.s32 %s9, %s16
    %p86 = scmp.eq.s32.totalorder %s85, 0
    %s88 = sadd.s32 %s87, 1
    %s89 = scalar_select %p86, %s87, %s88
    %p92 = pneg %p86
    %p93 = scmp.eq.s32.totalorder %s9, 1
    %p94 = por %p92, %p93
    %p95 = scmp.ne.s32.totalorder %s87, %s90
    %p96 = scmp.eq.s32.totalorder %s9, 0
    %p97 = por %p95, %p96
    %p98 = scmp.ne.s32.totalorder %s87, %s90
    %p99 = scmp.eq.s32.totalorder %s14, 1
    %p100 = por %p98, %p99
    %p101 = scmp.ne.s32.totalorder %s90, %s91
    %p102 = scmp.eq.s32.totalorder %s14, 0
    %p103 = por %p101, %p102
    %p104 = scmp.ne.s32.totalorder %s90, %s91
    %p105 = scmp.eq.s32.totalorder %s15, 1
    %p106 = por %p104, %p105
    %p108 = scmp.ne.s32.totalorder %s91, %s107
    %p109 = scmp.eq.s32.totalorder %s15, 0
    %p110 = por %p108, %p109
    %p111 = scmp.le.s32.totalorder 1, %s9
    %p112 = scmp.lt.s32.totalorder %s9, 3
    %p113 = pnand %p111, %p112
    %p114 = pneg %p113
    // Predicated region
    $region9: #{mqa_with_downsampling.1} parent=5 // pred_check
      _
    $region10: #{mqa_with_downsampling.1} parent=5 // pred_check_branch
      %116 = sbr.rel (%p113) target = $region12
    $region11: #{mqa_with_downsampling.1} parent=5 // pred_region
      %s117 = ssub.s32 %s9, 1
      // Predicated region
      $region13: #{mqa_with_downsampling.1} parent=11 // pred_check
        %p118 = pneg %p56
      $region14: #{mqa_with_downsampling.1} parent=11 // pred_check_branch
        %120 = sbr.rel (%p118) target = $region16
      $region15: #{mqa_with_downsampling.1} parent=11 // pred_region
        _
      $region16: #{mqa_with_downsampling.1} parent=11 // pred_fallthru
        _
      // Predicated region
      $region17: #{mqa_with_downsampling.1} parent=11 // pred_check
        %p121 = pneg %p77
      $region18: #{mqa_with_downsampling.1} parent=11 // pred_check_branch
        %123 = sbr.rel (%p121) target = $region20
      $region19: #{mqa_with_downsampling.1} parent=11 // pred_region
        _
      $region20: #{mqa_with_downsampling.1} parent=11 // pred_fallthru
        _
    $region12: #{mqa_with_downsampling.1} parent=5 // pred_fallthru
      _
    %p124 = scmp.lt.s32.totalorder %s9, 2
    // Predicated region
    $region21: #{mqa_with_downsampling.1} parent=5 // pred_check
      %p125 = pneg %p124
    $region22: #{mqa_with_downsampling.1} parent=5 // pred_check_branch
      %127 = sbr.rel (%p125) target = $region24
    $region23: #{mqa_with_downsampling.1} parent=5 // pred_region
      // Predicated region
      $region25: #{mqa_with_downsampling.1} parent=23 // pred_check
        %p128 = pneg %p29
      $region26: #{mqa_with_downsampling.1} parent=23 // pred_check_branch
        %130 = sbr.rel (%p128) target = $region28
      $region27: #{mqa_with_downsampling.1} parent=23 // pred_region
        %p131 = scmp.lt.s32.totalorder %s9, 1
        %s132 = scalar_select %p131, %s9, 1
        %s133 = smul.addr %s132, 2
        %s134 = smul.addr %s133, 8
        %s135 = scalar_lea.vmem %s0, %s134
      $region28: #{mqa_with_downsampling.1} parent=23 // pred_fallthru
        _
    $region24: #{mqa_with_downsampling.1} parent=5 // pred_fallthru
      _
    %p136 = scmp.le.s32.totalorder 1, %s9
    %p137 = scmp.lt.s32.totalorder %s9, 3
    %p138 = pnand %p136, %p137
    %p139 = pneg %p138
    // Predicated region
    $region29: #{mqa_with_downsampling.1} parent=5 // pred_check
      _
    $region30: #{mqa_with_downsampling.1} parent=5 // pred_check_branch
      %141 = sbr.rel (%p138) target = $region32
    $region31: #{mqa_with_downsampling.1} parent=5 // pred_region
      %s142 = ssub.s32 %s9, 1
      %p143 = scmp.lt.s32.totalorder %s14, 1
      %s144 = scalar_select %p143, %s14, 1
      %s145 = smul.addr %s144, 2
      %s146 = smul.addr %s145, 8
      %s147 = scalar_lea.vmem %s0, %s146
      %p148 = pneg %p35
      %p149 = pneg %p32
      %p150 = pneg %p56
      %p151 = pneg %p53
      %p152 = pneg %p77
      %p153 = pneg %p74
      %p154 = pneg %p103
      %p155 = pneg %p100
      %p156 = scmp.lt.s32.totalorder %s14, 1
      %s157 = scalar_select %p156, %s14, 1
      %s158 = smul.addr %s157, 2
      %s159 = smul.addr %s158, 8
      %s160 = scalar_lea.vmem %s3, %s159
      %p161 = scmp.lt.s32.totalorder %s14, 1
      %s162 = scalar_select %p161, %s14, 1
      %s163 = smul.addr %s162, 2
      %s164 = smul.addr %s163, 8
      %s165 = scalar_lea.vmem %s0, %s164
      %p166 = scmp.lt.s32.totalorder %s14, 1
      %s167 = scalar_select %p166, %s14, 1
      %s168 = smul.addr %s167, 2
      %s169 = smul.addr %s168, 8
      %s170 = scalar_lea.vmem %s3, %s169
      %v172 = vld [vmem:[%s1] sm:$0xf]
      %v173 = vld [vmem:[%s1 + $0x4] sm:$0xf]
      %v174 = vld [vmem:[%s1 + $0x8] sm:$0xf]
      %v175 = vld [vmem:[%s1 + $0xc] sm:$0xf]
      %v176 = vld [vmem:[%s1 + $0x10] sm:$0xf]
      %v177 = vld [vmem:[%s1 + $0x14] sm:$0xf]
      %v178 = vld [vmem:[%s1 + $0x18] sm:$0xf]
      %v179 = vld [vmem:[%s1 + $0x1c] sm:$0xf]
      %v180 = vld [vmem:[%s2] sm:$0xf]
      %v181 = vld [vmem:[%s165] sm:$0xff]
      %v182 = vld [vmem:[%s165 + $0x8] sm:$0xff]
      %v183 = vpack.c.bf16 %v181, %v181
      %v184 = vpack.c.bf16 %v182, %v182
      %v193 = vunpack.c.l.b16 %v172
      %v194 = vunpack.c.l.b16 %v173
      %v195 = vunpack.c.l.b16 %v174
      %v196 = vunpack.c.l.b16 %v175
      %v197 = vunpack.c.l.b16 %v176
      %v198 = vunpack.c.l.b16 %v177
      %v199 = vunpack.c.l.b16 %v178
      %v200 = vunpack.c.l.b16 %v179
      %v201 = vpack.c.b16 %v194, %v193
      %v202 = vpack.c.b16 %v196, %v195
      %v203 = vpack.c.b16 %v198, %v197
      %v204 = vpack.c.b16 %v200, %v199
      %vm205 = vcmask 64512
      %v207 = vsel %vm205, %v201, 0
      %v210 = vsel %vm205, %v202, 0
      %v213 = vsel %vm205, %v203, 0
      %v216 = vsel %vm205, %v204, 0
      %vm218 = vcmask 1043456
      %v220 = vsel %vm218, %v183, 0
      %v223 = vsel %vm218, %v184, 0
      %225 = vmatprep.subr.bf16.mxu0 0
      %226 = vmatpush1.bf16.msra.mxu0 0
      %227 = vmatprep.subr.bf16.mxu0 0
      %228 = vmatpush1.bf16.msra.mxu0 0
      %229 = vmatprep.subr.bf16.mxu0 0
      %230 = vmatpush1.bf16.msra.mxu0 0
      %231 = vmatprep.subr.bf16.mxu0 0
      %232 = vmatpush1.bf16.msra.mxu0 0
      %233 = vmatprep.subr.bf16.mxu0 0
      %234 = vmatpush1.bf16.msra.mxu0 0
      %235 = vmatprep.subr.bf16.mxu0 0
      %236 = vmatpush1.bf16.msra.mxu0 0
      %237 = vmatprep.subr.bf16.mxu0 0
      %238 = vmatpush1.bf16.msra.mxu0 0
      %239 = vmatprep.subr.bf16.mxu0 %v223
      %240 = vmatpush1.bf16.msra.mxu0 %v220
      %241 = vmatprep.subr.bf16.mxu0 0
      %242 = vmatpush2.bf16.msra.mxu0 0
      %243 = vmatprep.subr.bf16.mxu0 0
      %244 = vmatpush2.bf16.msra.mxu0 0
      %245 = vmatprep.subr.bf16.mxu0 0
      %246 = vmatpush2.bf16.msra.mxu0 0
      %247 = vmatprep.subr.bf16.mxu0 0
      %248 = vmatpush2.bf16.msra.mxu0 0
      %249 = vmatprep.subr.bf16.mxu0 0
      %250 = vmatpush2.bf16.msra.mxu0 0
      %251 = vmatprep.subr.bf16.mxu0 0
      %252 = vmatpush2.bf16.msra.mxu0 0
      %253 = vmatprep.subr.bf16.mxu0 0
      %254 = vmatpush2.bf16.msra.mxu0 0
      %255 = vmatprep.subr.bf16.mxu0 0
      %256 = vmatpush2.bf16.msra.mxu0 0
      %257 = vmatprep.mubr.bf16.mxu0 0
      %258 = vmatmul.mubr.bf16.gmra.mxu0 %v207
      %v259 = vpop.f32.mrf.mxu0
      %v260 = vadd.f32 0.0, %v259
      %v261 = vpop.f32.mrf.mxu0
      %v262 = vadd.f32 0.0, %v261
      %v263 = vpop.f32.mrf.mxu0
      %v264 = vadd.f32 0.0, %v263
      %v265 = vpop.f32.mrf.mxu0
      %v266 = vadd.f32 0.0, %v265
      %267 = vmatprep.mubr.bf16.mxu0 0
      %268 = vmatmul.mubr.bf16.gmra.mxu0 %v210
      %v269 = vpop.f32.mrf.mxu0
      %v270 = vadd.f32 0.0, %v269
      %v271 = vpop.f32.mrf.mxu0
      %v272 = vadd.f32 0.0, %v271
      %v273 = vpop.f32.mrf.mxu0
      %v274 = vadd.f32 0.0, %v273
      %v275 = vpop.f32.mrf.mxu0
      %v276 = vadd.f32 0.0, %v275
      %277 = vmatprep.mubr.bf16.mxu0 0
      %278 = vmatmul.mubr.bf16.gmra.mxu0 %v213
      %v279 = vpop.f32.mrf.mxu0
      %v280 = vadd.f32 0.0, %v279
      %v281 = vpop.f32.mrf.mxu0
      %v282 = vadd.f32 0.0, %v281
      %v283 = vpop.f32.mrf.mxu0
      %v284 = vadd.f32 0.0, %v283
      %v285 = vpop.f32.mrf.mxu0
      %v286 = vadd.f32 0.0, %v285
      %287 = vmatprep.mubr.bf16.mxu0 0
      %288 = vmatmul.mubr.bf16.gmra.mxu0 %v216
      %v289 = vpop.f32.mrf.mxu0
      %v290 = vadd.f32 0.0, %v289
      %v291 = vpop.f32.mrf.mxu0
      %v292 = vadd.f32 0.0, %v291
      %v293 = vpop.f32.mrf.mxu0
      %v294 = vadd.f32 0.0, %v293
      %v295 = vpop.f32.mrf.mxu0
      %v296 = vadd.f32 0.0, %v295
      %297 = vdwg.mxu0
      %v298 = vpack.c.bf16 %v264, %v260
      %v299 = vpack.c.bf16 %v266, %v262
      %v300 = vpack.c.bf16 %v274, %v270
      %v301 = vpack.c.bf16 %v276, %v272
      %v302 = vpack.c.bf16 %v284, %v280
      %v303 = vpack.c.bf16 %v286, %v282
      %304 = vxpose.xlu0.b32.start [1/16] %v290, 128
      %305 = vxpose.xlu0.b32.cont [2/16] %v294, 128
      %306 = vxpose.xlu0.b32.cont [3/16] 0.0, 128
      %307 = vxpose.xlu0.b32.cont [4/16] 0.0, 128
      %308 = vxpose.xlu0.b32.cont [5/16] 0.0, 128
      %309 = vxpose.xlu0.b32.cont [6/16] 0.0, 128
      %310 = vxpose.xlu0.b32.cont [7/16] 0.0, 128
      %311 = vxpose.xlu0.b32.cont [8/16] 0.0, 128
      %312 = vxpose.xlu0.b32.cont [9/16] 0.0, 128
      %313 = vxpose.xlu0.b32.cont [10/16] 0.0, 128
      %314 = vxpose.xlu0.b32.cont [11/16] 0.0, 128
      %315 = vxpose.xlu0.b32.cont [12/16] 0.0, 128
      %316 = vxpose.xlu0.b32.cont [13/16] 0.0, 128
      %317 = vxpose.xlu0.b32.cont [14/16] 0.0, 128
      %318 = vxpose.xlu0.b32.cont [15/16] 0.0, 128
      %319 = vxpose.xlu0.b32.end [16/16] 0.0, 128
      %v320 = vpop.trf.xlu0
      %v321 = vpop.trf.xlu0
      %v322 = vpop.trf.xlu0
      %v323 = vpop.trf.xlu0
      %v324 = vpop.trf.xlu0
      %v325 = vpop.trf.xlu0
      %v326 = vpop.trf.xlu0
      %v327 = vpop.trf.xlu0
      %v328 = vpop.trf.xlu0
      %v329 = vpop.trf.xlu0
      %v330 = vpop.trf.xlu0
      %v331 = vpop.trf.xlu0
      %v332 = vpop.trf.xlu0
      %v333 = vpop.trf.xlu0
      %v334 = vpop.trf.xlu0
      %v335 = vpop.trf.xlu0
      %336 = vxpose.xlu0.b32.start [1/16] %v292, 128
      %337 = vxpose.xlu0.b32.cont [2/16] %v296, 128
      %338 = vxpose.xlu0.b32.cont [3/16] 0.0, 128
      %339 = vxpose.xlu0.b32.cont [4/16] 0.0, 128
      %340 = vxpose.xlu0.b32.cont [5/16] 0.0, 128
      %341 = vxpose.xlu0.b32.cont [6/16] 0.0, 128
      %342 = vxpose.xlu0.b32.cont [7/16] 0.0, 128
      %343 = vxpose.xlu0.b32.cont [8/16] 0.0, 128
      %344 = vxpose.xlu0.b32.cont [9/16] 0.0, 128
      %345 = vxpose.xlu0.b32.cont [10/16] 0.0, 128
      %346 = vxpose.xlu0.b32.cont [11/16] 0.0, 128
      %347 = vxpose.xlu0.b32.cont [12/16] 0.0, 128
      %348 = vxpose.xlu0.b32.cont [13/16] 0.0, 128
      %349 = vxpose.xlu0.b32.cont [14/16] 0.0, 128
      %350 = vxpose.xlu0.b32.cont [15/16] 0.0, 128
      %351 = vxpose.xlu0.b32.end [16/16] 0.0, 128
      %v352 = vpop.trf.xlu0
      %v353 = vpop.trf.xlu0
      %v354 = vpop.trf.xlu0
      %v355 = vpop.trf.xlu0
      %v356 = vpop.trf.xlu0
      %v357 = vpop.trf.xlu0
      %v358 = vpop.trf.xlu0
      %v359 = vpop.trf.xlu0
      %v360 = vpop.trf.xlu0
      %v361 = vpop.trf.xlu0
      %v362 = vpop.trf.xlu0
      %v363 = vpop.trf.xlu0
      %v364 = vpop.trf.xlu0
      %v365 = vpop.trf.xlu0
      %v366 = vpop.trf.xlu0
      %v367 = vpop.trf.xlu0
      %v368 = vpack.c.bf16 %v321, %v320
      %v369 = vpack.c.bf16 %v323, %v322
      %v370 = vpack.c.bf16 %v325, %v324
      %v371 = vpack.c.bf16 %v327, %v326
      %v372 = vpack.c.bf16 %v329, %v328
      %v373 = vpack.c.bf16 %v331, %v330
      %v374 = vpack.c.bf16 %v333, %v332
      %v375 = vpack.c.bf16 %v335, %v334
      %v376 = vpack.c.bf16 %v353, %v352
      %v377 = vpack.c.bf16 %v355, %v354
      %v378 = vpack.c.bf16 %v357, %v356
      %v379 = vpack.c.bf16 %v359, %v358
      %v380 = vpack.c.bf16 %v361, %v360
      %v381 = vpack.c.bf16 %v363, %v362
      %v382 = vpack.c.bf16 %v365, %v364
      %v383 = vpack.c.bf16 %v367, %v366
      %vm384 = vcmask 130048
      %v386 = vsel %vm384, %v298, 0
      %v389 = vsel %vm384, %v300, 0
      %391 = vmatprep.subr.bf16.mxu0 0
      %392 = vmatpush1.bf16.msra.mxu0 0
      %393 = vmatprep.subr.bf16.mxu0 0
      %394 = vmatpush1.bf16.msra.mxu0 0
      %395 = vmatprep.subr.bf16.mxu0 0
      %396 = vmatpush1.bf16.msra.mxu0 0
      %397 = vmatprep.subr.bf16.mxu0 0
      %398 = vmatpush1.bf16.msra.mxu0 0
      %399 = vmatprep.subr.bf16.mxu0 0
      %400 = vmatpush1.bf16.msra.mxu0 0
      %401 = vmatprep.subr.bf16.mxu0 0
      %402 = vmatpush1.bf16.msra.mxu0 0
      %403 = vmatprep.subr.bf16.mxu0 0
      %404 = vmatpush1.bf16.msra.mxu0 0
      %405 = vmatprep.subr.bf16.mxu0 %v303
      %406 = vmatpush1.bf16.msra.mxu0 %v302
      %407 = vmatprep.subr.bf16.mxu0 0
      %408 = vmatpush2.bf16.msra.mxu0 0
      %409 = vmatprep.subr.bf16.mxu0 0
      %410 = vmatpush2.bf16.msra.mxu0 0
      %411 = vmatprep.subr.bf16.mxu0 0
      %412 = vmatpush2.bf16.msra.mxu0 0
      %413 = vmatprep.subr.bf16.mxu0 0
      %414 = vmatpush2.bf16.msra.mxu0 0
      %415 = vmatprep.subr.bf16.mxu0 0
      %416 = vmatpush2.bf16.msra.mxu0 0
      %417 = vmatprep.subr.bf16.mxu0 0
      %418 = vmatpush2.bf16.msra.mxu0 0
      %419 = vmatprep.subr.bf16.mxu0 0
      %420 = vmatpush2.bf16.msra.mxu0 0
      %421 = vmatprep.subr.bf16.mxu0 0
      %422 = vmatpush2.bf16.msra.mxu0 0
      %423 = vmatprep.mubr.bf16.mxu0 0
      %424 = vmatmul.mubr.bf16.gmra.mxu0 %v386
      %v425 = vpop.f32.mrf.mxu0
      %v426 = vadd.f32 0.0, %v425
      %v427 = vpop.f32.mrf.mxu0
      %v428 = vadd.f32 0.0, %v427
      %v429 = vpop.f32.mrf.mxu0
      %v430 = vadd.f32 0.0, %v429
      %v431 = vpop.f32.mrf.mxu0
      %v432 = vadd.f32 0.0, %v431
      %433 = vmatprep.mubr.bf16.mxu0 0
      %434 = vmatmul.mubr.bf16.gmra.mxu0 %v389
      %v435 = vpop.f32.mrf.mxu0
      %v436 = vadd.f32 0.0, %v435
      %v437 = vpop.f32.mrf.mxu0
      %v438 = vadd.f32 0.0, %v437
      %v439 = vpop.f32.mrf.mxu0
      %v440 = vadd.f32 0.0, %v439
      %v441 = vpop.f32.mrf.mxu0
      %v442 = vadd.f32 0.0, %v441
      %443 = vdwg.mxu0
      %v444 = vmax.f32 %v426, %v428
      %445 = vmax.xlane.f32.xlu0 %v444
      %v446 = vpop.xlane.xlu0 %445
      %v447 = vmax.f32 %v430, %v432
      %448 = vmax.xlane.f32.xlu0 %v447
      %v449 = vpop.xlane.xlu0 %448
      %v450 = vmax.f32 %v436, %v438
      %451 = vmax.xlane.f32.xlu0 %v450
      %v452 = vpop.xlane.xlu0 %451
      %v453 = vmax.f32 %v440, %v442
      %454 = vmax.xlane.f32.xlu0 %v453
      %v455 = vpop.xlane.xlu0 %454
      %v456 = vsub.f32 %v426, %v446
      %v457 = vsub.f32 %v428, %v446
      %v458 = vsub.f32 %v430, %v449
      %v459 = vsub.f32 %v432, %v449
      %v460 = vsub.f32 %v436, %v452
      %v461 = vsub.f32 %v438, %v452
      %v462 = vsub.f32 %v440, %v455
      %v463 = vsub.f32 %v442, %v455
      %v464 = vmul.f32 %v456, 1.442695
      %v465 = vpow.pop %v464
      %v466 = vmul.f32 %v457, 1.442695
      %v467 = vpow.pop %v466
      %v468 = vmul.f32 %v458, 1.442695
      %v469 = vpow.pop %v468
      %v470 = vmul.f32 %v459, 1.442695
      %v471 = vpow.pop %v470
      %v472 = vmul.f32 %v460, 1.442695
      %v473 = vpow.pop %v472
      %v474 = vmul.f32 %v461, 1.442695
      %v475 = vpow.pop %v474
      %v476 = vmul.f32 %v462, 1.442695
      %v477 = vpow.pop %v476
      %v478 = vmul.f32 %v463, 1.442695
      %v479 = vpow.pop %v478
      %v480 = vadd.f32 %v465, %v467
      %481 = vadd.xlane.f32.xlu0 %v480
      %v482 = vpop.xlane.xlu0 %481
      %v483 = vadd.f32 %v469, %v471
      %484 = vadd.xlane.f32.xlu0 %v483
      %v485 = vpop.xlane.xlu0 %484
      %v486 = vadd.f32 %v473, %v475
      %487 = vadd.xlane.f32.xlu0 %v486
      %v488 = vpop.xlane.xlu0 %487
      %v489 = vadd.f32 %v477, %v479
      %490 = vadd.xlane.f32.xlu0 %v489
      %v491 = vpop.xlane.xlu0 %490
      %v492 = vrcp.pop %v482
      %v493 = vrcp.pop %v485
      %v494 = vrcp.pop %v488
      %v495 = vrcp.pop %v491
      %v496 = vmul.f32 %v465, %v492
      %v497 = vmul.f32 %v467, %v492
      %v498 = vmul.f32 %v469, %v493
      %v499 = vmul.f32 %v471, %v493
      %v500 = vmul.f32 %v473, %v494
      %v501 = vmul.f32 %v475, %v494
      %v502 = vmul.f32 %v477, %v495
      %v503 = vmul.f32 %v479, %v495
      %v504 = vpack.c.bf16 %v498, %v496
      %v505 = vpack.c.bf16 %v499, %v497
      %v506 = vpack.c.bf16 %v502, %v500
      %v507 = vpack.c.bf16 %v503, %v501
      %508 = vmatprep.subr.bf16.mxu0 0
      %509 = vmatpush1.bf16.msra.mxu0 %v375
      %510 = vmatprep.subr.bf16.mxu0 0
      %511 = vmatpush1.bf16.msra.mxu0 %v374
      %512 = vmatprep.subr.bf16.mxu0 0
      %513 = vmatpush1.bf16.msra.mxu0 %v373
      %514 = vmatprep.subr.bf16.mxu0 0
      %515 = vmatpush1.bf16.msra.mxu0 %v372
      %516 = vmatprep.subr.bf16.mxu0 0
      %517 = vmatpush1.bf16.msra.mxu0 %v371
      %518 = vmatprep.subr.bf16.mxu0 0
      %519 = vmatpush1.bf16.msra.mxu0 %v370
      %520 = vmatprep.subr.bf16.mxu0 0
      %521 = vmatpush1.bf16.msra.mxu0 %v369
      %522 = vmatprep.subr.bf16.mxu0 0
      %523 = vmatpush1.bf16.msra.mxu0 %v368
      %524 = vmatprep.subr.bf16.mxu0 0
      %525 = vmatpush2.bf16.msra.mxu0 %v383
      %526 = vmatprep.subr.bf16.mxu0 0
      %527 = vmatpush2.bf16.msra.mxu0 %v382
      %528 = vmatprep.subr.bf16.mxu0 0
      %529 = vmatpush2.bf16.msra.mxu0 %v381
      %530 = vmatprep.subr.bf16.mxu0 0
      %531 = vmatpush2.bf16.msra.mxu0 %v380
      %532 = vmatprep.subr.bf16.mxu0 0
      %533 = vmatpush2.bf16.msra.mxu0 %v379
      %534 = vmatprep.subr.bf16.mxu0 0
      %535 = vmatpush2.bf16.msra.mxu0 %v378
      %536 = vmatprep.subr.bf16.mxu0 0
      %537 = vmatpush2.bf16.msra.mxu0 %v377
      %538 = vmatprep.subr.bf16.mxu0 0
      %539 = vmatpush2.bf16.msra.mxu0 %v376
      %540 = vmatprep.mubr.bf16.mxu0 %v505
      %541 = vmatmul.mubr.bf16.gmra.mxu0 %v504
      %v542 = vpop.f32.mrf.mxu0
      %v543 = vadd.f32 0.0, %v542
      %v544 = vpop.f32.mrf.mxu0
      %v545 = vpop.f32.mrf.mxu0
      %v546 = vadd.f32 0.0, %v545
      %v547 = vpop.f32.mrf.mxu0
      %548 = vmatprep.mubr.bf16.mxu0 %v507
      %549 = vmatmul.mubr.bf16.gmra.mxu0 %v506
      %v550 = vpop.f32.mrf.mxu0
      %v551 = vadd.f32 0.0, %v550
      %v552 = vpop.f32.mrf.mxu0
      %v553 = vpop.f32.mrf.mxu0
      %v554 = vadd.f32 0.0, %v553
      %v555 = vpop.f32.mrf.mxu0
      %556 = vdwg.mxu0
      %v557 = vpack.c.bf16 %v546, %v543
      %v558 = vpack.c.bf16 %v554, %v551
      %vm559 = vcmask 261120
      %v561 = vsel %vm559, %v180, 0
      %563 = vmatprep.subr.bf16.mxu0 0
      %564 = vmatpush1.bf16.msra.mxu0 0
      %565 = vmatprep.subr.bf16.mxu0 0
      %566 = vmatpush1.bf16.msra.mxu0 0
      %567 = vmatprep.subr.bf16.mxu0 0
      %568 = vmatpush1.bf16.msra.mxu0 0
      %569 = vmatprep.subr.bf16.mxu0 0
      %570 = vmatpush1.bf16.msra.mxu0 0
      %571 = vmatprep.subr.bf16.mxu0 0
      %572 = vmatpush1.bf16.msra.mxu0 0
      %573 = vmatprep.subr.bf16.mxu0 0
      %574 = vmatpush1.bf16.msra.mxu0 0
      %575 = vmatprep.subr.bf16.mxu0 0
      %576 = vmatpush1.bf16.msra.mxu0 %v558
      %577 = vmatprep.subr.bf16.mxu0 0
      %578 = vmatpush1.bf16.msra.mxu0 %v557
      %579 = vmatprep.subr.bf16.mxu0 0
      %580 = vmatpush2.bf16.msra.mxu0 0
      %581 = vmatprep.subr.bf16.mxu0 0
      %582 = vmatpush2.bf16.msra.mxu0 0
      %583 = vmatprep.subr.bf16.mxu0 0
      %584 = vmatpush2.bf16.msra.mxu0 0
      %585 = vmatprep.subr.bf16.mxu0 0
      %586 = vmatpush2.bf16.msra.mxu0 0
      %587 = vmatprep.subr.bf16.mxu0 0
      %588 = vmatpush2.bf16.msra.mxu0 0
      %589 = vmatprep.subr.bf16.mxu0 0
      %590 = vmatpush2.bf16.msra.mxu0 0
      %591 = vmatprep.subr.bf16.mxu0 0
      %592 = vmatpush2.bf16.msra.mxu0 0
      %593 = vmatprep.subr.bf16.mxu0 0
      %594 = vmatpush2.bf16.msra.mxu0 0
      %595 = vmatprep.mubr.bf16.mxu0 0
      %596 = vmatmul.mubr.bf16.gmra.mxu0 %v561
      %v597 = vpop.f32.mrf.mxu0
      %v598 = vadd.f32 0.0, %v597
      %v599 = vpop.f32.mrf.mxu0
      %v600 = vpop.f32.mrf.mxu0
      %v601 = vpop.f32.mrf.mxu0
      %602 = vdwg.mxu0
      %603 = vst.msk [vmem:[%s170] sm:$0xff] %vm384, %v598
      %606 = vrot.lane.b32.xlu0 %v298, 112
      %v607 = vpop.permute.xlu0 %606
      %608 = vrot.lane.b32.xlu0 %v300, 112
      %v609 = vpop.permute.xlu0 %608
      %v611 = vsel %vm384, %v607, 0
      %v614 = vsel %vm384, %v609, 0
      %616 = vmatprep.subr.bf16.mxu0 0
      %617 = vmatpush1.bf16.msra.mxu0 0
      %618 = vmatprep.subr.bf16.mxu0 0
      %619 = vmatpush1.bf16.msra.mxu0 0
      %620 = vmatprep.subr.bf16.mxu0 0
      %621 = vmatpush1.bf16.msra.mxu0 0
      %622 = vmatprep.subr.bf16.mxu0 0
      %623 = vmatpush1.bf16.msra.mxu0 0
      %624 = vmatprep.subr.bf16.mxu0 0
      %625 = vmatpush1.bf16.msra.mxu0 0
      %626 = vmatprep.subr.bf16.mxu0 0
      %627 = vmatpush1.bf16.msra.mxu0 0
      %628 = vmatprep.subr.bf16.mxu0 0
      %629 = vmatpush1.bf16.msra.mxu0 0
      %630 = vmatprep.subr.bf16.mxu0 %v303
      %631 = vmatpush1.bf16.msra.mxu0 %v302
      %632 = vmatprep.subr.bf16.mxu0 0
      %633 = vmatpush2.bf16.msra.mxu0 0
      %634 = vmatprep.subr.bf16.mxu0 0
      %635 = vmatpush2.bf16.msra.mxu0 0
      %636 = vmatprep.subr.bf16.mxu0 0
      %637 = vmatpush2.bf16.msra.mxu0 0
      %638 = vmatprep.subr.bf16.mxu0 0
      %639 = vmatpush2.bf16.msra.mxu0 0
      %640 = vmatprep.subr.bf16.mxu0 0
      %641 = vmatpush2.bf16.msra.mxu0 0
      %642 = vmatprep.subr.bf16.mxu0 0
      %643 = vmatpush2.bf16.msra.mxu0 0
      %644 = vmatprep.subr.bf16.mxu0 0
      %645 = vmatpush2.bf16.msra.mxu0 0
      %646 = vmatprep.subr.bf16.mxu0 0
      %647 = vmatpush2.bf16.msra.mxu0 0
      %648 = vmatprep.mubr.bf16.mxu0 0
      %649 = vmatmul.mubr.bf16.gmra.mxu0 %v611
      %v650 = vpop.f32.mrf.mxu0
      %v651 = vadd.f32 0.0, %v650
      %v652 = vpop.f32.mrf.mxu0
      %v653 = vadd.f32 0.0, %v652
      %v654 = vpop.f32.mrf.mxu0
      %v655 = vadd.f32 0.0, %v654
      %v656 = vpop.f32.mrf.mxu0
      %v657 = vadd.f32 0.0, %v656
      %658 = vmatprep.mubr.bf16.mxu0 0
      %659 = vmatmul.mubr.bf16.gmra.mxu0 %v614
      %v660 = vpop.f32.mrf.mxu0
      %v661 = vadd.f32 0.0, %v660
      %v662 = vpop.f32.mrf.mxu0
      %v663 = vadd.f32 0.0, %v662
      %v664 = vpop.f32.mrf.mxu0
      %v665 = vadd.f32 0.0, %v664
      %v666 = vpop.f32.mrf.mxu0
      %v667 = vadd.f32 0.0, %v666
      %668 = vdwg.mxu0
      %v669 = vmax.f32 %v651, %v653
      %670 = vmax.xlane.f32.xlu0 %v669
      %v671 = vpop.xlane.xlu0 %670
      %v672 = vmax.f32 %v655, %v657
      %673 = vmax.xlane.f32.xlu0 %v672
      %v674 = vpop.xlane.xlu0 %673
      %v675 = vmax.f32 %v661, %v663
      %676 = vmax.xlane.f32.xlu0 %v675
      %v677 = vpop.xlane.xlu0 %676
      %v678 = vmax.f32 %v665, %v667
      %679 = vmax.xlane.f32.xlu0 %v678
      %v680 = vpop.xlane.xlu0 %679
      %v681 = vsub.f32 %v651, %v671
      %v682 = vsub.f32 %v653, %v671
      %v683 = vsub.f32 %v655, %v674
      %v684 = vsub.f32 %v657, %v674
      %v685 = vsub.f32 %v661, %v677
      %v686 = vsub.f32 %v663, %v677
      %v687 = vsub.f32 %v665, %v680
      %v688 = vsub.f32 %v667, %v680
      %v689 = vmul.f32 %v681, 1.442695
      %v690 = vpow.pop %v689
      %v691 = vmul.f32 %v682, 1.442695
      %v692 = vpow.pop %v691
      %v693 = vmul.f32 %v683, 1.442695
      %v694 = vpow.pop %v693
      %v695 = vmul.f32 %v684, 1.442695
      %v696 = vpow.pop %v695
      %v697 = vmul.f32 %v685, 1.442695
      %v698 = vpow.pop %v697
      %v699 = vmul.f32 %v686, 1.442695
      %v700 = vpow.pop %v699
      %v701 = vmul.f32 %v687, 1.442695
      %v702 = vpow.pop %v701
      %v703 = vmul.f32 %v688, 1.442695
      %v704 = vpow.pop %v703
      %v705 = vadd.f32 %v690, %v692
      %706 = vadd.xlane.f32.xlu0 %v705
      %v707 = vpop.xlane.xlu0 %706
      %v708 = vadd.f32 %v694, %v696
      %709 = vadd.xlane.f32.xlu0 %v708
      %v710 = vpop.xlane.xlu0 %709
      %v711 = vadd.f32 %v698, %v700
      %712 = vadd.xlane.f32.xlu0 %v711
      %v713 = vpop.xlane.xlu0 %712
      %v714 = vadd.f32 %v702, %v704
      %715 = vadd.xlane.f32.xlu0 %v714
      %v716 = vpop.xlane.xlu0 %715
      %v717 = vrcp.pop %v707
      %v718 = vrcp.pop %v710
      %v719 = vrcp.pop %v713
      %v720 = vrcp.pop %v716
      %v721 = vmul.f32 %v690, %v717
      %v722 = vmul.f32 %v692, %v717
      %v723 = vmul.f32 %v694, %v718
      %v724 = vmul.f32 %v696, %v718
      %v725 = vmul.f32 %v698, %v719
      %v726 = vmul.f32 %v700, %v719
      %v727 = vmul.f32 %v702, %v720
      %v728 = vmul.f32 %v704, %v720
      %v729 = vpack.c.bf16 %v723, %v721
      %v730 = vpack.c.bf16 %v724, %v722
      %v731 = vpack.c.bf16 %v727, %v725
      %v732 = vpack.c.bf16 %v728, %v726
      %733 = vmatprep.subr.bf16.mxu0 0
      %734 = vmatpush1.bf16.msra.mxu0 %v375
      %735 = vmatprep.subr.bf16.mxu0 0
      %736 = vmatpush1.bf16.msra.mxu0 %v374
      %737 = vmatprep.subr.bf16.mxu0 0
      %738 = vmatpush1.bf16.msra.mxu0 %v373
      %739 = vmatprep.subr.bf16.mxu0 0
      %740 = vmatpush1.bf16.msra.mxu0 %v372
      %741 = vmatprep.subr.bf16.mxu0 0
      %742 = vmatpush1.bf16.msra.mxu0 %v371
      %743 = vmatprep.subr.bf16.mxu0 0
      %744 = vmatpush1.bf16.msra.mxu0 %v370
      %745 = vmatprep.subr.bf16.mxu0 0
      %746 = vmatpush1.bf16.msra.mxu0 %v369
      %747 = vmatprep.subr.bf16.mxu0 0
      %748 = vmatpush1.bf16.msra.mxu0 %v368
      %749 = vmatprep.subr.bf16.mxu0 0
      %750 = vmatpush2.bf16.msra.mxu0 %v383
      %751 = vmatprep.subr.bf16.mxu0 0
      %752 = vmatpush2.bf16.msra.mxu0 %v382
      %753 = vmatprep.subr.bf16.mxu0 0
      %754 = vmatpush2.bf16.msra.mxu0 %v381
      %755 = vmatprep.subr.bf16.mxu0 0
      %756 = vmatpush2.bf16.msra.mxu0 %v380
      %757 = vmatprep.subr.bf16.mxu0 0
      %758 = vmatpush2.bf16.msra.mxu0 %v379
      %759 = vmatprep.subr.bf16.mxu0 0
      %760 = vmatpush2.bf16.msra.mxu0 %v378
      %761 = vmatprep.subr.bf16.mxu0 0
      %762 = vmatpush2.bf16.msra.mxu0 %v377
      %763 = vmatprep.subr.bf16.mxu0 0
      %764 = vmatpush2.bf16.msra.mxu0 %v376
      %765 = vmatprep.mubr.bf16.mxu0 %v730
      %766 = vmatmul.mubr.bf16.gmra.mxu0 %v729
      %v767 = vpop.f32.mrf.mxu0
      %v768 = vadd.f32 0.0, %v767
      %v769 = vpop.f32.mrf.mxu0
      %v770 = vpop.f32.mrf.mxu0
      %v771 = vadd.f32 0.0, %v770
      %v772 = vpop.f32.mrf.mxu0
      %773 = vmatprep.mubr.bf16.mxu0 %v732
      %774 = vmatmul.mubr.bf16.gmra.mxu0 %v731
      %v775 = vpop.f32.mrf.mxu0
      %v776 = vadd.f32 0.0, %v775
      %v777 = vpop.f32.mrf.mxu0
      %v778 = vpop.f32.mrf.mxu0
      %v779 = vadd.f32 0.0, %v778
      %v780 = vpop.f32.mrf.mxu0
      %781 = vdwg.mxu0
      %v782 = vpack.c.bf16 %v771, %v768
      %v783 = vpack.c.bf16 %v779, %v776
      %784 = vmatprep.subr.bf16.mxu0 0
      %785 = vmatpush1.bf16.msra.mxu0 0
      %786 = vmatprep.subr.bf16.mxu0 0
      %787 = vmatpush1.bf16.msra.mxu0 0
      %788 = vmatprep.subr.bf16.mxu0 0
      %789 = vmatpush1.bf16.msra.mxu0 0
      %790 = vmatprep.subr.bf16.mxu0 0
      %791 = vmatpush1.bf16.msra.mxu0 0
      %792 = vmatprep.subr.bf16.mxu0 0
      %793 = vmatpush1.bf16.msra.mxu0 0
      %794 = vmatprep.subr.bf16.mxu0 0
      %795 = vmatpush1.bf16.msra.mxu0 0
      %796 = vmatprep.subr.bf16.mxu0 0
      %797 = vmatpush1.bf16.msra.mxu0 %v783
      %798 = vmatprep.subr.bf16.mxu0 0
      %799 = vmatpush1.bf16.msra.mxu0 %v782
      %800 = vmatprep.subr.bf16.mxu0 0
      %801 = vmatpush2.bf16.msra.mxu0 0
      %802 = vmatprep.subr.bf16.mxu0 0
      %803 = vmatpush2.bf16.msra.mxu0 0
      %804 = vmatprep.subr.bf16.mxu0 0
      %805 = vmatpush2.bf16.msra.mxu0 0
      %806 = vmatprep.subr.bf16.mxu0 0
      %807 = vmatpush2.bf16.msra.mxu0 0
      %808 = vmatprep.subr.bf16.mxu0 0
      %809 = vmatpush2.bf16.msra.mxu0 0
      %810 = vmatprep.subr.bf16.mxu0 0
      %811 = vmatpush2.bf16.msra.mxu0 0
      %812 = vmatprep.subr.bf16.mxu0 0
      %813 = vmatpush2.bf16.msra.mxu0 0
      %814 = vmatprep.subr.bf16.mxu0 0
      %815 = vmatpush2.bf16.msra.mxu0 0
      %816 = vmatprep.mubr.bf16.mxu0 0
      %817 = vmatmul.mubr.bf16.gmra.mxu0 %v561
      %v818 = vpop.f32.mrf.mxu0
      %v819 = vadd.f32 0.0, %v818
      %v820 = vpop.f32.mrf.mxu0
      %v821 = vpop.f32.mrf.mxu0
      %v822 = vpop.f32.mrf.mxu0
      %823 = vdwg.mxu0
      %825 = vrot.lane.b32.xlu0 %v819, 16
      %v826 = vpop.permute.xlu0 %825
      %vm828 = vcmask 261248
      %829 = vst.msk [vmem:[%s170] sm:$0xff] %vm828, %v826
      %830 = vrot.lane.b32.xlu0 %v298, 96
      %v831 = vpop.permute.xlu0 %830
      %832 = vrot.lane.b32.xlu0 %v300, 96
      %v833 = vpop.permute.xlu0 %832
      %v835 = vsel %vm384, %v831, 0
      %v838 = vsel %vm384, %v833, 0
      %840 = vmatprep.subr.bf16.mxu0 0
      %841 = vmatpush1.bf16.msra.mxu0 0
      %842 = vmatprep.subr.bf16.mxu0 0
      %843 = vmatpush1.bf16.msra.mxu0 0
      %844 = vmatprep.subr.bf16.mxu0 0
      %845 = vmatpush1.bf16.msra.mxu0 0
      %846 = vmatprep.subr.bf16.mxu0 0
      %847 = vmatpush1.bf16.msra.mxu0 0
      %848 = vmatprep.subr.bf16.mxu0 0
      %849 = vmatpush1.bf16.msra.mxu0 0
      %850 = vmatprep.subr.bf16.mxu0 0
      %851 = vmatpush1.bf16.msra.mxu0 0
      %852 = vmatprep.subr.bf16.mxu0 0
      %853 = vmatpush1.bf16.msra.mxu0 0
      %854 = vmatprep.subr.bf16.mxu0 %v303
      %855 = vmatpush1.bf16.msra.mxu0 %v302
      %856 = vmatprep.subr.bf16.mxu0 0
      %857 = vmatpush2.bf16.msra.mxu0 0
      %858 = vmatprep.subr.bf16.mxu0 0
      %859 = vmatpush2.bf16.msra.mxu0 0
      %860 = vmatprep.subr.bf16.mxu0 0
      %861 = vmatpush2.bf16.msra.mxu0 0
      %862 = vmatprep.subr.bf16.mxu0 0
      %863 = vmatpush2.bf16.msra.mxu0 0
      %864 = vmatprep.subr.bf16.mxu0 0
      %865 = vmatpush2.bf16.msra.mxu0 0
      %866 = vmatprep.subr.bf16.mxu0 0
      %867 = vmatpush2.bf16.msra.mxu0 0
      %868 = vmatprep.subr.bf16.mxu0 0
      %869 = vmatpush2.bf16.msra.mxu0 0
      %870 = vmatprep.subr.bf16.mxu0 0
      %871 = vmatpush2.bf16.msra.mxu0 0
      %872 = vmatprep.mubr.bf16.mxu0 0
      %873 = vmatmul.mubr.bf16.gmra.mxu0 %v835
      %v874 = vpop.f32.mrf.mxu0
      %v875 = vadd.f32 0.0, %v874
      %v876 = vpop.f32.mrf.mxu0
      %v877 = vadd.f32 0.0, %v876
      %v878 = vpop.f32.mrf.mxu0
      %v879 = vadd.f32 0.0, %v878
      %v880 = vpop.f32.mrf.mxu0
      %v881 = vadd.f32 0.0, %v880
      %882 = vmatprep.mubr.bf16.mxu0 0
      %883 = vmatmul.mubr.bf16.gmra.mxu0 %v838
      %v884 = vpop.f32.mrf.mxu0
      %v885 = vadd.f32 0.0, %v884
      %v886 = vpop.f32.mrf.mxu0
      %v887 = vadd.f32 0.0, %v886
      %v888 = vpop.f32.mrf.mxu0
      %v889 = vadd.f32 0.0, %v888
      %v890 = vpop.f32.mrf.mxu0
      %v891 = vadd.f32 0.0, %v890
      %892 = vdwg.mxu0
      %v893 = vmax.f32 %v875, %v877
      %894 = vmax.xlane.f32.xlu0 %v893
      %v895 = vpop.xlane.xlu0 %894
      %v896 = vmax.f32 %v879, %v881
      %897 = vmax.xlane.f32.xlu0 %v896
      %v898 = vpop.xlane.xlu0 %897
      %v899 = vmax.f32 %v885, %v887
      %900 = vmax.xlane.f32.xlu0 %v899
      %v901 = vpop.xlane.xlu0 %900
      %v902 = vmax.f32 %v889, %v891
      %903 = vmax.xlane.f32.xlu0 %v902
      %v904 = vpop.xlane.xlu0 %903
      %v905 = vsub.f32 %v875, %v895
      %v906 = vsub.f32 %v877, %v895
      %v907 = vsub.f32 %v879, %v898
      %v908 = vsub.f32 %v881, %v898
      %v909 = vsub.f32 %v885, %v901
      %v910 = vsub.f32 %v887, %v901
      %v911 = vsub.f32 %v889, %v904
      %v912 = vsub.f32 %v891, %v904
      %v913 = vmul.f32 %v905, 1.442695
      %v914 = vpow.pop %v913
      %v915 = vmul.f32 %v906, 1.442695
      %v916 = vpow.pop %v915
      %v917 = vmul.f32 %v907, 1.442695
      %v918 = vpow.pop %v917
      %v919 = vmul.f32 %v908, 1.442695
      %v920 = vpow.pop %v919
      %v921 = vmul.f32 %v909, 1.442695
      %v922 = vpow.pop %v921
      %v923 = vmul.f32 %v910, 1.442695
      %v924 = vpow.pop %v923
      %v925 = vmul.f32 %v911, 1.442695
      %v926 = vpow.pop %v925
      %v927 = vmul.f32 %v912, 1.442695
      %v928 = vpow.pop %v927
      %v929 = vadd.f32 %v914, %v916
      %930 = vadd.xlane.f32.xlu0 %v929
      %v931 = vpop.xlane.xlu0 %930
      %v932 = vadd.f32 %v918, %v920
      %933 = vadd.xlane.f32.xlu0 %v932
      %v934 = vpop.xlane.xlu0 %933
      %v935 = vadd.f32 %v922, %v924
      %936 = vadd.xlane.f32.xlu0 %v935
      %v937 = vpop.xlane.xlu0 %936
      %v938 = vadd.f32 %v926, %v928
      %939 = vadd.xlane.f32.xlu0 %v938
      %v940 = vpop.xlane.xlu0 %939
      %v941 = vrcp.pop %v931
      %v942 = vrcp.pop %v934
      %v943 = vrcp.pop %v937
      %v944 = vrcp.pop %v940
      %v945 = vmul.f32 %v914, %v941
      %v946 = vmul.f32 %v916, %v941
      %v947 = vmul.f32 %v918, %v942
      %v948 = vmul.f32 %v920, %v942
      %v949 = vmul.f32 %v922, %v943
      %v950 = vmul.f32 %v924, %v943
      %v951 = vmul.f32 %v926, %v944
      %v952 = vmul.f32 %v928, %v944
      %v953 = vpack.c.bf16 %v947, %v945
      %v954 = vpack.c.bf16 %v948, %v946
      %v955 = vpack.c.bf16 %v951, %v949
      %v956 = vpack.c.bf16 %v952, %v950
      %957 = vmatprep.subr.bf16.mxu0 0
      %958 = vmatpush1.bf16.msra.mxu0 %v375
      %959 = vmatprep.subr.bf16.mxu0 0
      %960 = vmatpush1.bf16.msra.mxu0 %v374
      %961 = vmatprep.subr.bf16.mxu0 0
      %962 = vmatpush1.bf16.msra.mxu0 %v373
      %963 = vmatprep.subr.bf16.mxu0 0
      %964 = vmatpush1.bf16.msra.mxu0 %v372
      %965 = vmatprep.subr.bf16.mxu0 0
      %966 = vmatpush1.bf16.msra.mxu0 %v371
      %967 = vmatprep.subr.bf16.mxu0 0
      %968 = vmatpush1.bf16.msra.mxu0 %v370
      %969 = vmatprep.subr.bf16.mxu0 0
      %970 = vmatpush1.bf16.msra.mxu0 %v369
      %971 = vmatprep.subr.bf16.mxu0 0
      %972 = vmatpush1.bf16.msra.mxu0 %v368
      %973 = vmatprep.subr.bf16.mxu0 0
      %974 = vmatpush2.bf16.msra.mxu0 %v383
      %975 = vmatprep.subr.bf16.mxu0 0
      %976 = vmatpush2.bf16.msra.mxu0 %v382
      %977 = vmatprep.subr.bf16.mxu0 0
      %978 = vmatpush2.bf16.msra.mxu0 %v381
      %979 = vmatprep.subr.bf16.mxu0 0
      %980 = vmatpush2.bf16.msra.mxu0 %v380
      %981 = vmatprep.subr.bf16.mxu0 0
      %982 = vmatpush2.bf16.msra.mxu0 %v379
      %983 = vmatprep.subr.bf16.mxu0 0
      %984 = vmatpush2.bf16.msra.mxu0 %v378
      %985 = vmatprep.subr.bf16.mxu0 0
      %986 = vmatpush2.bf16.msra.mxu0 %v377
      %987 = vmatprep.subr.bf16.mxu0 0
      %988 = vmatpush2.bf16.msra.mxu0 %v376
      %989 = vmatprep.mubr.bf16.mxu0 %v954
      %990 = vmatmul.mubr.bf16.gmra.mxu0 %v953
      %v991 = vpop.f32.mrf.mxu0
      %v992 = vadd.f32 0.0, %v991
      %v993 = vpop.f32.mrf.mxu0
      %v994 = vpop.f32.mrf.mxu0
      %v995 = vadd.f32 0.0, %v994
      %v996 = vpop.f32.mrf.mxu0
      %997 = vmatprep.mubr.bf16.mxu0 %v956
      %998 = vmatmul.mubr.bf16.gmra.mxu0 %v955
      %v999 = vpop.f32.mrf.mxu0
      %v1000 = vadd.f32 0.0, %v999
      %v1001 = vpop.f32.mrf.mxu0
      %v1002 = vpop.f32.mrf.mxu0
      %v1003 = vadd.f32 0.0, %v1002
      %v1004 = vpop.f32.mrf.mxu0
      %1005 = vdwg.mxu0
      %v1006 = vpack.c.bf16 %v995, %v992
      %v1007 = vpack.c.bf16 %v1003, %v1000
      %1008 = vmatprep.subr.bf16.mxu0 0
      %1009 = vmatpush1.bf16.msra.mxu0 0
      %1010 = vmatprep.subr.bf16.mxu0 0
      %1011 = vmatpush1.bf16.msra.mxu0 0
      %1012 = vmatprep.subr.bf16.mxu0 0
      %1013 = vmatpush1.bf16.msra.mxu0 0
      %1014 = vmatprep.subr.bf16.mxu0 0
      %1015 = vmatpush1.bf16.msra.mxu0 0
      %1016 = vmatprep.subr.bf16.mxu0 0
      %1017 = vmatpush1.bf16.msra.mxu0 0
      %1018 = vmatprep.subr.bf16.mxu0 0
      %1019 = vmatpush1.bf16.msra.mxu0 0
      %1020 = vmatprep.subr.bf16.mxu0 0
      %1021 = vmatpush1.bf16.msra.mxu0 %v1007
      %1022 = vmatprep.subr.bf16.mxu0 0
      %1023 = vmatpush1.bf16.msra.mxu0 %v1006
      %1024 = vmatprep.subr.bf16.mxu0 0
      %1025 = vmatpush2.bf16.msra.mxu0 0
      %1026 = vmatprep.subr.bf16.mxu0 0
      %1027 = vmatpush2.bf16.msra.mxu0 0
      %1028 = vmatprep.subr.bf16.mxu0 0
      %1029 = vmatpush2.bf16.msra.mxu0 0
      %1030 = vmatprep.subr.bf16.mxu0 0
      %1031 = vmatpush2.bf16.msra.mxu0 0
      %1032 = vmatprep.subr.bf16.mxu0 0
      %1033 = vmatpush2.bf16.msra.mxu0 0
      %1034 = vmatprep.subr.bf16.mxu0 0
      %1035 = vmatpush2.bf16.msra.mxu0 0
      %1036 = vmatprep.subr.bf16.mxu0 0
      %1037 = vmatpush2.bf16.msra.mxu0 0
      %1038 = vmatprep.subr.bf16.mxu0 0
      %1039 = vmatpush2.bf16.msra.mxu0 0
      %1040 = vmatprep.mubr.bf16.mxu0 0
      %1041 = vmatmul.mubr.bf16.gmra.mxu0 %v561
      %v1042 = vpop.f32.mrf.mxu0
      %v1043 = vadd.f32 0.0, %v1042
      %v1044 = vpop.f32.mrf.mxu0
      %v1045 = vpop.f32.mrf.mxu0
      %v1046 = vpop.f32.mrf.mxu0
      %1047 = vdwg.mxu0
      %1049 = vrot.lane.b32.xlu0 %v1043, 32
      %v1050 = vpop.permute.xlu0 %1049
      %vm1052 = vcmask 392448
      %1053 = vst.msk [vmem:[%s170] sm:$0xff] %vm1052, %v1050
      %1054 = vrot.lane.b32.xlu0 %v298, 80
      %v1055 = vpop.permute.xlu0 %1054
      %1056 = vrot.lane.b32.xlu0 %v300, 80
      %v1057 = vpop.permute.xlu0 %1056
      %v1059 = vsel %vm384, %v1055, 0
      %v1062 = vsel %vm384, %v1057, 0
      %1064 = vmatprep.subr.bf16.mxu0 0
      %1065 = vmatpush1.bf16.msra.mxu0 0
      %1066 = vmatprep.subr.bf16.mxu0 0
      %1067 = vmatpush1.bf16.msra.mxu0 0
      %1068 = vmatprep.subr.bf16.mxu0 0
      %1069 = vmatpush1.bf16.msra.mxu0 0
      %1070 = vmatprep.subr.bf16.mxu0 0
      %1071 = vmatpush1.bf16.msra.mxu0 0
      %1072 = vmatprep.subr.bf16.mxu0 0
      %1073 = vmatpush1.bf16.msra.mxu0 0
      %1074 = vmatprep.subr.bf16.mxu0 0
      %1075 = vmatpush1.bf16.msra.mxu0 0
      %1076 = vmatprep.subr.bf16.mxu0 0
      %1077 = vmatpush1.bf16.msra.mxu0 0
      %1078 = vmatprep.subr.bf16.mxu0 %v303
      %1079 = vmatpush1.bf16.msra.mxu0 %v302
      %1080 = vmatprep.subr.bf16.mxu0 0
      %1081 = vmatpush2.bf16.msra.mxu0 0
      %1082 = vmatprep.subr.bf16.mxu0 0
      %1083 = vmatpush2.bf16.msra.mxu0 0
      %1084 = vmatprep.subr.bf16.mxu0 0
      %1085 = vmatpush2.bf16.msra.mxu0 0
      %1086 = vmatprep.subr.bf16.mxu0 0
      %1087 = vmatpush2.bf16.msra.mxu0 0
      %1088 = vmatprep.subr.bf16.mxu0 0
      %1089 = vmatpush2.bf16.msra.mxu0 0
      %1090 = vmatprep.subr.bf16.mxu0 0
      %1091 = vmatpush2.bf16.msra.mxu0 0
      %1092 = vmatprep.subr.bf16.mxu0 0
      %1093 = vmatpush2.bf16.msra.mxu0 0
      %1094 = vmatprep.subr.bf16.mxu0 0
      %1095 = vmatpush2.bf16.msra.mxu0 0
      %1096 = vmatprep.mubr.bf16.mxu0 0
      %1097 = vmatmul.mubr.bf16.gmra.mxu0 %v1059
      %v1098 = vpop.f32.mrf.mxu0
      %v1099 = vadd.f32 0.0, %v1098
      %v1100 = vpop.f32.mrf.mxu0
      %v1101 = vadd.f32 0.0, %v1100
      %v1102 = vpop.f32.mrf.mxu0
      %v1103 = vadd.f32 0.0, %v1102
      %v1104 = vpop.f32.mrf.mxu0
      %v1105 = vadd.f32 0.0, %v1104
      %1106 = vmatprep.mubr.bf16.mxu0 0
      %1107 = vmatmul.mubr.bf16.gmra.mxu0 %v1062
      %v1108 = vpop.f32.mrf.mxu0
      %v1109 = vadd.f32 0.0, %v1108
      %v1110 = vpop.f32.mrf.mxu0
      %v1111 = vadd.f32 0.0, %v1110
      %v1112 = vpop.f32.mrf.mxu0
      %v1113 = vadd.f32 0.0, %v1112
      %v1114 = vpop.f32.mrf.mxu0
      %v1115 = vadd.f32 0.0, %v1114
      %1116 = vdwg.mxu0
      %v1117 = vmax.f32 %v1099, %v1101
      %1118 = vmax.xlane.f32.xlu0 %v1117
      %v1119 = vpop.xlane.xlu0 %1118
      %v1120 = vmax.f32 %v1103, %v1105
      %1121 = vmax.xlane.f32.xlu0 %v1120
      %v1122 = vpop.xlane.xlu0 %1121
      %v1123 = vmax.f32 %v1109, %v1111
      %1124 = vmax.xlane.f32.xlu0 %v1123
      %v1125 = vpop.xlane.xlu0 %1124
      %v1126 = vmax.f32 %v1113, %v1115
      %1127 = vmax.xlane.f32.xlu0 %v1126
      %v1128 = vpop.xlane.xlu0 %1127
      %v1129 = vsub.f32 %v1099, %v1119
      %v1130 = vsub.f32 %v1101, %v1119
      %v1131 = vsub.f32 %v1103, %v1122
      %v1132 = vsub.f32 %v1105, %v1122
      %v1133 = vsub.f32 %v1109, %v1125
      %v1134 = vsub.f32 %v1111, %v1125
      %v1135 = vsub.f32 %v1113, %v1128
      %v1136 = vsub.f32 %v1115, %v1128
      %v1137 = vmul.f32 %v1129, 1.442695
      %v1138 = vpow.pop %v1137
      %v1139 = vmul.f32 %v1130, 1.442695
      %v1140 = vpow.pop %v1139
      %v1141 = vmul.f32 %v1131, 1.442695
      %v1142 = vpow.pop %v1141
      %v1143 = vmul.f32 %v1132, 1.442695
      %v1144 = vpow.pop %v1143
      %v1145 = vmul.f32 %v1133, 1.442695
      %v1146 = vpow.pop %v1145
      %v1147 = vmul.f32 %v1134, 1.442695
      %v1148 = vpow.pop %v1147
      %v1149 = vmul.f32 %v1135, 1.442695
      %v1150 = vpow.pop %v1149
      %v1151 = vmul.f32 %v1136, 1.442695
      %v1152 = vpow.pop %v1151
      %v1153 = vadd.f32 %v1138, %v1140
      %1154 = vadd.xlane.f32.xlu0 %v1153
      %v1155 = vpop.xlane.xlu0 %1154
      %v1156 = vadd.f32 %v1142, %v1144
      %1157 = vadd.xlane.f32.xlu0 %v1156
      %v1158 = vpop.xlane.xlu0 %1157
      %v1159 = vadd.f32 %v1146, %v1148
      %1160 = vadd.xlane.f32.xlu0 %v1159
      %v1161 = vpop.xlane.xlu0 %1160
      %v1162 = vadd.f32 %v1150, %v1152
      %1163 = vadd.xlane.f32.xlu0 %v1162
      %v1164 = vpop.xlane.xlu0 %1163
      %v1165 = vrcp.pop %v1155
      %v1166 = vrcp.pop %v1158
      %v1167 = vrcp.pop %v1161
      %v1168 = vrcp.pop %v1164
      %v1169 = vmul.f32 %v1138, %v1165
      %v1170 = vmul.f32 %v1140, %v1165
      %v1171 = vmul.f32 %v1142, %v1166
      %v1172 = vmul.f32 %v1144, %v1166
      %v1173 = vmul.f32 %v1146, %v1167
      %v1174 = vmul.f32 %v1148, %v1167
      %v1175 = vmul.f32 %v1150, %v1168
      %v1176 = vmul.f32 %v1152, %v1168
      %v1177 = vpack.c.bf16 %v1171, %v1169
      %v1178 = vpack.c.bf16 %v1172, %v1170
      %v1179 = vpack.c.bf16 %v1175, %v1173
      %v1180 = vpack.c.bf16 %v1176, %v1174
      %1181 = vmatprep.subr.bf16.mxu0 0
      %1182 = vmatpush1.bf16.msra.mxu0 %v375
      %1183 = vmatprep.subr.bf16.mxu0 0
      %1184 = vmatpush1.bf16.msra.mxu0 %v374
      %1185 = vmatprep.subr.bf16.mxu0 0
      %1186 = vmatpush1.bf16.msra.mxu0 %v373
      %1187 = vmatprep.subr.bf16.mxu0 0
      %1188 = vmatpush1.bf16.msra.mxu0 %v372
      %1189 = vmatprep.subr.bf16.mxu0 0
      %1190 = vmatpush1.bf16.msra.mxu0 %v371
      %1191 = vmatprep.subr.bf16.mxu0 0
      %1192 = vmatpush1.bf16.msra.mxu0 %v370
      %1193 = vmatprep.subr.bf16.mxu0 0
      %1194 = vmatpush1.bf16.msra.mxu0 %v369
      %1195 = vmatprep.subr.bf16.mxu0 0
      %1196 = vmatpush1.bf16.msra.mxu0 %v368
      %1197 = vmatprep.subr.bf16.mxu0 0
      %1198 = vmatpush2.bf16.msra.mxu0 %v383
      %1199 = vmatprep.subr.bf16.mxu0 0
      %1200 = vmatpush2.bf16.msra.mxu0 %v382
      %1201 = vmatprep.subr.bf16.mxu0 0
      %1202 = vmatpush2.bf16.msra.mxu0 %v381
      %1203 = vmatprep.subr.bf16.mxu0 0
      %1204 = vmatpush2.bf16.msra.mxu0 %v380
      %1205 = vmatprep.subr.bf16.mxu0 0
      %1206 = vmatpush2.bf16.msra.mxu0 %v379
      %1207 = vmatprep.subr.bf16.mxu0 0
      %1208 = vmatpush2.bf16.msra.mxu0 %v378
      %1209 = vmatprep.subr.bf16.mxu0 0
      %1210 = vmatpush2.bf16.msra.mxu0 %v377
      %1211 = vmatprep.subr.bf16.mxu0 0
      %1212 = vmatpush2.bf16.msra.mxu0 %v376
      %1213 = vmatprep.mubr.bf16.mxu0 %v1178
      %1214 = vmatmul.mubr.bf16.gmra.mxu0 %v1177
      %v1215 = vpop.f32.mrf.mxu0
      %v1216 = vadd.f32 0.0, %v1215
      %v1217 = vpop.f32.mrf.mxu0
      %v1218 = vpop.f32.mrf.mxu0
      %v1219 = vadd.f32 0.0, %v1218
      %v1220 = vpop.f32.mrf.mxu0
      %1221 = vmatprep.mubr.bf16.mxu0 %v1180
      %1222 = vmatmul.mubr.bf16.gmra.mxu0 %v1179
      %v1223 = vpop.f32.mrf.mxu0
      %v1224 = vadd.f32 0.0, %v1223
      %v1225 = vpop.f32.mrf.mxu0
      %v1226 = vpop.f32.mrf.mxu0
      %v1227 = vadd.f32 0.0, %v1226
      %v1228 = vpop.f32.mrf.mxu0
      %1229 = vdwg.mxu0
      %v1230 = vpack.c.bf16 %v1219, %v1216
      %v1231 = vpack.c.bf16 %v1227, %v1224
      %1232 = vmatprep.subr.bf16.mxu0 0
      %1233 = vmatpush1.bf16.msra.mxu0 0
      %1234 = vmatprep.subr.bf16.mxu0 0
      %1235 = vmatpush1.bf16.msra.mxu0 0
      %1236 = vmatprep.subr.bf16.mxu0 0
      %1237 = vmatpush1.bf16.msra.mxu0 0
      %1238 = vmatprep.subr.bf16.mxu0 0
      %1239 = vmatpush1.bf16.msra.mxu0 0
      %1240 = vmatprep.subr.bf16.mxu0 0
      %1241 = vmatpush1.bf16.msra.mxu0 0
      %1242 = vmatprep.subr.bf16.mxu0 0
      %1243 = vmatpush1.bf16.msra.mxu0 0
      %1244 = vmatprep.subr.bf16.mxu0 0
      %1245 = vmatpush1.bf16.msra.mxu0 %v1231
      %1246 = vmatprep.subr.bf16.mxu0 0
      %1247 = vmatpush1.bf16.msra.mxu0 %v1230
      %1248 = vmatprep.subr.bf16.mxu0 0
      %1249 = vmatpush2.bf16.msra.mxu0 0
      %1250 = vmatprep.subr.bf16.mxu0 0
      %1251 = vmatpush2.bf16.msra.mxu0 0
      %1252 = vmatprep.subr.bf16.mxu0 0
      %1253 = vmatpush2.bf16.msra.mxu0 0
      %1254 = vmatprep.subr.bf16.mxu0 0
      %1255 = vmatpush2.bf16.msra.mxu0 0
      %1256 = vmatprep.subr.bf16.mxu0 0
      %1257 = vmatpush2.bf16.msra.mxu0 0
      %1258 = vmatprep.subr.bf16.mxu0 0
      %1259 = vmatpush2.bf16.msra.mxu0 0
      %1260 = vmatprep.subr.bf16.mxu0 0
      %1261 = vmatpush2.bf16.msra.mxu0 0
      %1262 = vmatprep.subr.bf16.mxu0 0
      %1263 = vmatpush2.bf16.msra.mxu0 0
      %1264 = vmatprep.mubr.bf16.mxu0 0
      %1265 = vmatmul.mubr.bf16.gmra.mxu0 %v561
      %v1266 = vpop.f32.mrf.mxu0
      %v1267 = vadd.f32 0.0, %v1266
      %v1268 = vpop.f32.mrf.mxu0
      %v1269 = vpop.f32.mrf.mxu0
      %v1270 = vpop.f32.mrf.mxu0
      %1271 = vdwg.mxu0
      %1273 = vrot.lane.b32.xlu0 %v1267, 48
      %v1274 = vpop.permute.xlu0 %1273
      %vm1276 = vcmask 523648
      %1277 = vst.msk [vmem:[%s170] sm:$0xff] %vm1276, %v1274
      %1278 = vrot.lane.b32.xlu0 %v298, 64
      %v1279 = vpop.permute.xlu0 %1278
      %1280 = vrot.lane.b32.xlu0 %v300, 64
      %v1281 = vpop.permute.xlu0 %1280
      %v1283 = vsel %vm384, %v1279, 0
      %v1286 = vsel %vm384, %v1281, 0
      %1288 = vmatprep.subr.bf16.mxu0 0
      %1289 = vmatpush1.bf16.msra.mxu0 0
      %1290 = vmatprep.subr.bf16.mxu0 0
      %1291 = vmatpush1.bf16.msra.mxu0 0
      %1292 = vmatprep.subr.bf16.mxu0 0
      %1293 = vmatpush1.bf16.msra.mxu0 0
      %1294 = vmatprep.subr.bf16.mxu0 0
      %1295 = vmatpush1.bf16.msra.mxu0 0
      %1296 = vmatprep.subr.bf16.mxu0 0
      %1297 = vmatpush1.bf16.msra.mxu0 0
      %1298 = vmatprep.subr.bf16.mxu0 0
      %1299 = vmatpush1.bf16.msra.mxu0 0
      %1300 = vmatprep.subr.bf16.mxu0 0
      %1301 = vmatpush1.bf16.msra.mxu0 0
      %1302 = vmatprep.subr.bf16.mxu0 %v303
      %1303 = vmatpush1.bf16.msra.mxu0 %v302
      %1304 = vmatprep.subr.bf16.mxu0 0
      %1305 = vmatpush2.bf16.msra.mxu0 0
      %1306 = vmatprep.subr.bf16.mxu0 0
      %1307 = vmatpush2.bf16.msra.mxu0 0
      %1308 = vmatprep.subr.bf16.mxu0 0
      %1309 = vmatpush2.bf16.msra.mxu0 0
      %1310 = vmatprep.subr.bf16.mxu0 0
      %1311 = vmatpush2.bf16.msra.mxu0 0
      %1312 = vmatprep.subr.bf16.mxu0 0
      %1313 = vmatpush2.bf16.msra.mxu0 0
      %1314 = vmatprep.subr.bf16.mxu0 0
      %1315 = vmatpush2.bf16.msra.mxu0 0
      %1316 = vmatprep.subr.bf16.mxu0 0
      %1317 = vmatpush2.bf16.msra.mxu0 0
      %1318 = vmatprep.subr.bf16.mxu0 0
      %1319 = vmatpush2.bf16.msra.mxu0 0
      %1320 = vmatprep.mubr.bf16.mxu0 0
      %1321 = vmatmul.mubr.bf16.gmra.mxu0 %v1283
      %v1322 = vpop.f32.mrf.mxu0
      %v1323 = vadd.f32 0.0, %v1322
      %v1324 = vpop.f32.mrf.mxu0
      %v1325 = vadd.f32 0.0, %v1324
      %v1326 = vpop.f32.mrf.mxu0
      %v1327 = vadd.f32 0.0, %v1326
      %v1328 = vpop.f32.mrf.mxu0
      %v1329 = vadd.f32 0.0, %v1328
      %1330 = vmatprep.mubr.bf16.mxu0 0
      %1331 = vmatmul.mubr.bf16.gmra.mxu0 %v1286
      %v1332 = vpop.f32.mrf.mxu0
      %v1333 = vadd.f32 0.0, %v1332
      %v1334 = vpop.f32.mrf.mxu0
      %v1335 = vadd.f32 0.0, %v1334
      %v1336 = vpop.f32.mrf.mxu0
      %v1337 = vadd.f32 0.0, %v1336
      %v1338 = vpop.f32.mrf.mxu0
      %v1339 = vadd.f32 0.0, %v1338
      %1340 = vdwg.mxu0
      %v1341 = vmax.f32 %v1323, %v1325
      %1342 = vmax.xlane.f32.xlu0 %v1341
      %v1343 = vpop.xlane.xlu0 %1342
      %v1344 = vmax.f32 %v1327, %v1329
      %1345 = vmax.xlane.f32.xlu0 %v1344
      %v1346 = vpop.xlane.xlu0 %1345
      %v1347 = vmax.f32 %v1333, %v1335
      %1348 = vmax.xlane.f32.xlu0 %v1347
      %v1349 = vpop.xlane.xlu0 %1348
      %v1350 = vmax.f32 %v1337, %v1339
      %1351 = vmax.xlane.f32.xlu0 %v1350
      %v1352 = vpop.xlane.xlu0 %1351
      %v1353 = vsub.f32 %v1323, %v1343
      %v1354 = vsub.f32 %v1325, %v1343
      %v1355 = vsub.f32 %v1327, %v1346
      %v1356 = vsub.f32 %v1329, %v1346
      %v1357 = vsub.f32 %v1333, %v1349
      %v1358 = vsub.f32 %v1335, %v1349
      %v1359 = vsub.f32 %v1337, %v1352
      %v1360 = vsub.f32 %v1339, %v1352
      %v1361 = vmul.f32 %v1353, 1.442695
      %v1362 = vpow.pop %v1361
      %v1363 = vmul.f32 %v1354, 1.442695
      %v1364 = vpow.pop %v1363
      %v1365 = vmul.f32 %v1355, 1.442695
      %v1366 = vpow.pop %v1365
      %v1367 = vmul.f32 %v1356, 1.442695
      %v1368 = vpow.pop %v1367
      %v1369 = vmul.f32 %v1357, 1.442695
      %v1370 = vpow.pop %v1369
      %v1371 = vmul.f32 %v1358, 1.442695
      %v1372 = vpow.pop %v1371
      %v1373 = vmul.f32 %v1359, 1.442695
      %v1374 = vpow.pop %v1373
      %v1375 = vmul.f32 %v1360, 1.442695
      %v1376 = vpow.pop %v1375
      %v1377 = vadd.f32 %v1362, %v1364
      %1378 = vadd.xlane.f32.xlu0 %v1377
      %v1379 = vpop.xlane.xlu0 %1378
      %v1380 = vadd.f32 %v1366, %v1368
      %1381 = vadd.xlane.f32.xlu0 %v1380
      %v1382 = vpop.xlane.xlu0 %1381
      %v1383 = vadd.f32 %v1370, %v1372
      %1384 = vadd.xlane.f32.xlu0 %v1383
      %v1385 = vpop.xlane.xlu0 %1384
      %v1386 = vadd.f32 %v1374, %v1376
      %1387 = vadd.xlane.f32.xlu0 %v1386
      %v1388 = vpop.xlane.xlu0 %1387
      %v1389 = vrcp.pop %v1379
      %v1390 = vrcp.pop %v1382
      %v1391 = vrcp.pop %v1385
      %v1392 = vrcp.pop %v1388
      %v1393 = vmul.f32 %v1362, %v1389
      %v1394 = vmul.f32 %v1364, %v1389
      %v1395 = vmul.f32 %v1366, %v1390
      %v1396 = vmul.f32 %v1368, %v1390
      %v1397 = vmul.f32 %v1370, %v1391
      %v1398 = vmul.f32 %v1372, %v1391
      %v1399 = vmul.f32 %v1374, %v1392
      %v1400 = vmul.f32 %v1376, %v1392
      %v1401 = vpack.c.bf16 %v1395, %v1393
      %v1402 = vpack.c.bf16 %v1396, %v1394
      %v1403 = vpack.c.bf16 %v1399, %v1397
      %v1404 = vpack.c.bf16 %v1400, %v1398
      %1405 = vmatprep.subr.bf16.mxu0 0
      %1406 = vmatpush1.bf16.msra.mxu0 %v375
      %1407 = vmatprep.subr.bf16.mxu0 0
      %1408 = vmatpush1.bf16.msra.mxu0 %v374
      %1409 = vmatprep.subr.bf16.mxu0 0
      %1410 = vmatpush1.bf16.msra.mxu0 %v373
      %1411 = vmatprep.subr.bf16.mxu0 0
      %1412 = vmatpush1.bf16.msra.mxu0 %v372
      %1413 = vmatprep.subr.bf16.mxu0 0
      %1414 = vmatpush1.bf16.msra.mxu0 %v371
      %1415 = vmatprep.subr.bf16.mxu0 0
      %1416 = vmatpush1.bf16.msra.mxu0 %v370
      %1417 = vmatprep.subr.bf16.mxu0 0
      %1418 = vmatpush1.bf16.msra.mxu0 %v369
      %1419 = vmatprep.subr.bf16.mxu0 0
      %1420 = vmatpush1.bf16.msra.mxu0 %v368
      %1421 = vmatprep.subr.bf16.mxu0 0
      %1422 = vmatpush2.bf16.msra.mxu0 %v383
      %1423 = vmatprep.subr.bf16.mxu0 0
      %1424 = vmatpush2.bf16.msra.mxu0 %v382
      %1425 = vmatprep.subr.bf16.mxu0 0
      %1426 = vmatpush2.bf16.msra.mxu0 %v381
      %1427 = vmatprep.subr.bf16.mxu0 0
      %1428 = vmatpush2.bf16.msra.mxu0 %v380
      %1429 = vmatprep.subr.bf16.mxu0 0
      %1430 = vmatpush2.bf16.msra.mxu0 %v379
      %1431 = vmatprep.subr.bf16.mxu0 0
      %1432 = vmatpush2.bf16.msra.mxu0 %v378
      %1433 = vmatprep.subr.bf16.mxu0 0
      %1434 = vmatpush2.bf16.msra.mxu0 %v377
      %1435 = vmatprep.subr.bf16.mxu0 0
      %1436 = vmatpush2.bf16.msra.mxu0 %v376
      %1437 = vmatprep.mubr.bf16.mxu0 %v1402
      %1438 = vmatmul.mubr.bf16.gmra.mxu0 %v1401
      %v1439 = vpop.f32.mrf.mxu0
      %v1440 = vadd.f32 0.0, %v1439
      %v1441 = vpop.f32.mrf.mxu0
      %v1442 = vpop.f32.mrf.mxu0
      %v1443 = vadd.f32 0.0, %v1442
      %v1444 = vpop.f32.mrf.mxu0
      %1445 = vmatprep.mubr.bf16.mxu0 %v1404
      %1446 = vmatmul.mubr.bf16.gmra.mxu0 %v1403
      %v1447 = vpop.f32.mrf.mxu0
      %v1448 = vadd.f32 0.0, %v1447
      %v1449 = vpop.f32.mrf.mxu0
      %v1450 = vpop.f32.mrf.mxu0
      %v1451 = vadd.f32 0.0, %v1450
      %v1452 = vpop.f32.mrf.mxu0
      %1453 = vdwg.mxu0
      %v1454 = vpack.c.bf16 %v1443, %v1440
      %v1455 = vpack.c.bf16 %v1451, %v1448
      %1456 = vmatprep.subr.bf16.mxu0 0
      %1457 = vmatpush1.bf16.msra.mxu0 0
      %1458 = vmatprep.subr.bf16.mxu0 0
      %1459 = vmatpush1.bf16.msra.mxu0 0
      %1460 = vmatprep.subr.bf16.mxu0 0
      %1461 = vmatpush1.bf16.msra.mxu0 0
      %1462 = vmatprep.subr.bf16.mxu0 0
      %1463 = vmatpush1.bf16.msra.mxu0 0
      %1464 = vmatprep.subr.bf16.mxu0 0
      %1465 = vmatpush1.bf16.msra.mxu0 0
      %1466 = vmatprep.subr.bf16.mxu0 0
      %1467 = vmatpush1.bf16.msra.mxu0 0
      %1468 = vmatprep.subr.bf16.mxu0 0
      %1469 = vmatpush1.bf16.msra.mxu0 %v1455
      %1470 = vmatprep.subr.bf16.mxu0 0
      %1471 = vmatpush1.bf16.msra.mxu0 %v1454
      %1472 = vmatprep.subr.bf16.mxu0 0
      %1473 = vmatpush2.bf16.msra.mxu0 0
      %1474 = vmatprep.subr.bf16.mxu0 0
      %1475 = vmatpush2.bf16.msra.mxu0 0
      %1476 = vmatprep.subr.bf16.mxu0 0
      %1477 = vmatpush2.bf16.msra.mxu0 0
      %1478 = vmatprep.subr.bf16.mxu0 0
      %1479 = vmatpush2.bf16.msra.mxu0 0
      %1480 = vmatprep.subr.bf16.mxu0 0
      %1481 = vmatpush2.bf16.msra.mxu0 0
      %1482 = vmatprep.subr.bf16.mxu0 0
      %1483 = vmatpush2.bf16.msra.mxu0 0
      %1484 = vmatprep.subr.bf16.mxu0 0
      %1485 = vmatpush2.bf16.msra.mxu0 0
      %1486 = vmatprep.subr.bf16.mxu0 0
      %1487 = vmatpush2.bf16.msra.mxu0 0
      %1488 = vmatprep.mubr.bf16.mxu0 0
      %1489 = vmatmul.mubr.bf16.gmra.mxu0 %v561
      %v1490 = vpop.f32.mrf.mxu0
      %v1491 = vadd.f32 0.0, %v1490
      %v1492 = vpop.f32.mrf.mxu0
      %v1493 = vpop.f32.mrf.mxu0
      %v1494 = vpop.f32.mrf.mxu0
      %1495 = vdwg.mxu0
      %1497 = vrot.lane.b32.xlu0 %v1491, 64
      %v1498 = vpop.permute.xlu0 %1497
      %vm1500 = vcmask 654848
      %1501 = vst.msk [vmem:[%s170] sm:$0xff] %vm1500, %v1498
      %1502 = vrot.lane.b32.xlu0 %v298, 48
      %v1503 = vpop.permute.xlu0 %1502
      %1504 = vrot.lane.b32.xlu0 %v300, 48
      %v1505 = vpop.permute.xlu0 %1504
      %v1507 = vsel %vm384, %v1503, 0
      %v1510 = vsel %vm384, %v1505, 0
      %1512 = vmatprep.subr.bf16.mxu0 0
      %1513 = vmatpush1.bf16.msra.mxu0 0
      %1514 = vmatprep.subr.bf16.mxu0 0
      %1515 = vmatpush1.bf16.msra.mxu0 0
      %1516 = vmatprep.subr.bf16.mxu0 0
      %1517 = vmatpush1.bf16.msra.mxu0 0
      %1518 = vmatprep.subr.bf16.mxu0 0
      %1519 = vmatpush1.bf16.msra.mxu0 0
      %1520 = vmatprep.subr.bf16.mxu0 0
      %1521 = vmatpush1.bf16.msra.mxu0 0
      %1522 = vmatprep.subr.bf16.mxu0 0
      %1523 = vmatpush1.bf16.msra.mxu0 0
      %1524 = vmatprep.subr.bf16.mxu0 0
      %1525 = vmatpush1.bf16.msra.mxu0 0
      %1526 = vmatprep.subr.bf16.mxu0 %v303
      %1527 = vmatpush1.bf16.msra.mxu0 %v302
      %1528 = vmatprep.subr.bf16.mxu0 0
      %1529 = vmatpush2.bf16.msra.mxu0 0
      %1530 = vmatprep.subr.bf16.mxu0 0
      %1531 = vmatpush2.bf16.msra.mxu0 0
      %1532 = vmatprep.subr.bf16.mxu0 0
      %1533 = vmatpush2.bf16.msra.mxu0 0
      %1534 = vmatprep.subr.bf16.mxu0 0
      %1535 = vmatpush2.bf16.msra.mxu0 0
      %1536 = vmatprep.subr.bf16.mxu0 0
      %1537 = vmatpush2.bf16.msra.mxu0 0
      %1538 = vmatprep.subr.bf16.mxu0 0
      %1539 = vmatpush2.bf16.msra.mxu0 0
      %1540 = vmatprep.subr.bf16.mxu0 0
      %1541 = vmatpush2.bf16.msra.mxu0 0
      %1542 = vmatprep.subr.bf16.mxu0 0
      %1543 = vmatpush2.bf16.msra.mxu0 0
      %1544 = vmatprep.mubr.bf16.mxu0 0
      %1545 = vmatmul.mubr.bf16.gmra.mxu0 %v1507
      %v1546 = vpop.f32.mrf.mxu0
      %v1547 = vadd.f32 0.0, %v1546
      %v1548 = vpop.f32.mrf.mxu0
      %v1549 = vadd.f32 0.0, %v1548
      %v1550 = vpop.f32.mrf.mxu0
      %v1551 = vadd.f32 0.0, %v1550
      %v1552 = vpop.f32.mrf.mxu0
      %v1553 = vadd.f32 0.0, %v1552
      %1554 = vmatprep.mubr.bf16.mxu0 0
      %1555 = vmatmul.mubr.bf16.gmra.mxu0 %v1510
      %v1556 = vpop.f32.mrf.mxu0
      %v1557 = vadd.f32 0.0, %v1556
      %v1558 = vpop.f32.mrf.mxu0
      %v1559 = vadd.f32 0.0, %v1558
      %v1560 = vpop.f32.mrf.mxu0
      %v1561 = vadd.f32 0.0, %v1560
      %v1562 = vpop.f32.mrf.mxu0
      %v1563 = vadd.f32 0.0, %v1562
      %1564 = vdwg.mxu0
      %v1565 = vmax.f32 %v1547, %v1549
      %1566 = vmax.xlane.f32.xlu0 %v1565
      %v1567 = vpop.xlane.xlu0 %1566
      %v1568 = vmax.f32 %v1551, %v1553
      %1569 = vmax.xlane.f32.xlu0 %v1568
      %v1570 = vpop.xlane.xlu0 %1569
      %v1571 = vmax.f32 %v1557, %v1559
      %1572 = vmax.xlane.f32.xlu0 %v1571
      %v1573 = vpop.xlane.xlu0 %1572
      %v1574 = vmax.f32 %v1561, %v1563
      %1575 = vmax.xlane.f32.xlu0 %v1574
      %v1576 = vpop.xlane.xlu0 %1575
      %v1577 = vsub.f32 %v1547, %v1567
      %v1578 = vsub.f32 %v1549, %v1567
      %v1579 = vsub.f32 %v1551, %v1570
      %v1580 = vsub.f32 %v1553, %v1570
      %v1581 = vsub.f32 %v1557, %v1573
      %v1582 = vsub.f32 %v1559, %v1573
      %v1583 = vsub.f32 %v1561, %v1576
      %v1584 = vsub.f32 %v1563, %v1576
      %v1585 = vmul.f32 %v1577, 1.442695
      %v1586 = vpow.pop %v1585
      %v1587 = vmul.f32 %v1578, 1.442695
      %v1588 = vpow.pop %v1587
      %v1589 = vmul.f32 %v1579, 1.442695
      %v1590 = vpow.pop %v1589
      %v1591 = vmul.f32 %v1580, 1.442695
      %v1592 = vpow.pop %v1591
      %v1593 = vmul.f32 %v1581, 1.442695
      %v1594 = vpow.pop %v1593
      %v1595 = vmul.f32 %v1582, 1.442695
      %v1596 = vpow.pop %v1595
      %v1597 = vmul.f32 %v1583, 1.442695
      %v1598 = vpow.pop %v1597
      %v1599 = vmul.f32 %v1584, 1.442695
      %v1600 = vpow.pop %v1599
      %v1601 = vadd.f32 %v1586, %v1588
      %1602 = vadd.xlane.f32.xlu0 %v1601
      %v1603 = vpop.xlane.xlu0 %1602
      %v1604 = vadd.f32 %v1590, %v1592
      %1605 = vadd.xlane.f32.xlu0 %v1604
      %v1606 = vpop.xlane.xlu0 %1605
      %v1607 = vadd.f32 %v1594, %v1596
      %1608 = vadd.xlane.f32.xlu0 %v1607
      %v1609 = vpop.xlane.xlu0 %1608
      %v1610 = vadd.f32 %v1598, %v1600
      %1611 = vadd.xlane.f32.xlu0 %v1610
      %v1612 = vpop.xlane.xlu0 %1611
      %v1613 = vrcp.pop %v1603
      %v1614 = vrcp.pop %v1606
      %v1615 = vrcp.pop %v1609
      %v1616 = vrcp.pop %v1612
      %v1617 = vmul.f32 %v1586, %v1613
      %v1618 = vmul.f32 %v1588, %v1613
      %v1619 = vmul.f32 %v1590, %v1614
      %v1620 = vmul.f32 %v1592, %v1614
      %v1621 = vmul.f32 %v1594, %v1615
      %v1622 = vmul.f32 %v1596, %v1615
      %v1623 = vmul.f32 %v1598, %v1616
      %v1624 = vmul.f32 %v1600, %v1616
      %v1625 = vpack.c.bf16 %v1619, %v1617
      %v1626 = vpack.c.bf16 %v1620, %v1618
      %v1627 = vpack.c.bf16 %v1623, %v1621
      %v1628 = vpack.c.bf16 %v1624, %v1622
      %1629 = vmatprep.subr.bf16.mxu0 0
      %1630 = vmatpush1.bf16.msra.mxu0 %v375
      %1631 = vmatprep.subr.bf16.mxu0 0
      %1632 = vmatpush1.bf16.msra.mxu0 %v374
      %1633 = vmatprep.subr.bf16.mxu0 0
      %1634 = vmatpush1.bf16.msra.mxu0 %v373
      %1635 = vmatprep.subr.bf16.mxu0 0
      %1636 = vmatpush1.bf16.msra.mxu0 %v372
      %1637 = vmatprep.subr.bf16.mxu0 0
      %1638 = vmatpush1.bf16.msra.mxu0 %v371
      %1639 = vmatprep.subr.bf16.mxu0 0
      %1640 = vmatpush1.bf16.msra.mxu0 %v370
      %1641 = vmatprep.subr.bf16.mxu0 0
      %1642 = vmatpush1.bf16.msra.mxu0 %v369
      %1643 = vmatprep.subr.bf16.mxu0 0
      %1644 = vmatpush1.bf16.msra.mxu0 %v368
      %1645 = vmatprep.subr.bf16.mxu0 0
      %1646 = vmatpush2.bf16.msra.mxu0 %v383
      %1647 = vmatprep.subr.bf16.mxu0 0
      %1648 = vmatpush2.bf16.msra.mxu0 %v382
      %1649 = vmatprep.subr.bf16.mxu0 0
      %1650 = vmatpush2.bf16.msra.mxu0 %v381
      %1651 = vmatprep.subr.bf16.mxu0 0
      %1652 = vmatpush2.bf16.msra.mxu0 %v380
      %1653 = vmatprep.subr.bf16.mxu0 0
      %1654 = vmatpush2.bf16.msra.mxu0 %v379
      %1655 = vmatprep.subr.bf16.mxu0 0
      %1656 = vmatpush2.bf16.msra.mxu0 %v378
      %1657 = vmatprep.subr.bf16.mxu0 0
      %1658 = vmatpush2.bf16.msra.mxu0 %v377
      %1659 = vmatprep.subr.bf16.mxu0 0
      %1660 = vmatpush2.bf16.msra.mxu0 %v376
      %1661 = vmatprep.mubr.bf16.mxu0 %v1626
      %1662 = vmatmul.mubr.bf16.gmra.mxu0 %v1625
      %v1663 = vpop.f32.mrf.mxu0
      %v1664 = vadd.f32 0.0, %v1663
      %v1665 = vpop.f32.mrf.mxu0
      %v1666 = vpop.f32.mrf.mxu0
      %v1667 = vadd.f32 0.0, %v1666
      %v1668 = vpop.f32.mrf.mxu0
      %1669 = vmatprep.mubr.bf16.mxu0 %v1628
      %1670 = vmatmul.mubr.bf16.gmra.mxu0 %v1627
      %v1671 = vpop.f32.mrf.mxu0
      %v1672 = vadd.f32 0.0, %v1671
      %v1673 = vpop.f32.mrf.mxu0
      %v1674 = vpop.f32.mrf.mxu0
      %v1675 = vadd.f32 0.0, %v1674
      %v1676 = vpop.f32.mrf.mxu0
      %1677 = vdwg.mxu0
      %v1678 = vpack.c.bf16 %v1667, %v1664
      %v1679 = vpack.c.bf16 %v1675, %v1672
      %1680 = vmatprep.subr.bf16.mxu0 0
      %1681 = vmatpush1.bf16.msra.mxu0 0
      %1682 = vmatprep.subr.bf16.mxu0 0
      %1683 = vmatpush1.bf16.msra.mxu0 0
      %1684 = vmatprep.subr.bf16.mxu0 0
      %1685 = vmatpush1.bf16.msra.mxu0 0
      %1686 = vmatprep.subr.bf16.mxu0 0
      %1687 = vmatpush1.bf16.msra.mxu0 0
      %1688 = vmatprep.subr.bf16.mxu0 0
      %1689 = vmatpush1.bf16.msra.mxu0 0
      %1690 = vmatprep.subr.bf16.mxu0 0
      %1691 = vmatpush1.bf16.msra.mxu0 0
      %1692 = vmatprep.subr.bf16.mxu0 0
      %1693 = vmatpush1.bf16.msra.mxu0 %v1679
      %1694 = vmatprep.subr.bf16.mxu0 0
      %1695 = vmatpush1.bf16.msra.mxu0 %v1678
      %1696 = vmatprep.subr.bf16.mxu0 0
      %1697 = vmatpush2.bf16.msra.mxu0 0
      %1698 = vmatprep.subr.bf16.mxu0 0
      %1699 = vmatpush2.bf16.msra.mxu0 0
      %1700 = vmatprep.subr.bf16.mxu0 0
      %1701 = vmatpush2.bf16.msra.mxu0 0
      %1702 = vmatprep.subr.bf16.mxu0 0
      %1703 = vmatpush2.bf16.msra.mxu0 0
      %1704 = vmatprep.subr.bf16.mxu0 0
      %1705 = vmatpush2.bf16.msra.mxu0 0
      %1706 = vmatprep.subr.bf16.mxu0 0
      %1707 = vmatpush2.bf16.msra.mxu0 0
      %1708 = vmatprep.subr.bf16.mxu0 0
      %1709 = vmatpush2.bf16.msra.mxu0 0
      %1710 = vmatprep.subr.bf16.mxu0 0
      %1711 = vmatpush2.bf16.msra.mxu0 0
      %1712 = vmatprep.mubr.bf16.mxu0 0
      %1713 = vmatmul.mubr.bf16.gmra.mxu0 %v561
      %v1714 = vpop.f32.mrf.mxu0
      %v1715 = vadd.f32 0.0, %v1714
      %v1716 = vpop.f32.mrf.mxu0
      %v1717 = vpop.f32.mrf.mxu0
      %v1718 = vpop.f32.mrf.mxu0
      %1719 = vdwg.mxu0
      %1721 = vrot.lane.b32.xlu0 %v1715, 80
      %v1722 = vpop.permute.xlu0 %1721
      %vm1724 = vcmask 786048
      %1725 = vst.msk [vmem:[%s170] sm:$0xff] %vm1724, %v1722
      %1726 = vrot.lane.b32.xlu0 %v298, 32
      %v1727 = vpop.permute.xlu0 %1726
      %1728 = vrot.lane.b32.xlu0 %v300, 32
      %v1729 = vpop.permute.xlu0 %1728
      %v1731 = vsel %vm384, %v1727, 0
      %v1734 = vsel %vm384, %v1729, 0
      %1736 = vmatprep.subr.bf16.mxu0 0
      %1737 = vmatpush1.bf16.msra.mxu0 0
      %1738 = vmatprep.subr.bf16.mxu0 0
      %1739 = vmatpush1.bf16.msra.mxu0 0
      %1740 = vmatprep.subr.bf16.mxu0 0
      %1741 = vmatpush1.bf16.msra.mxu0 0
      %1742 = vmatprep.subr.bf16.mxu0 0
      %1743 = vmatpush1.bf16.msra.mxu0 0
      %1744 = vmatprep.subr.bf16.mxu0 0
      %1745 = vmatpush1.bf16.msra.mxu0 0
      %1746 = vmatprep.subr.bf16.mxu0 0
      %1747 = vmatpush1.bf16.msra.mxu0 0
      %1748 = vmatprep.subr.bf16.mxu0 0
      %1749 = vmatpush1.bf16.msra.mxu0 0
      %1750 = vmatprep.subr.bf16.mxu0 %v303
      %1751 = vmatpush1.bf16.msra.mxu0 %v302
      %1752 = vmatprep.subr.bf16.mxu0 0
      %1753 = vmatpush2.bf16.msra.mxu0 0
      %1754 = vmatprep.subr.bf16.mxu0 0
      %1755 = vmatpush2.bf16.msra.mxu0 0
      %1756 = vmatprep.subr.bf16.mxu0 0
      %1757 = vmatpush2.bf16.msra.mxu0 0
      %1758 = vmatprep.subr.bf16.mxu0 0
      %1759 = vmatpush2.bf16.msra.mxu0 0
      %1760 = vmatprep.subr.bf16.mxu0 0
      %1761 = vmatpush2.bf16.msra.mxu0 0
      %1762 = vmatprep.subr.bf16.mxu0 0
      %1763 = vmatpush2.bf16.msra.mxu0 0
      %1764 = vmatprep.subr.bf16.mxu0 0
      %1765 = vmatpush2.bf16.msra.mxu0 0
      %1766 = vmatprep.subr.bf16.mxu0 0
      %1767 = vmatpush2.bf16.msra.mxu0 0
      %1768 = vmatprep.mubr.bf16.mxu0 0
      %1769 = vmatmul.mubr.bf16.gmra.mxu0 %v1731
      %v1770 = vpop.f32.mrf.mxu0
      %v1771 = vadd.f32 0.0, %v1770
      %v1772 = vpop.f32.mrf.mxu0
      %v1773 = vadd.f32 0.0, %v1772
      %v1774 = vpop.f32.mrf.mxu0
      %v1775 = vadd.f32 0.0, %v1774
      %v1776 = vpop.f32.mrf.mxu0
      %v1777 = vadd.f32 0.0, %v1776
      %1778 = vmatprep.mubr.bf16.mxu0 0
      %1779 = vmatmul.mubr.bf16.gmra.mxu0 %v1734
      %v1780 = vpop.f32.mrf.mxu0
      %v1781 = vadd.f32 0.0, %v1780
      %v1782 = vpop.f32.mrf.mxu0
      %v1783 = vadd.f32 0.0, %v1782
      %v1784 = vpop.f32.mrf.mxu0
      %v1785 = vadd.f32 0.0, %v1784
      %v1786 = vpop.f32.mrf.mxu0
      %v1787 = vadd.f32 0.0, %v1786
      %1788 = vdwg.mxu0
      %v1789 = vmax.f32 %v1771, %v1773
      %1790 = vmax.xlane.f32.xlu0 %v1789
      %v1791 = vpop.xlane.xlu0 %1790
      %v1792 = vmax.f32 %v1775, %v1777
      %1793 = vmax.xlane.f32.xlu0 %v1792
      %v1794 = vpop.xlane.xlu0 %1793
      %v1795 = vmax.f32 %v1781, %v1783
      %1796 = vmax.xlane.f32.xlu0 %v1795
      %v1797 = vpop.xlane.xlu0 %1796
      %v1798 = vmax.f32 %v1785, %v1787
      %1799 = vmax.xlane.f32.xlu0 %v1798
      %v1800 = vpop.xlane.xlu0 %1799
      %v1801 = vsub.f32 %v1771, %v1791
      %v1802 = vsub.f32 %v1773, %v1791
      %v1803 = vsub.f32 %v1775, %v1794
      %v1804 = vsub.f32 %v1777, %v1794
      %v1805 = vsub.f32 %v1781, %v1797
      %v1806 = vsub.f32 %v1783, %v1797
      %v1807 = vsub.f32 %v1785, %v1800
      %v1808 = vsub.f32 %v1787, %v1800
      %v1809 = vmul.f32 %v1801, 1.442695
      %v1810 = vpow.pop %v1809
      %v1811 = vmul.f32 %v1802, 1.442695
      %v1812 = vpow.pop %v1811
      %v1813 = vmul.f32 %v1803, 1.442695
      %v1814 = vpow.pop %v1813
      %v1815 = vmul.f32 %v1804, 1.442695
      %v1816 = vpow.pop %v1815
      %v1817 = vmul.f32 %v1805, 1.442695
      %v1818 = vpow.pop %v1817
      %v1819 = vmul.f32 %v1806, 1.442695
      %v1820 = vpow.pop %v1819
      %v1821 = vmul.f32 %v1807, 1.442695
      %v1822 = vpow.pop %v1821
      %v1823 = vmul.f32 %v1808, 1.442695
      %v1824 = vpow.pop %v1823
      %v1825 = vadd.f32 %v1810, %v1812
      %1826 = vadd.xlane.f32.xlu0 %v1825
      %v1827 = vpop.xlane.xlu0 %1826
      %v1828 = vadd.f32 %v1814, %v1816
      %1829 = vadd.xlane.f32.xlu0 %v1828
      %v1830 = vpop.xlane.xlu0 %1829
      %v1831 = vadd.f32 %v1818, %v1820
      %1832 = vadd.xlane.f32.xlu0 %v1831
      %v1833 = vpop.xlane.xlu0 %1832
      %v1834 = vadd.f32 %v1822, %v1824
      %1835 = vadd.xlane.f32.xlu0 %v1834
      %v1836 = vpop.xlane.xlu0 %1835
      %v1837 = vrcp.pop %v1827
      %v1838 = vrcp.pop %v1830
      %v1839 = vrcp.pop %v1833
      %v1840 = vrcp.pop %v1836
      %v1841 = vmul.f32 %v1810, %v1837
      %v1842 = vmul.f32 %v1812, %v1837
      %v1843 = vmul.f32 %v1814, %v1838
      %v1844 = vmul.f32 %v1816, %v1838
      %v1845 = vmul.f32 %v1818, %v1839
      %v1846 = vmul.f32 %v1820, %v1839
      %v1847 = vmul.f32 %v1822, %v1840
      %v1848 = vmul.f32 %v1824, %v1840
      %v1849 = vpack.c.bf16 %v1843, %v1841
      %v1850 = vpack.c.bf16 %v1844, %v1842
      %v1851 = vpack.c.bf16 %v1847, %v1845
      %v1852 = vpack.c.bf16 %v1848, %v1846
      %1853 = vmatprep.subr.bf16.mxu0 0
      %1854 = vmatpush1.bf16.msra.mxu0 %v375
      %1855 = vmatprep.subr.bf16.mxu0 0
      %1856 = vmatpush1.bf16.msra.mxu0 %v374
      %1857 = vmatprep.subr.bf16.mxu0 0
      %1858 = vmatpush1.bf16.msra.mxu0 %v373
      %1859 = vmatprep.subr.bf16.mxu0 0
      %1860 = vmatpush1.bf16.msra.mxu0 %v372
      %1861 = vmatprep.subr.bf16.mxu0 0
      %1862 = vmatpush1.bf16.msra.mxu0 %v371
      %1863 = vmatprep.subr.bf16.mxu0 0
      %1864 = vmatpush1.bf16.msra.mxu0 %v370
      %1865 = vmatprep.subr.bf16.mxu0 0
      %1866 = vmatpush1.bf16.msra.mxu0 %v369
      %1867 = vmatprep.subr.bf16.mxu0 0
      %1868 = vmatpush1.bf16.msra.mxu0 %v368
      %1869 = vmatprep.subr.bf16.mxu0 0
      %1870 = vmatpush2.bf16.msra.mxu0 %v383
      %1871 = vmatprep.subr.bf16.mxu0 0
      %1872 = vmatpush2.bf16.msra.mxu0 %v382
      %1873 = vmatprep.subr.bf16.mxu0 0
      %1874 = vmatpush2.bf16.msra.mxu0 %v381
      %1875 = vmatprep.subr.bf16.mxu0 0
      %1876 = vmatpush2.bf16.msra.mxu0 %v380
      %1877 = vmatprep.subr.bf16.mxu0 0
      %1878 = vmatpush2.bf16.msra.mxu0 %v379
      %1879 = vmatprep.subr.bf16.mxu0 0
      %1880 = vmatpush2.bf16.msra.mxu0 %v378
      %1881 = vmatprep.subr.bf16.mxu0 0
      %1882 = vmatpush2.bf16.msra.mxu0 %v377
      %1883 = vmatprep.subr.bf16.mxu0 0
      %1884 = vmatpush2.bf16.msra.mxu0 %v376
      %1885 = vmatprep.mubr.bf16.mxu0 %v1850
      %1886 = vmatmul.mubr.bf16.gmra.mxu0 %v1849
      %v1887 = vpop.f32.mrf.mxu0
      %v1888 = vadd.f32 0.0, %v1887
      %v1889 = vpop.f32.mrf.mxu0
      %v1890 = vpop.f32.mrf.mxu0
      %v1891 = vadd.f32 0.0, %v1890
      %v1892 = vpop.f32.mrf.mxu0
      %1893 = vmatprep.mubr.bf16.mxu0 %v1852
      %1894 = vmatmul.mubr.bf16.gmra.mxu0 %v1851
      %v1895 = vpop.f32.mrf.mxu0
      %v1896 = vadd.f32 0.0, %v1895
      %v1897 = vpop.f32.mrf.mxu0
      %v1898 = vpop.f32.mrf.mxu0
      %v1899 = vadd.f32 0.0, %v1898
      %v1900 = vpop.f32.mrf.mxu0
      %1901 = vdwg.mxu0
      %v1902 = vpack.c.bf16 %v1891, %v1888
      %v1903 = vpack.c.bf16 %v1899, %v1896
      %1904 = vmatprep.subr.bf16.mxu0 0
      %1905 = vmatpush1.bf16.msra.mxu0 0
      %1906 = vmatprep.subr.bf16.mxu0 0
      %1907 = vmatpush1.bf16.msra.mxu0 0
      %1908 = vmatprep.subr.bf16.mxu0 0
      %1909 = vmatpush1.bf16.msra.mxu0 0
      %1910 = vmatprep.subr.bf16.mxu0 0
      %1911 = vmatpush1.bf16.msra.mxu0 0
      %1912 = vmatprep.subr.bf16.mxu0 0
      %1913 = vmatpush1.bf16.msra.mxu0 0
      %1914 = vmatprep.subr.bf16.mxu0 0
      %1915 = vmatpush1.bf16.msra.mxu0 0
      %1916 = vmatprep.subr.bf16.mxu0 0
      %1917 = vmatpush1.bf16.msra.mxu0 %v1903
      %1918 = vmatprep.subr.bf16.mxu0 0
      %1919 = vmatpush1.bf16.msra.mxu0 %v1902
      %1920 = vmatprep.subr.bf16.mxu0 0
      %1921 = vmatpush2.bf16.msra.mxu0 0
      %1922 = vmatprep.subr.bf16.mxu0 0
      %1923 = vmatpush2.bf16.msra.mxu0 0
      %1924 = vmatprep.subr.bf16.mxu0 0
      %1925 = vmatpush2.bf16.msra.mxu0 0
      %1926 = vmatprep.subr.bf16.mxu0 0
      %1927 = vmatpush2.bf16.msra.mxu0 0
      %1928 = vmatprep.subr.bf16.mxu0 0
      %1929 = vmatpush2.bf16.msra.mxu0 0
      %1930 = vmatprep.subr.bf16.mxu0 0
      %1931 = vmatpush2.bf16.msra.mxu0 0
      %1932 = vmatprep.subr.bf16.mxu0 0
      %1933 = vmatpush2.bf16.msra.mxu0 0
      %1934 = vmatprep.subr.bf16.mxu0 0
      %1935 = vmatpush2.bf16.msra.mxu0 0
      %1936 = vmatprep.mubr.bf16.mxu0 0
      %1937 = vmatmul.mubr.bf16.gmra.mxu0 %v561
      %v1938 = vpop.f32.mrf.mxu0
      %v1939 = vadd.f32 0.0, %v1938
      %v1940 = vpop.f32.mrf.mxu0
      %v1941 = vpop.f32.mrf.mxu0
      %v1942 = vpop.f32.mrf.mxu0
      %1943 = vdwg.mxu0
      %1945 = vrot.lane.b32.xlu0 %v1939, 96
      %v1946 = vpop.permute.xlu0 %1945
      %vm1948 = vcmask 917248
      %1949 = vst.msk [vmem:[%s170] sm:$0xff] %vm1948, %v1946
      %1950 = vrot.lane.b32.xlu0 %v298, 16
      %v1951 = vpop.permute.xlu0 %1950
      %1952 = vrot.lane.b32.xlu0 %v300, 16
      %v1953 = vpop.permute.xlu0 %1952
      %v1955 = vsel %vm384, %v1951, 0
      %v1958 = vsel %vm384, %v1953, 0
      %1960 = vmatprep.subr.bf16.mxu0 0
      %1961 = vmatpush1.bf16.msra.mxu0 0
      %1962 = vmatprep.subr.bf16.mxu0 0
      %1963 = vmatpush1.bf16.msra.mxu0 0
      %1964 = vmatprep.subr.bf16.mxu0 0
      %1965 = vmatpush1.bf16.msra.mxu0 0
      %1966 = vmatprep.subr.bf16.mxu0 0
      %1967 = vmatpush1.bf16.msra.mxu0 0
      %1968 = vmatprep.subr.bf16.mxu0 0
      %1969 = vmatpush1.bf16.msra.mxu0 0
      %1970 = vmatprep.subr.bf16.mxu0 0
      %1971 = vmatpush1.bf16.msra.mxu0 0
      %1972 = vmatprep.subr.bf16.mxu0 0
      %1973 = vmatpush1.bf16.msra.mxu0 0
      %1974 = vmatprep.subr.bf16.mxu0 %v303
      %1975 = vmatpush1.bf16.msra.mxu0 %v302
      %1976 = vmatprep.subr.bf16.mxu0 0
      %1977 = vmatpush2.bf16.msra.mxu0 0
      %1978 = vmatprep.subr.bf16.mxu0 0
      %1979 = vmatpush2.bf16.msra.mxu0 0
      %1980 = vmatprep.subr.bf16.mxu0 0
      %1981 = vmatpush2.bf16.msra.mxu0 0
      %1982 = vmatprep.subr.bf16.mxu0 0
      %1983 = vmatpush2.bf16.msra.mxu0 0
      %1984 = vmatprep.subr.bf16.mxu0 0
      %1985 = vmatpush2.bf16.msra.mxu0 0
      %1986 = vmatprep.subr.bf16.mxu0 0
      %1987 = vmatpush2.bf16.msra.mxu0 0
      %1988 = vmatprep.subr.bf16.mxu0 0
      %1989 = vmatpush2.bf16.msra.mxu0 0
      %1990 = vmatprep.subr.bf16.mxu0 0
      %1991 = vmatpush2.bf16.msra.mxu0 0
      %1992 = vmatprep.mubr.bf16.mxu0 0
      %1993 = vmatmul.mubr.bf16.gmra.mxu0 %v1955
      %v1994 = vpop.f32.mrf.mxu0
      %v1995 = vadd.f32 0.0, %v1994
      %v1996 = vpop.f32.mrf.mxu0
      %v1997 = vadd.f32 0.0, %v1996
      %v1998 = vpop.f32.mrf.mxu0
      %v1999 = vadd.f32 0.0, %v1998
      %v2000 = vpop.f32.mrf.mxu0
      %v2001 = vadd.f32 0.0, %v2000
      %2002 = vmatprep.mubr.bf16.mxu0 0
      %2003 = vmatmul.mubr.bf16.gmra.mxu0 %v1958
      %v2004 = vpop.f32.mrf.mxu0
      %v2005 = vadd.f32 0.0, %v2004
      %v2006 = vpop.f32.mrf.mxu0
      %v2007 = vadd.f32 0.0, %v2006
      %v2008 = vpop.f32.mrf.mxu0
      %v2009 = vadd.f32 0.0, %v2008
      %v2010 = vpop.f32.mrf.mxu0
      %v2011 = vadd.f32 0.0, %v2010
      %2012 = vdwg.mxu0
      %v2013 = vmax.f32 %v1995, %v1997
      %2014 = vmax.xlane.f32.xlu0 %v2013
      %v2015 = vpop.xlane.xlu0 %2014
      %v2016 = vmax.f32 %v1999, %v2001
      %2017 = vmax.xlane.f32.xlu0 %v2016
      %v2018 = vpop.xlane.xlu0 %2017
      %v2019 = vmax.f32 %v2005, %v2007
      %2020 = vmax.xlane.f32.xlu0 %v2019
      %v2021 = vpop.xlane.xlu0 %2020
      %v2022 = vmax.f32 %v2009, %v2011
      %2023 = vmax.xlane.f32.xlu0 %v2022
      %v2024 = vpop.xlane.xlu0 %2023
      %v2025 = vsub.f32 %v1995, %v2015
      %v2026 = vsub.f32 %v1997, %v2015
      %v2027 = vsub.f32 %v1999, %v2018
      %v2028 = vsub.f32 %v2001, %v2018
      %v2029 = vsub.f32 %v2005, %v2021
      %v2030 = vsub.f32 %v2007, %v2021
      %v2031 = vsub.f32 %v2009, %v2024
      %v2032 = vsub.f32 %v2011, %v2024
      %v2033 = vmul.f32 %v2025, 1.442695
      %v2034 = vpow.pop %v2033
      %v2035 = vmul.f32 %v2026, 1.442695
      %v2036 = vpow.pop %v2035
      %v2037 = vmul.f32 %v2027, 1.442695
      %v2038 = vpow.pop %v2037
      %v2039 = vmul.f32 %v2028, 1.442695
      %v2040 = vpow.pop %v2039
      %v2041 = vmul.f32 %v2029, 1.442695
      %v2042 = vpow.pop %v2041
      %v2043 = vmul.f32 %v2030, 1.442695
      %v2044 = vpow.pop %v2043
      %v2045 = vmul.f32 %v2031, 1.442695
      %v2046 = vpow.pop %v2045
      %v2047 = vmul.f32 %v2032, 1.442695
      %v2048 = vpow.pop %v2047
      %v2049 = vadd.f32 %v2034, %v2036
      %2050 = vadd.xlane.f32.xlu0 %v2049
      %v2051 = vpop.xlane.xlu0 %2050
      %v2052 = vadd.f32 %v2038, %v2040
      %2053 = vadd.xlane.f32.xlu0 %v2052
      %v2054 = vpop.xlane.xlu0 %2053
      %v2055 = vadd.f32 %v2042, %v2044
      %2056 = vadd.xlane.f32.xlu0 %v2055
      %v2057 = vpop.xlane.xlu0 %2056
      %v2058 = vadd.f32 %v2046, %v2048
      %2059 = vadd.xlane.f32.xlu0 %v2058
      %v2060 = vpop.xlane.xlu0 %2059
      %v2061 = vrcp.pop %v2051
      %v2062 = vrcp.pop %v2054
      %v2063 = vrcp.pop %v2057
      %v2064 = vrcp.pop %v2060
      %v2065 = vmul.f32 %v2034, %v2061
      %v2066 = vmul.f32 %v2036, %v2061
      %v2067 = vmul.f32 %v2038, %v2062
      %v2068 = vmul.f32 %v2040, %v2062
      %v2069 = vmul.f32 %v2042, %v2063
      %v2070 = vmul.f32 %v2044, %v2063
      %v2071 = vmul.f32 %v2046, %v2064
      %v2072 = vmul.f32 %v2048, %v2064
      %v2073 = vpack.c.bf16 %v2067, %v2065
      %v2074 = vpack.c.bf16 %v2068, %v2066
      %v2075 = vpack.c.bf16 %v2071, %v2069
      %v2076 = vpack.c.bf16 %v2072, %v2070
      %2077 = vmatprep.subr.bf16.mxu0 0
      %2078 = vmatpush1.bf16.msra.mxu0 %v375
      %2079 = vmatprep.subr.bf16.mxu0 0
      %2080 = vmatpush1.bf16.msra.mxu0 %v374
      %2081 = vmatprep.subr.bf16.mxu0 0
      %2082 = vmatpush1.bf16.msra.mxu0 %v373
      %2083 = vmatprep.subr.bf16.mxu0 0
      %2084 = vmatpush1.bf16.msra.mxu0 %v372
      %2085 = vmatprep.subr.bf16.mxu0 0
      %2086 = vmatpush1.bf16.msra.mxu0 %v371
      %2087 = vmatprep.subr.bf16.mxu0 0
      %2088 = vmatpush1.bf16.msra.mxu0 %v370
      %2089 = vmatprep.subr.bf16.mxu0 0
      %2090 = vmatpush1.bf16.msra.mxu0 %v369
      %2091 = vmatprep.subr.bf16.mxu0 0
      %2092 = vmatpush1.bf16.msra.mxu0 %v368
      %2093 = vmatprep.subr.bf16.mxu0 0
      %2094 = vmatpush2.bf16.msra.mxu0 %v383
      %2095 = vmatprep.subr.bf16.mxu0 0
      %2096 = vmatpush2.bf16.msra.mxu0 %v382
      %2097 = vmatprep.subr.bf16.mxu0 0
      %2098 = vmatpush2.bf16.msra.mxu0 %v381
      %2099 = vmatprep.subr.bf16.mxu0 0
      %2100 = vmatpush2.bf16.msra.mxu0 %v380
      %2101 = vmatprep.subr.bf16.mxu0 0
      %2102 = vmatpush2.bf16.msra.mxu0 %v379
      %2103 = vmatprep.subr.bf16.mxu0 0
      %2104 = vmatpush2.bf16.msra.mxu0 %v378
      %2105 = vmatprep.subr.bf16.mxu0 0
      %2106 = vmatpush2.bf16.msra.mxu0 %v377
      %2107 = vmatprep.subr.bf16.mxu0 0
      %2108 = vmatpush2.bf16.msra.mxu0 %v376
      %2109 = vmatprep.mubr.bf16.mxu0 %v2074
      %2110 = vmatmul.mubr.bf16.gmra.mxu0 %v2073
      %v2111 = vpop.f32.mrf.mxu0
      %v2112 = vadd.f32 0.0, %v2111
      %v2113 = vpop.f32.mrf.mxu0
      %v2114 = vpop.f32.mrf.mxu0
      %v2115 = vadd.f32 0.0, %v2114
      %v2116 = vpop.f32.mrf.mxu0
      %2117 = vmatprep.mubr.bf16.mxu0 %v2076
      %2118 = vmatmul.mubr.bf16.gmra.mxu0 %v2075
      %v2119 = vpop.f32.mrf.mxu0
      %v2120 = vadd.f32 0.0, %v2119
      %v2121 = vpop.f32.mrf.mxu0
      %v2122 = vpop.f32.mrf.mxu0
      %v2123 = vadd.f32 0.0, %v2122
      %v2124 = vpop.f32.mrf.mxu0
      %2125 = vdwg.mxu0
      %v2126 = vpack.c.bf16 %v2115, %v2112
      %v2127 = vpack.c.bf16 %v2123, %v2120
      %2128 = vmatprep.subr.bf16.mxu0 0
      %2129 = vmatpush1.bf16.msra.mxu0 0
      %2130 = vmatprep.subr.bf16.mxu0 0
      %2131 = vmatpush1.bf16.msra.mxu0 0
      %2132 = vmatprep.subr.bf16.mxu0 0
      %2133 = vmatpush1.bf16.msra.mxu0 0
      %2134 = vmatprep.subr.bf16.mxu0 0
      %2135 = vmatpush1.bf16.msra.mxu0 0
      %2136 = vmatprep.subr.bf16.mxu0 0
      %2137 = vmatpush1.bf16.msra.mxu0 0
      %2138 = vmatprep.subr.bf16.mxu0 0
      %2139 = vmatpush1.bf16.msra.mxu0 0
      %2140 = vmatprep.subr.bf16.mxu0 0
      %2141 = vmatpush1.bf16.msra.mxu0 %v2127
      %2142 = vmatprep.subr.bf16.mxu0 0
      %2143 = vmatpush1.bf16.msra.mxu0 %v2126
      %2144 = vmatprep.subr.bf16.mxu0 0
      %2145 = vmatpush2.bf16.msra.mxu0 0
      %2146 = vmatprep.subr.bf16.mxu0 0
      %2147 = vmatpush2.bf16.msra.mxu0 0
      %2148 = vmatprep.subr.bf16.mxu0 0
      %2149 = vmatpush2.bf16.msra.mxu0 0
      %2150 = vmatprep.subr.bf16.mxu0 0
      %2151 = vmatpush2.bf16.msra.mxu0 0
      %2152 = vmatprep.subr.bf16.mxu0 0
      %2153 = vmatpush2.bf16.msra.mxu0 0
      %2154 = vmatprep.subr.bf16.mxu0 0
      %2155 = vmatpush2.bf16.msra.mxu0 0
      %2156 = vmatprep.subr.bf16.mxu0 0
      %2157 = vmatpush2.bf16.msra.mxu0 0
      %2158 = vmatprep.subr.bf16.mxu0 0
      %2159 = vmatpush2.bf16.msra.mxu0 0
      %2160 = vmatprep.mubr.bf16.mxu0 0
      %2161 = vmatmul.mubr.bf16.gmra.mxu0 %v561
      %v2162 = vpop.f32.mrf.mxu0
      %v2163 = vadd.f32 0.0, %v2162
      %v2164 = vpop.f32.mrf.mxu0
      %v2165 = vpop.f32.mrf.mxu0
      %v2166 = vpop.f32.mrf.mxu0
      %2167 = vdwg.mxu0
      %2169 = vrot.lane.b32.xlu0 %v2163, 112
      %v2170 = vpop.permute.xlu0 %2169
      %vm2172 = vcmask 1048448
      %2173 = vst.msk [vmem:[%s170] sm:$0xff] %vm2172, %v2170
      %v2175 = vsel %vm384, %v299, 0
      %v2178 = vsel %vm384, %v301, 0
      %2180 = vmatprep.subr.bf16.mxu0 0
      %2181 = vmatpush1.bf16.msra.mxu0 0
      %2182 = vmatprep.subr.bf16.mxu0 0
      %2183 = vmatpush1.bf16.msra.mxu0 0
      %2184 = vmatprep.subr.bf16.mxu0 0
      %2185 = vmatpush1.bf16.msra.mxu0 0
      %2186 = vmatprep.subr.bf16.mxu0 0
      %2187 = vmatpush1.bf16.msra.mxu0 0
      %2188 = vmatprep.subr.bf16.mxu0 0
      %2189 = vmatpush1.bf16.msra.mxu0 0
      %2190 = vmatprep.subr.bf16.mxu0 0
      %2191 = vmatpush1.bf16.msra.mxu0 0
      %2192 = vmatprep.subr.bf16.mxu0 0
      %2193 = vmatpush1.bf16.msra.mxu0 0
      %2194 = vmatprep.subr.bf16.mxu0 %v303
      %2195 = vmatpush1.bf16.msra.mxu0 %v302
      %2196 = vmatprep.subr.bf16.mxu0 0
      %2197 = vmatpush2.bf16.msra.mxu0 0
      %2198 = vmatprep.subr.bf16.mxu0 0
      %2199 = vmatpush2.bf16.msra.mxu0 0
      %2200 = vmatprep.subr.bf16.mxu0 0
      %2201 = vmatpush2.bf16.msra.mxu0 0
      %2202 = vmatprep.subr.bf16.mxu0 0
      %2203 = vmatpush2.bf16.msra.mxu0 0
      %2204 = vmatprep.subr.bf16.mxu0 0
      %2205 = vmatpush2.bf16.msra.mxu0 0
      %2206 = vmatprep.subr.bf16.mxu0 0
      %2207 = vmatpush2.bf16.msra.mxu0 0
      %2208 = vmatprep.subr.bf16.mxu0 0
      %2209 = vmatpush2.bf16.msra.mxu0 0
      %2210 = vmatprep.subr.bf16.mxu0 0
      %2211 = vmatpush2.bf16.msra.mxu0 0
      %2212 = vmatprep.mubr.bf16.mxu0 0
      %2213 = vmatmul.mubr.bf16.gmra.mxu0 %v2175
      %v2214 = vpop.f32.mrf.mxu0
      %v2215 = vadd.f32 0.0, %v2214
      %v2216 = vpop.f32.mrf.mxu0
      %v2217 = vadd.f32 0.0, %v2216
      %v2218 = vpop.f32.mrf.mxu0
      %v2219 = vadd.f32 0.0, %v2218
      %v2220 = vpop.f32.mrf.mxu0
      %v2221 = vadd.f32 0.0, %v2220
      %2222 = vmatprep.mubr.bf16.mxu0 0
      %2223 = vmatmul.mubr.bf16.gmra.mxu0 %v2178
      %v2224 = vpop.f32.mrf.mxu0
      %v2225 = vadd.f32 0.0, %v2224
      %v2226 = vpop.f32.mrf.mxu0
      %v2227 = vadd.f32 0.0, %v2226
      %v2228 = vpop.f32.mrf.mxu0
      %v2229 = vadd.f32 0.0, %v2228
      %v2230 = vpop.f32.mrf.mxu0
      %v2231 = vadd.f32 0.0, %v2230
      %2232 = vdwg.mxu0
      %v2233 = vmax.f32 %v2215, %v2217
      %2234 = vmax.xlane.f32.xlu0 %v2233
      %v2235 = vpop.xlane.xlu0 %2234
      %v2236 = vmax.f32 %v2219, %v2221
      %2237 = vmax.xlane.f32.xlu0 %v2236
      %v2238 = vpop.xlane.xlu0 %2237
      %v2239 = vmax.f32 %v2225, %v2227
      %2240 = vmax.xlane.f32.xlu0 %v2239
      %v2241 = vpop.xlane.xlu0 %2240
      %v2242 = vmax.f32 %v2229, %v2231
      %2243 = vmax.xlane.f32.xlu0 %v2242
      %v2244 = vpop.xlane.xlu0 %2243
      %v2245 = vsub.f32 %v2215, %v2235
      %v2246 = vsub.f32 %v2217, %v2235
      %v2247 = vsub.f32 %v2219, %v2238
      %v2248 = vsub.f32 %v2221, %v2238
      %v2249 = vsub.f32 %v2225, %v2241
      %v2250 = vsub.f32 %v2227, %v2241
      %v2251 = vsub.f32 %v2229, %v2244
      %v2252 = vsub.f32 %v2231, %v2244
      %v2253 = vmul.f32 %v2245, 1.442695
      %v2254 = vpow.pop %v2253
      %v2255 = vmul.f32 %v2246, 1.442695
      %v2256 = vpow.pop %v2255
      %v2257 = vmul.f32 %v2247, 1.442695
      %v2258 = vpow.pop %v2257
      %v2259 = vmul.f32 %v2248, 1.442695
      %v2260 = vpow.pop %v2259
      %v2261 = vmul.f32 %v2249, 1.442695
      %v2262 = vpow.pop %v2261
      %v2263 = vmul.f32 %v2250, 1.442695
      %v2264 = vpow.pop %v2263
      %v2265 = vmul.f32 %v2251, 1.442695
      %v2266 = vpow.pop %v2265
      %v2267 = vmul.f32 %v2252, 1.442695
      %v2268 = vpow.pop %v2267
      %v2269 = vadd.f32 %v2254, %v2256
      %2270 = vadd.xlane.f32.xlu0 %v2269
      %v2271 = vpop.xlane.xlu0 %2270
      %v2272 = vadd.f32 %v2258, %v2260
      %2273 = vadd.xlane.f32.xlu0 %v2272
      %v2274 = vpop.xlane.xlu0 %2273
      %v2275 = vadd.f32 %v2262, %v2264
      %2276 = vadd.xlane.f32.xlu0 %v2275
      %v2277 = vpop.xlane.xlu0 %2276
      %v2278 = vadd.f32 %v2266, %v2268
      %2279 = vadd.xlane.f32.xlu0 %v2278
      %v2280 = vpop.xlane.xlu0 %2279
      %v2281 = vrcp.pop %v2271
      %v2282 = vrcp.pop %v2274
      %v2283 = vrcp.pop %v2277
      %v2284 = vrcp.pop %v2280
      %v2285 = vmul.f32 %v2254, %v2281
      %v2286 = vmul.f32 %v2256, %v2281
      %v2287 = vmul.f32 %v2258, %v2282
      %v2288 = vmul.f32 %v2260, %v2282
      %v2289 = vmul.f32 %v2262, %v2283
      %v2290 = vmul.f32 %v2264, %v2283
      %v2291 = vmul.f32 %v2266, %v2284
      %v2292 = vmul.f32 %v2268, %v2284
      %v2293 = vpack.c.bf16 %v2287, %v2285
      %v2294 = vpack.c.bf16 %v2288, %v2286
      %v2295 = vpack.c.bf16 %v2291, %v2289
      %v2296 = vpack.c.bf16 %v2292, %v2290
      %2297 = vmatprep.subr.bf16.mxu0 0
      %2298 = vmatpush1.bf16.msra.mxu0 %v375
      %2299 = vmatprep.subr.bf16.mxu0 0
      %2300 = vmatpush1.bf16.msra.mxu0 %v374
      %2301 = vmatprep.subr.bf16.mxu0 0
      %2302 = vmatpush1.bf16.msra.mxu0 %v373
      %2303 = vmatprep.subr.bf16.mxu0 0
      %2304 = vmatpush1.bf16.msra.mxu0 %v372
      %2305 = vmatprep.subr.bf16.mxu0 0
      %2306 = vmatpush1.bf16.msra.mxu0 %v371
      %2307 = vmatprep.subr.bf16.mxu0 0
      %2308 = vmatpush1.bf16.msra.mxu0 %v370
      %2309 = vmatprep.subr.bf16.mxu0 0
      %2310 = vmatpush1.bf16.msra.mxu0 %v369
      %2311 = vmatprep.subr.bf16.mxu0 0
      %2312 = vmatpush1.bf16.msra.mxu0 %v368
      %2313 = vmatprep.subr.bf16.mxu0 0
      %2314 = vmatpush2.bf16.msra.mxu0 %v383
      %2315 = vmatprep.subr.bf16.mxu0 0
      %2316 = vmatpush2.bf16.msra.mxu0 %v382
      %2317 = vmatprep.subr.bf16.mxu0 0
      %2318 = vmatpush2.bf16.msra.mxu0 %v381
      %2319 = vmatprep.subr.bf16.mxu0 0
      %2320 = vmatpush2.bf16.msra.mxu0 %v380
      %2321 = vmatprep.subr.bf16.mxu0 0
      %2322 = vmatpush2.bf16.msra.mxu0 %v379
      %2323 = vmatprep.subr.bf16.mxu0 0
      %2324 = vmatpush2.bf16.msra.mxu0 %v378
      %2325 = vmatprep.subr.bf16.mxu0 0
      %2326 = vmatpush2.bf16.msra.mxu0 %v377
      %2327 = vmatprep.subr.bf16.mxu0 0
      %2328 = vmatpush2.bf16.msra.mxu0 %v376
      %2329 = vmatprep.mubr.bf16.mxu0 %v2294
      %2330 = vmatmul.mubr.bf16.gmra.mxu0 %v2293
      %v2331 = vpop.f32.mrf.mxu0
      %v2332 = vadd.f32 0.0, %v2331
      %v2333 = vpop.f32.mrf.mxu0
      %v2334 = vpop.f32.mrf.mxu0
      %v2335 = vadd.f32 0.0, %v2334
      %v2336 = vpop.f32.mrf.mxu0
      %2337 = vmatprep.mubr.bf16.mxu0 %v2296
      %2338 = vmatmul.mubr.bf16.gmra.mxu0 %v2295
      %v2339 = vpop.f32.mrf.mxu0
      %v2340 = vadd.f32 0.0, %v2339
      %v2341 = vpop.f32.mrf.mxu0
      %v2342 = vpop.f32.mrf.mxu0
      %v2343 = vadd.f32 0.0, %v2342
      %v2344 = vpop.f32.mrf.mxu0
      %2345 = vdwg.mxu0
      %v2346 = vpack.c.bf16 %v2335, %v2332
      %v2347 = vpack.c.bf16 %v2343, %v2340
      %2348 = vmatprep.subr.bf16.mxu0 0
      %2349 = vmatpush1.bf16.msra.mxu0 0
      %2350 = vmatprep.subr.bf16.mxu0 0
      %2351 = vmatpush1.bf16.msra.mxu0 0
      %2352 = vmatprep.subr.bf16.mxu0 0
      %2353 = vmatpush1.bf16.msra.mxu0 0
      %2354 = vmatprep.subr.bf16.mxu0 0
      %2355 = vmatpush1.bf16.msra.mxu0 0
      %2356 = vmatprep.subr.bf16.mxu0 0
      %2357 = vmatpush1.bf16.msra.mxu0 0
      %2358 = vmatprep.subr.bf16.mxu0 0
      %2359 = vmatpush1.bf16.msra.mxu0 0
      %2360 = vmatprep.subr.bf16.mxu0 0
      %2361 = vmatpush1.bf16.msra.mxu0 %v2347
      %2362 = vmatprep.subr.bf16.mxu0 0
      %2363 = vmatpush1.bf16.msra.mxu0 %v2346
      %2364 = vmatprep.subr.bf16.mxu0 0
      %2365 = vmatpush2.bf16.msra.mxu0 0
      %2366 = vmatprep.subr.bf16.mxu0 0
      %2367 = vmatpush2.bf16.msra.mxu0 0
      %2368 = vmatprep.subr.bf16.mxu0 0
      %2369 = vmatpush2.bf16.msra.mxu0 0
      %2370 = vmatprep.subr.bf16.mxu0 0
      %2371 = vmatpush2.bf16.msra.mxu0 0
      %2372 = vmatprep.subr.bf16.mxu0 0
      %2373 = vmatpush2.bf16.msra.mxu0 0
      %2374 = vmatprep.subr.bf16.mxu0 0
      %2375 = vmatpush2.bf16.msra.mxu0 0
      %2376 = vmatprep.subr.bf16.mxu0 0
      %2377 = vmatpush2.bf16.msra.mxu0 0
      %2378 = vmatprep.subr.bf16.mxu0 0
      %2379 = vmatpush2.bf16.msra.mxu0 0
      %2380 = vmatprep.mubr.bf16.mxu0 0
      %2381 = vmatmul.mubr.bf16.gmra.mxu0 %v561
      %v2382 = vpop.f32.mrf.mxu0
      %v2383 = vadd.f32 0.0, %v2382
      %v2384 = vpop.f32.mrf.mxu0
      %v2385 = vpop.f32.mrf.mxu0
      %v2386 = vpop.f32.mrf.mxu0
      %2387 = vdwg.mxu0
      %2388 = vst.msk [vmem:[%s170 + $0x8] sm:$0xff] %vm384, %v2383
      %2391 = vrot.lane.b32.xlu0 %v299, 112
      %v2392 = vpop.permute.xlu0 %2391
      %2393 = vrot.lane.b32.xlu0 %v301, 112
      %v2394 = vpop.permute.xlu0 %2393
      %v2396 = vsel %vm384, %v2392, 0
      %v2399 = vsel %vm384, %v2394, 0
      %2401 = vmatprep.subr.bf16.mxu0 0
      %2402 = vmatpush1.bf16.msra.mxu0 0
      %2403 = vmatprep.subr.bf16.mxu0 0
      %2404 = vmatpush1.bf16.msra.mxu0 0
      %2405 = vmatprep.subr.bf16.mxu0 0
      %2406 = vmatpush1.bf16.msra.mxu0 0
      %2407 = vmatprep.subr.bf16.mxu0 0
      %2408 = vmatpush1.bf16.msra.mxu0 0
      %2409 = vmatprep.subr.bf16.mxu0 0
      %2410 = vmatpush1.bf16.msra.mxu0 0
      %2411 = vmatprep.subr.bf16.mxu0 0
      %2412 = vmatpush1.bf16.msra.mxu0 0
      %2413 = vmatprep.subr.bf16.mxu0 0
      %2414 = vmatpush1.bf16.msra.mxu0 0
      %2415 = vmatprep.subr.bf16.mxu0 %v303
      %2416 = vmatpush1.bf16.msra.mxu0 %v302
      %2417 = vmatprep.subr.bf16.mxu0 0
      %2418 = vmatpush2.bf16.msra.mxu0 0
      %2419 = vmatprep.subr.bf16.mxu0 0
      %2420 = vmatpush2.bf16.msra.mxu0 0
      %2421 = vmatprep.subr.bf16.mxu0 0
      %2422 = vmatpush2.bf16.msra.mxu0 0
      %2423 = vmatprep.subr.bf16.mxu0 0
      %2424 = vmatpush2.bf16.msra.mxu0 0
      %2425 = vmatprep.subr.bf16.mxu0 0
      %2426 = vmatpush2.bf16.msra.mxu0 0
      %2427 = vmatprep.subr.bf16.mxu0 0
      %2428 = vmatpush2.bf16.msra.mxu0 0
      %2429 = vmatprep.subr.bf16.mxu0 0
      %2430 = vmatpush2.bf16.msra.mxu0 0
      %2431 = vmatprep.subr.bf16.mxu0 0
      %2432 = vmatpush2.bf16.msra.mxu0 0
      %2433 = vmatprep.mubr.bf16.mxu0 0
      %2434 = vmatmul.mubr.bf16.gmra.mxu0 %v2396
      %v2435 = vpop.f32.mrf.mxu0
      %v2436 = vadd.f32 0.0, %v2435
      %v2437 = vpop.f32.mrf.mxu0
      %v2438 = vadd.f32 0.0, %v2437
      %v2439 = vpop.f32.mrf.mxu0
      %v2440 = vadd.f32 0.0, %v2439
      %v2441 = vpop.f32.mrf.mxu0
      %v2442 = vadd.f32 0.0, %v2441
      %2443 = vmatprep.mubr.bf16.mxu0 0
      %2444 = vmatmul.mubr.bf16.gmra.mxu0 %v2399
      %v2445 = vpop.f32.mrf.mxu0
      %v2446 = vadd.f32 0.0, %v2445
      %v2447 = vpop.f32.mrf.mxu0
      %v2448 = vadd.f32 0.0, %v2447
      %v2449 = vpop.f32.mrf.mxu0
      %v2450 = vadd.f32 0.0, %v2449
      %v2451 = vpop.f32.mrf.mxu0
      %v2452 = vadd.f32 0.0, %v2451
      %2453 = vdwg.mxu0
      %v2454 = vmax.f32 %v2436, %v2438
      %2455 = vmax.xlane.f32.xlu0 %v2454
      %v2456 = vpop.xlane.xlu0 %2455
      %v2457 = vmax.f32 %v2440, %v2442
      %2458 = vmax.xlane.f32.xlu0 %v2457
      %v2459 = vpop.xlane.xlu0 %2458
      %v2460 = vmax.f32 %v2446, %v2448
      %2461 = vmax.xlane.f32.xlu0 %v2460
      %v2462 = vpop.xlane.xlu0 %2461
      %v2463 = vmax.f32 %v2450, %v2452
      %2464 = vmax.xlane.f32.xlu0 %v2463
      %v2465 = vpop.xlane.xlu0 %2464
      %v2466 = vsub.f32 %v2436, %v2456
      %v2467 = vsub.f32 %v2438, %v2456
      %v2468 = vsub.f32 %v2440, %v2459
      %v2469 = vsub.f32 %v2442, %v2459
      %v2470 = vsub.f32 %v2446, %v2462
      %v2471 = vsub.f32 %v2448, %v2462
      %v2472 = vsub.f32 %v2450, %v2465
      %v2473 = vsub.f32 %v2452, %v2465
      %v2474 = vmul.f32 %v2466, 1.442695
      %v2475 = vpow.pop %v2474
      %v2476 = vmul.f32 %v2467, 1.442695
      %v2477 = vpow.pop %v2476
      %v2478 = vmul.f32 %v2468, 1.442695
      %v2479 = vpow.pop %v2478
      %v2480 = vmul.f32 %v2469, 1.442695
      %v2481 = vpow.pop %v2480
      %v2482 = vmul.f32 %v2470, 1.442695
      %v2483 = vpow.pop %v2482
      %v2484 = vmul.f32 %v2471, 1.442695
      %v2485 = vpow.pop %v2484
      %v2486 = vmul.f32 %v2472, 1.442695
      %v2487 = vpow.pop %v2486
      %v2488 = vmul.f32 %v2473, 1.442695
      %v2489 = vpow.pop %v2488
      %v2490 = vadd.f32 %v2475, %v2477
      %2491 = vadd.xlane.f32.xlu0 %v2490
      %v2492 = vpop.xlane.xlu0 %2491
      %v2493 = vadd.f32 %v2479, %v2481
      %2494 = vadd.xlane.f32.xlu0 %v2493
      %v2495 = vpop.xlane.xlu0 %2494
      %v2496 = vadd.f32 %v2483, %v2485
      %2497 = vadd.xlane.f32.xlu0 %v2496
      %v2498 = vpop.xlane.xlu0 %2497
      %v2499 = vadd.f32 %v2487, %v2489
      %2500 = vadd.xlane.f32.xlu0 %v2499
      %v2501 = vpop.xlane.xlu0 %2500
      %v2502 = vrcp.pop %v2492
      %v2503 = vrcp.pop %v2495
      %v2504 = vrcp.pop %v2498
      %v2505 = vrcp.pop %v2501
      %v2506 = vmul.f32 %v2475, %v2502
      %v2507 = vmul.f32 %v2477, %v2502
      %v2508 = vmul.f32 %v2479, %v2503
      %v2509 = vmul.f32 %v2481, %v2503
      %v2510 = vmul.f32 %v2483, %v2504
      %v2511 = vmul.f32 %v2485, %v2504
      %v2512 = vmul.f32 %v2487, %v2505
      %v2513 = vmul.f32 %v2489, %v2505
      %v2514 = vpack.c.bf16 %v2508, %v2506
      %v2515 = vpack.c.bf16 %v2509, %v2507
      %v2516 = vpack.c.bf16 %v2512, %v2510
      %v2517 = vpack.c.bf16 %v2513, %v2511
      %2518 = vmatprep.subr.bf16.mxu0 0
      %2519 = vmatpush1.bf16.msra.mxu0 %v375
      %2520 = vmatprep.subr.bf16.mxu0 0
      %2521 = vmatpush1.bf16.msra.mxu0 %v374
      %2522 = vmatprep.subr.bf16.mxu0 0
      %2523 = vmatpush1.bf16.msra.mxu0 %v373
      %2524 = vmatprep.subr.bf16.mxu0 0
      %2525 = vmatpush1.bf16.msra.mxu0 %v372
      %2526 = vmatprep.subr.bf16.mxu0 0
      %2527 = vmatpush1.bf16.msra.mxu0 %v371
      %2528 = vmatprep.subr.bf16.mxu0 0
      %2529 = vmatpush1.bf16.msra.mxu0 %v370
      %2530 = vmatprep.subr.bf16.mxu0 0
      %2531 = vmatpush1.bf16.msra.mxu0 %v369
      %2532 = vmatprep.subr.bf16.mxu0 0
      %2533 = vmatpush1.bf16.msra.mxu0 %v368
      %2534 = vmatprep.subr.bf16.mxu0 0
      %2535 = vmatpush2.bf16.msra.mxu0 %v383
      %2536 = vmatprep.subr.bf16.mxu0 0
      %2537 = vmatpush2.bf16.msra.mxu0 %v382
      %2538 = vmatprep.subr.bf16.mxu0 0
      %2539 = vmatpush2.bf16.msra.mxu0 %v381
      %2540 = vmatprep.subr.bf16.mxu0 0
      %2541 = vmatpush2.bf16.msra.mxu0 %v380
      %2542 = vmatprep.subr.bf16.mxu0 0
      %2543 = vmatpush2.bf16.msra.mxu0 %v379
      %2544 = vmatprep.subr.bf16.mxu0 0
      %2545 = vmatpush2.bf16.msra.mxu0 %v378
      %2546 = vmatprep.subr.bf16.mxu0 0
      %2547 = vmatpush2.bf16.msra.mxu0 %v377
      %2548 = vmatprep.subr.bf16.mxu0 0
      %2549 = vmatpush2.bf16.msra.mxu0 %v376
      %2550 = vmatprep.mubr.bf16.mxu0 %v2515
      %2551 = vmatmul.mubr.bf16.gmra.mxu0 %v2514
      %v2552 = vpop.f32.mrf.mxu0
      %v2553 = vadd.f32 0.0, %v2552
      %v2554 = vpop.f32.mrf.mxu0
      %v2555 = vpop.f32.mrf.mxu0
      %v2556 = vadd.f32 0.0, %v2555
      %v2557 = vpop.f32.mrf.mxu0
      %2558 = vmatprep.mubr.bf16.mxu0 %v2517
      %2559 = vmatmul.mubr.bf16.gmra.mxu0 %v2516
      %v2560 = vpop.f32.mrf.mxu0
      %v2561 = vadd.f32 0.0, %v2560
      %v2562 = vpop.f32.mrf.mxu0
      %v2563 = vpop.f32.mrf.mxu0
      %v2564 = vadd.f32 0.0, %v2563
      %v2565 = vpop.f32.mrf.mxu0
      %2566 = vdwg.mxu0
      %v2567 = vpack.c.bf16 %v2556, %v2553
      %v2568 = vpack.c.bf16 %v2564, %v2561
      %2569 = vmatprep.subr.bf16.mxu0 0
      %2570 = vmatpush1.bf16.msra.mxu0 0
      %2571 = vmatprep.subr.bf16.mxu0 0
      %2572 = vmatpush1.bf16.msra.mxu0 0
      %2573 = vmatprep.subr.bf16.mxu0 0
      %2574 = vmatpush1.bf16.msra.mxu0 0
      %2575 = vmatprep.subr.bf16.mxu0 0
      %2576 = vmatpush1.bf16.msra.mxu0 0
      %2577 = vmatprep.subr.bf16.mxu0 0
      %2578 = vmatpush1.bf16.msra.mxu0 0
      %2579 = vmatprep.subr.bf16.mxu0 0
      %2580 = vmatpush1.bf16.msra.mxu0 0
      %2581 = vmatprep.subr.bf16.mxu0 0
      %2582 = vmatpush1.bf16.msra.mxu0 %v2568
      %2583 = vmatprep.subr.bf16.mxu0 0
      %2584 = vmatpush1.bf16.msra.mxu0 %v2567
      %2585 = vmatprep.subr.bf16.mxu0 0
      %2586 = vmatpush2.bf16.msra.mxu0 0
      %2587 = vmatprep.subr.bf16.mxu0 0
      %2588 = vmatpush2.bf16.msra.mxu0 0
      %2589 = vmatprep.subr.bf16.mxu0 0
      %2590 = vmatpush2.bf16.msra.mxu0 0
      %2591 = vmatprep.subr.bf16.mxu0 0
      %2592 = vmatpush2.bf16.msra.mxu0 0
      %2593 = vmatprep.subr.bf16.mxu0 0
      %2594 = vmatpush2.bf16.msra.mxu0 0
      %2595 = vmatprep.subr.bf16.mxu0 0
      %2596 = vmatpush2.bf16.msra.mxu0 0
      %2597 = vmatprep.subr.bf16.mxu0 0
      %2598 = vmatpush2.bf16.msra.mxu0 0
      %2599 = vmatprep.subr.bf16.mxu0 0
      %2600 = vmatpush2.bf16.msra.mxu0 0
      %2601 = vmatprep.mubr.bf16.mxu0 0
      %2602 = vmatmul.mubr.bf16.gmra.mxu0 %v561
      %v2603 = vpop.f32.mrf.mxu0
      %v2604 = vadd.f32 0.0, %v2603
      %v2605 = vpop.f32.mrf.mxu0
      %v2606 = vpop.f32.mrf.mxu0
      %v2607 = vpop.f32.mrf.mxu0
      %2608 = vdwg.mxu0
      %2610 = vrot.lane.b32.xlu0 %v2604, 16
      %v2611 = vpop.permute.xlu0 %2610
      %2613 = vst.msk [vmem:[%s170 + $0x8] sm:$0xff] %vm828, %v2611
      %2614 = vrot.lane.b32.xlu0 %v299, 96
      %v2615 = vpop.permute.xlu0 %2614
      %2616 = vrot.lane.b32.xlu0 %v301, 96
      %v2617 = vpop.permute.xlu0 %2616
      %v2619 = vsel %vm384, %v2615, 0
      %v2622 = vsel %vm384, %v2617, 0
      %2624 = vmatprep.subr.bf16.mxu0 0
      %2625 = vmatpush1.bf16.msra.mxu0 0
      %2626 = vmatprep.subr.bf16.mxu0 0
      %2627 = vmatpush1.bf16.msra.mxu0 0
      %2628 = vmatprep.subr.bf16.mxu0 0
      %2629 = vmatpush1.bf16.msra.mxu0 0
      %2630 = vmatprep.subr.bf16.mxu0 0
      %2631 = vmatpush1.bf16.msra.mxu0 0
      %2632 = vmatprep.subr.bf16.mxu0 0
      %2633 = vmatpush1.bf16.msra.mxu0 0
      %2634 = vmatprep.subr.bf16.mxu0 0
      %2635 = vmatpush1.bf16.msra.mxu0 0
      %2636 = vmatprep.subr.bf16.mxu0 0
      %2637 = vmatpush1.bf16.msra.mxu0 0
      %2638 = vmatprep.subr.bf16.mxu0 %v303
      %2639 = vmatpush1.bf16.msra.mxu0 %v302
      %2640 = vmatprep.subr.bf16.mxu0 0
      %2641 = vmatpush2.bf16.msra.mxu0 0
      %2642 = vmatprep.subr.bf16.mxu0 0
      %2643 = vmatpush2.bf16.msra.mxu0 0
      %2644 = vmatprep.subr.bf16.mxu0 0
      %2645 = vmatpush2.bf16.msra.mxu0 0
      %2646 = vmatprep.subr.bf16.mxu0 0
      %2647 = vmatpush2.bf16.msra.mxu0 0
      %2648 = vmatprep.subr.bf16.mxu0 0
      %2649 = vmatpush2.bf16.msra.mxu0 0
      %2650 = vmatprep.subr.bf16.mxu0 0
      %2651 = vmatpush2.bf16.msra.mxu0 0
      %2652 = vmatprep.subr.bf16.mxu0 0
      %2653 = vmatpush2.bf16.msra.mxu0 0
      %2654 = vmatprep.subr.bf16.mxu0 0
      %2655 = vmatpush2.bf16.msra.mxu0 0
      %2656 = vmatprep.mubr.bf16.mxu0 0
      %2657 = vmatmul.mubr.bf16.gmra.mxu0 %v2619
      %v2658 = vpop.f32.mrf.mxu0
      %v2659 = vadd.f32 0.0, %v2658
      %v2660 = vpop.f32.mrf.mxu0
      %v2661 = vadd.f32 0.0, %v2660
      %v2662 = vpop.f32.mrf.mxu0
      %v2663 = vadd.f32 0.0, %v2662
      %v2664 = vpop.f32.mrf.mxu0
      %v2665 = vadd.f32 0.0, %v2664
      %2666 = vmatprep.mubr.bf16.mxu0 0
      %2667 = vmatmul.mubr.bf16.gmra.mxu0 %v2622
      %v2668 = vpop.f32.mrf.mxu0
      %v2669 = vadd.f32 0.0, %v2668
      %v2670 = vpop.f32.mrf.mxu0
      %v2671 = vadd.f32 0.0, %v2670
      %v2672 = vpop.f32.mrf.mxu0
      %v2673 = vadd.f32 0.0, %v2672
      %v2674 = vpop.f32.mrf.mxu0
      %v2675 = vadd.f32 0.0, %v2674
      %2676 = vdwg.mxu0
      %v2677 = vmax.f32 %v2659, %v2661
      %2678 = vmax.xlane.f32.xlu0 %v2677
      %v2679 = vpop.xlane.xlu0 %2678
      %v2680 = vmax.f32 %v2663, %v2665
      %2681 = vmax.xlane.f32.xlu0 %v2680
      %v2682 = vpop.xlane.xlu0 %2681
      %v2683 = vmax.f32 %v2669, %v2671
      %2684 = vmax.xlane.f32.xlu0 %v2683
      %v2685 = vpop.xlane.xlu0 %2684
      %v2686 = vmax.f32 %v2673, %v2675
      %2687 = vmax.xlane.f32.xlu0 %v2686
      %v2688 = vpop.xlane.xlu0 %2687
      %v2689 = vsub.f32 %v2659, %v2679
      %v2690 = vsub.f32 %v2661, %v2679
      %v2691 = vsub.f32 %v2663, %v2682
      %v2692 = vsub.f32 %v2665, %v2682
      %v2693 = vsub.f32 %v2669, %v2685
      %v2694 = vsub.f32 %v2671, %v2685
      %v2695 = vsub.f32 %v2673, %v2688
      %v2696 = vsub.f32 %v2675, %v2688
      %v2697 = vmul.f32 %v2689, 1.442695
      %v2698 = vpow.pop %v2697
      %v2699 = vmul.f32 %v2690, 1.442695
      %v2700 = vpow.pop %v2699
      %v2701 = vmul.f32 %v2691, 1.442695
      %v2702 = vpow.pop %v2701
      %v2703 = vmul.f32 %v2692, 1.442695
      %v2704 = vpow.pop %v2703
      %v2705 = vmul.f32 %v2693, 1.442695
      %v2706 = vpow.pop %v2705
      %v2707 = vmul.f32 %v2694, 1.442695
      %v2708 = vpow.pop %v2707
      %v2709 = vmul.f32 %v2695, 1.442695
      %v2710 = vpow.pop %v2709
      %v2711 = vmul.f32 %v2696, 1.442695
      %v2712 = vpow.pop %v2711
      %v2713 = vadd.f32 %v2698, %v2700
      %2714 = vadd.xlane.f32.xlu0 %v2713
      %v2715 = vpop.xlane.xlu0 %2714
      %v2716 = vadd.f32 %v2702, %v2704
      %2717 = vadd.xlane.f32.xlu0 %v2716
      %v2718 = vpop.xlane.xlu0 %2717
      %v2719 = vadd.f32 %v2706, %v2708
      %2720 = vadd.xlane.f32.xlu0 %v2719
      %v2721 = vpop.xlane.xlu0 %2720
      %v2722 = vadd.f32 %v2710, %v2712
      %2723 = vadd.xlane.f32.xlu0 %v2722
      %v2724 = vpop.xlane.xlu0 %2723
      %v2725 = vrcp.pop %v2715
      %v2726 = vrcp.pop %v2718
      %v2727 = vrcp.pop %v2721
      %v2728 = vrcp.pop %v2724
      %v2729 = vmul.f32 %v2698, %v2725
      %v2730 = vmul.f32 %v2700, %v2725
      %v2731 = vmul.f32 %v2702, %v2726
      %v2732 = vmul.f32 %v2704, %v2726
      %v2733 = vmul.f32 %v2706, %v2727
      %v2734 = vmul.f32 %v2708, %v2727
      %v2735 = vmul.f32 %v2710, %v2728
      %v2736 = vmul.f32 %v2712, %v2728
      %v2737 = vpack.c.bf16 %v2731, %v2729
      %v2738 = vpack.c.bf16 %v2732, %v2730
      %v2739 = vpack.c.bf16 %v2735, %v2733
      %v2740 = vpack.c.bf16 %v2736, %v2734
      %2741 = vmatprep.subr.bf16.mxu0 0
      %2742 = vmatpush1.bf16.msra.mxu0 %v375
      %2743 = vmatprep.subr.bf16.mxu0 0
      %2744 = vmatpush1.bf16.msra.mxu0 %v374
      %2745 = vmatprep.subr.bf16.mxu0 0
      %2746 = vmatpush1.bf16.msra.mxu0 %v373
      %2747 = vmatprep.subr.bf16.mxu0 0
      %2748 = vmatpush1.bf16.msra.mxu0 %v372
      %2749 = vmatprep.subr.bf16.mxu0 0
      %2750 = vmatpush1.bf16.msra.mxu0 %v371
      %2751 = vmatprep.subr.bf16.mxu0 0
      %2752 = vmatpush1.bf16.msra.mxu0 %v370
      %2753 = vmatprep.subr.bf16.mxu0 0
      %2754 = vmatpush1.bf16.msra.mxu0 %v369
      %2755 = vmatprep.subr.bf16.mxu0 0
      %2756 = vmatpush1.bf16.msra.mxu0 %v368
      %2757 = vmatprep.subr.bf16.mxu0 0
      %2758 = vmatpush2.bf16.msra.mxu0 %v383
      %2759 = vmatprep.subr.bf16.mxu0 0
      %2760 = vmatpush2.bf16.msra.mxu0 %v382
      %2761 = vmatprep.subr.bf16.mxu0 0
      %2762 = vmatpush2.bf16.msra.mxu0 %v381
      %2763 = vmatprep.subr.bf16.mxu0 0
      %2764 = vmatpush2.bf16.msra.mxu0 %v380
      %2765 = vmatprep.subr.bf16.mxu0 0
      %2766 = vmatpush2.bf16.msra.mxu0 %v379
      %2767 = vmatprep.subr.bf16.mxu0 0
      %2768 = vmatpush2.bf16.msra.mxu0 %v378
      %2769 = vmatprep.subr.bf16.mxu0 0
      %2770 = vmatpush2.bf16.msra.mxu0 %v377
      %2771 = vmatprep.subr.bf16.mxu0 0
      %2772 = vmatpush2.bf16.msra.mxu0 %v376
      %2773 = vmatprep.mubr.bf16.mxu0 %v2738
      %2774 = vmatmul.mubr.bf16.gmra.mxu0 %v2737
      %v2775 = vpop.f32.mrf.mxu0
      %v2776 = vadd.f32 0.0, %v2775
      %v2777 = vpop.f32.mrf.mxu0
      %v2778 = vpop.f32.mrf.mxu0
      %v2779 = vadd.f32 0.0, %v2778
      %v2780 = vpop.f32.mrf.mxu0
      %2781 = vmatprep.mubr.bf16.mxu0 %v2740
      %2782 = vmatmul.mubr.bf16.gmra.mxu0 %v2739
      %v2783 = vpop.f32.mrf.mxu0
      %v2784 = vadd.f32 0.0, %v2783
      %v2785 = vpop.f32.mrf.mxu0
      %v2786 = vpop.f32.mrf.mxu0
      %v2787 = vadd.f32 0.0, %v2786
      %v2788 = vpop.f32.mrf.mxu0
      %2789 = vdwg.mxu0
      %v2790 = vpack.c.bf16 %v2779, %v2776
      %v2791 = vpack.c.bf16 %v2787, %v2784
      %2792 = vmatprep.subr.bf16.mxu0 0
      %2793 = vmatpush1.bf16.msra.mxu0 0
      %2794 = vmatprep.subr.bf16.mxu0 0
      %2795 = vmatpush1.bf16.msra.mxu0 0
      %2796 = vmatprep.subr.bf16.mxu0 0
      %2797 = vmatpush1.bf16.msra.mxu0 0
      %2798 = vmatprep.subr.bf16.mxu0 0
      %2799 = vmatpush1.bf16.msra.mxu0 0
      %2800 = vmatprep.subr.bf16.mxu0 0
      %2801 = vmatpush1.bf16.msra.mxu0 0
      %2802 = vmatprep.subr.bf16.mxu0 0
      %2803 = vmatpush1.bf16.msra.mxu0 0
      %2804 = vmatprep.subr.bf16.mxu0 0
      %2805 = vmatpush1.bf16.msra.mxu0 %v2791
      %2806 = vmatprep.subr.bf16.mxu0 0
      %2807 = vmatpush1.bf16.msra.mxu0 %v2790
      %2808 = vmatprep.subr.bf16.mxu0 0
      %2809 = vmatpush2.bf16.msra.mxu0 0
      %2810 = vmatprep.subr.bf16.mxu0 0
      %2811 = vmatpush2.bf16.msra.mxu0 0
      %2812 = vmatprep.subr.bf16.mxu0 0
      %2813 = vmatpush2.bf16.msra.mxu0 0
      %2814 = vmatprep.subr.bf16.mxu0 0
      %2815 = vmatpush2.bf16.msra.mxu0 0
      %2816 = vmatprep.subr.bf16.mxu0 0
      %2817 = vmatpush2.bf16.msra.mxu0 0
      %2818 = vmatprep.subr.bf16.mxu0 0
      %2819 = vmatpush2.bf16.msra.mxu0 0
      %2820 = vmatprep.subr.bf16.mxu0 0
      %2821 = vmatpush2.bf16.msra.mxu0 0
      %2822 = vmatprep.subr.bf16.mxu0 0
      %2823 = vmatpush2.bf16.msra.mxu0 0
      %2824 = vmatprep.mubr.bf16.mxu0 0
      %2825 = vmatmul.mubr.bf16.gmra.mxu0 %v561
      %v2826 = vpop.f32.mrf.mxu0
      %v2827 = vadd.f32 0.0, %v2826
      %v2828 = vpop.f32.mrf.mxu0
      %v2829 = vpop.f32.mrf.mxu0
      %v2830 = vpop.f32.mrf.mxu0
      %2831 = vdwg.mxu0
      %2833 = vrot.lane.b32.xlu0 %v2827, 32
      %v2834 = vpop.permute.xlu0 %2833
      %2836 = vst.msk [vmem:[%s170 + $0x8] sm:$0xff] %vm1052, %v2834
      %2837 = vrot.lane.b32.xlu0 %v299, 80
      %v2838 = vpop.permute.xlu0 %2837
      %2839 = vrot.lane.b32.xlu0 %v301, 80
      %v2840 = vpop.permute.xlu0 %2839
      %v2842 = vsel %vm384, %v2838, 0
      %v2845 = vsel %vm384, %v2840, 0
      %2847 = vmatprep.subr.bf16.mxu0 0
      %2848 = vmatpush1.bf16.msra.mxu0 0
      %2849 = vmatprep.subr.bf16.mxu0 0
      %2850 = vmatpush1.bf16.msra.mxu0 0
      %2851 = vmatprep.subr.bf16.mxu0 0
      %2852 = vmatpush1.bf16.msra.mxu0 0
      %2853 = vmatprep.subr.bf16.mxu0 0
      %2854 = vmatpush1.bf16.msra.mxu0 0
      %2855 = vmatprep.subr.bf16.mxu0 0
      %2856 = vmatpush1.bf16.msra.mxu0 0
      %2857 = vmatprep.subr.bf16.mxu0 0
      %2858 = vmatpush1.bf16.msra.mxu0 0
      %2859 = vmatprep.subr.bf16.mxu0 0
      %2860 = vmatpush1.bf16.msra.mxu0 0
      %2861 = vmatprep.subr.bf16.mxu0 %v303
      %2862 = vmatpush1.bf16.msra.mxu0 %v302
      %2863 = vmatprep.subr.bf16.mxu0 0
      %2864 = vmatpush2.bf16.msra.mxu0 0
      %2865 = vmatprep.subr.bf16.mxu0 0
      %2866 = vmatpush2.bf16.msra.mxu0 0
      %2867 = vmatprep.subr.bf16.mxu0 0
      %2868 = vmatpush2.bf16.msra.mxu0 0
      %2869 = vmatprep.subr.bf16.mxu0 0
      %2870 = vmatpush2.bf16.msra.mxu0 0
      %2871 = vmatprep.subr.bf16.mxu0 0
      %2872 = vmatpush2.bf16.msra.mxu0 0
      %2873 = vmatprep.subr.bf16.mxu0 0
      %2874 = vmatpush2.bf16.msra.mxu0 0
      %2875 = vmatprep.subr.bf16.mxu0 0
      %2876 = vmatpush2.bf16.msra.mxu0 0
      %2877 = vmatprep.subr.bf16.mxu0 0
      %2878 = vmatpush2.bf16.msra.mxu0 0
      %2879 = vmatprep.mubr.bf16.mxu0 0
      %2880 = vmatmul.mubr.bf16.gmra.mxu0 %v2842
      %v2881 = vpop.f32.mrf.mxu0
      %v2882 = vadd.f32 0.0, %v2881
      %v2883 = vpop.f32.mrf.mxu0
      %v2884 = vadd.f32 0.0, %v2883
      %v2885 = vpop.f32.mrf.mxu0
      %v2886 = vadd.f32 0.0, %v2885
      %v2887 = vpop.f32.mrf.mxu0
      %v2888 = vadd.f32 0.0, %v2887
      %2889 = vmatprep.mubr.bf16.mxu0 0
      %2890 = vmatmul.mubr.bf16.gmra.mxu0 %v2845
      %v2891 = vpop.f32.mrf.mxu0
      %v2892 = vadd.f32 0.0, %v2891
      %v2893 = vpop.f32.mrf.mxu0
      %v2894 = vadd.f32 0.0, %v2893
      %v2895 = vpop.f32.mrf.mxu0
      %v2896 = vadd.f32 0.0, %v2895
      %v2897 = vpop.f32.mrf.mxu0
      %v2898 = vadd.f32 0.0, %v2897
      %2899 = vdwg.mxu0
      %v2900 = vmax.f32 %v2882, %v2884
      %2901 = vmax.xlane.f32.xlu0 %v2900
      %v2902 = vpop.xlane.xlu0 %2901
      %v2903 = vmax.f32 %v2886, %v2888
      %2904 = vmax.xlane.f32.xlu0 %v2903
      %v2905 = vpop.xlane.xlu0 %2904
      %v2906 = vmax.f32 %v2892, %v2894
      %2907 = vmax.xlane.f32.xlu0 %v2906
      %v2908 = vpop.xlane.xlu0 %2907
      %v2909 = vmax.f32 %v2896, %v2898
      %2910 = vmax.xlane.f32.xlu0 %v2909
      %v2911 = vpop.xlane.xlu0 %2910
      %v2912 = vsub.f32 %v2882, %v2902
      %v2913 = vsub.f32 %v2884, %v2902
      %v2914 = vsub.f32 %v2886, %v2905
      %v2915 = vsub.f32 %v2888, %v2905
      %v2916 = vsub.f32 %v2892, %v2908
      %v2917 = vsub.f32 %v2894, %v2908
      %v2918 = vsub.f32 %v2896, %v2911
      %v2919 = vsub.f32 %v2898, %v2911
      %v2920 = vmul.f32 %v2912, 1.442695
      %v2921 = vpow.pop %v2920
      %v2922 = vmul.f32 %v2913, 1.442695
      %v2923 = vpow.pop %v2922
      %v2924 = vmul.f32 %v2914, 1.442695
      %v2925 = vpow.pop %v2924
      %v2926 = vmul.f32 %v2915, 1.442695
      %v2927 = vpow.pop %v2926
      %v2928 = vmul.f32 %v2916, 1.442695
      %v2929 = vpow.pop %v2928
      %v2930 = vmul.f32 %v2917, 1.442695
      %v2931 = vpow.pop %v2930
      %v2932 = vmul.f32 %v2918, 1.442695
      %v2933 = vpow.pop %v2932
      %v2934 = vmul.f32 %v2919, 1.442695
      %v2935 = vpow.pop %v2934
      %v2936 = vadd.f32 %v2921, %v2923
      %2937 = vadd.xlane.f32.xlu0 %v2936
      %v2938 = vpop.xlane.xlu0 %2937
      %v2939 = vadd.f32 %v2925, %v2927
      %2940 = vadd.xlane.f32.xlu0 %v2939
      %v2941 = vpop.xlane.xlu0 %2940
      %v2942 = vadd.f32 %v2929, %v2931
      %2943 = vadd.xlane.f32.xlu0 %v2942
      %v2944 = vpop.xlane.xlu0 %2943
      %v2945 = vadd.f32 %v2933, %v2935
      %2946 = vadd.xlane.f32.xlu0 %v2945
      %v2947 = vpop.xlane.xlu0 %2946
      %v2948 = vrcp.pop %v2938
      %v2949 = vrcp.pop %v2941
      %v2950 = vrcp.pop %v2944
      %v2951 = vrcp.pop %v2947
      %v2952 = vmul.f32 %v2921, %v2948
      %v2953 = vmul.f32 %v2923, %v2948
      %v2954 = vmul.f32 %v2925, %v2949
      %v2955 = vmul.f32 %v2927, %v2949
      %v2956 = vmul.f32 %v2929, %v2950
      %v2957 = vmul.f32 %v2931, %v2950
      %v2958 = vmul.f32 %v2933, %v2951
      %v2959 = vmul.f32 %v2935, %v2951
      %v2960 = vpack.c.bf16 %v2954, %v2952
      %v2961 = vpack.c.bf16 %v2955, %v2953
      %v2962 = vpack.c.bf16 %v2958, %v2956
      %v2963 = vpack.c.bf16 %v2959, %v2957
      %2964 = vmatprep.subr.bf16.mxu0 0
      %2965 = vmatpush1.bf16.msra.mxu0 %v375
      %2966 = vmatprep.subr.bf16.mxu0 0
      %2967 = vmatpush1.bf16.msra.mxu0 %v374
      %2968 = vmatprep.subr.bf16.mxu0 0
      %2969 = vmatpush1.bf16.msra.mxu0 %v373
      %2970 = vmatprep.subr.bf16.mxu0 0
      %2971 = vmatpush1.bf16.msra.mxu0 %v372
      %2972 = vmatprep.subr.bf16.mxu0 0
      %2973 = vmatpush1.bf16.msra.mxu0 %v371
      %2974 = vmatprep.subr.bf16.mxu0 0
      %2975 = vmatpush1.bf16.msra.mxu0 %v370
      %2976 = vmatprep.subr.bf16.mxu0 0
      %2977 = vmatpush1.bf16.msra.mxu0 %v369
      %2978 = vmatprep.subr.bf16.mxu0 0
      %2979 = vmatpush1.bf16.msra.mxu0 %v368
      %2980 = vmatprep.subr.bf16.mxu0 0
      %2981 = vmatpush2.bf16.msra.mxu0 %v383
      %2982 = vmatprep.subr.bf16.mxu0 0
      %2983 = vmatpush2.bf16.msra.mxu0 %v382
      %2984 = vmatprep.subr.bf16.mxu0 0
      %2985 = vmatpush2.bf16.msra.mxu0 %v381
      %2986 = vmatprep.subr.bf16.mxu0 0
      %2987 = vmatpush2.bf16.msra.mxu0 %v380
      %2988 = vmatprep.subr.bf16.mxu0 0
      %2989 = vmatpush2.bf16.msra.mxu0 %v379
      %2990 = vmatprep.subr.bf16.mxu0 0
      %2991 = vmatpush2.bf16.msra.mxu0 %v378
      %2992 = vmatprep.subr.bf16.mxu0 0
      %2993 = vmatpush2.bf16.msra.mxu0 %v377
      %2994 = vmatprep.subr.bf16.mxu0 0
      %2995 = vmatpush2.bf16.msra.mxu0 %v376
      %2996 = vmatprep.mubr.bf16.mxu0 %v2961
      %2997 = vmatmul.mubr.bf16.gmra.mxu0 %v2960
      %v2998 = vpop.f32.mrf.mxu0
      %v2999 = vadd.f32 0.0, %v2998
      %v3000 = vpop.f32.mrf.mxu0
      %v3001 = vpop.f32.mrf.mxu0
      %v3002 = vadd.f32 0.0, %v3001
      %v3003 = vpop.f32.mrf.mxu0
      %3004 = vmatprep.mubr.bf16.mxu0 %v2963
      %3005 = vmatmul.mubr.bf16.gmra.mxu0 %v2962
      %v3006 = vpop.f32.mrf.mxu0
      %v3007 = vadd.f32 0.0, %v3006
      %v3008 = vpop.f32.mrf.mxu0
      %v3009 = vpop.f32.mrf.mxu0
      %v3010 = vadd.f32 0.0, %v3009
      %v3011 = vpop.f32.mrf.mxu0
      %3012 = vdwg.mxu0
      %v3013 = vpack.c.bf16 %v3002, %v2999
      %v3014 = vpack.c.bf16 %v3010, %v3007
      %3015 = vmatprep.subr.bf16.mxu0 0
      %3016 = vmatpush1.bf16.msra.mxu0 0
      %3017 = vmatprep.subr.bf16.mxu0 0
      %3018 = vmatpush1.bf16.msra.mxu0 0
      %3019 = vmatprep.subr.bf16.mxu0 0
      %3020 = vmatpush1.bf16.msra.mxu0 0
      %3021 = vmatprep.subr.bf16.mxu0 0
      %3022 = vmatpush1.bf16.msra.mxu0 0
      %3023 = vmatprep.subr.bf16.mxu0 0
      %3024 = vmatpush1.bf16.msra.mxu0 0
      %3025 = vmatprep.subr.bf16.mxu0 0
      %3026 = vmatpush1.bf16.msra.mxu0 0
      %3027 = vmatprep.subr.bf16.mxu0 0
      %3028 = vmatpush1.bf16.msra.mxu0 %v3014
      %3029 = vmatprep.subr.bf16.mxu0 0
      %3030 = vmatpush1.bf16.msra.mxu0 %v3013
      %3031 = vmatprep.subr.bf16.mxu0 0
      %3032 = vmatpush2.bf16.msra.mxu0 0
      %3033 = vmatprep.subr.bf16.mxu0 0
      %3034 = vmatpush2.bf16.msra.mxu0 0
      %3035 = vmatprep.subr.bf16.mxu0 0
      %3036 = vmatpush2.bf16.msra.mxu0 0
      %3037 = vmatprep.subr.bf16.mxu0 0
      %3038 = vmatpush2.bf16.msra.mxu0 0
      %3039 = vmatprep.subr.bf16.mxu0 0
      %3040 = vmatpush2.bf16.msra.mxu0 0
      %3041 = vmatprep.subr.bf16.mxu0 0
      %3042 = vmatpush2.bf16.msra.mxu0 0
      %3043 = vmatprep.subr.bf16.mxu0 0
      %3044 = vmatpush2.bf16.msra.mxu0 0
      %3045 = vmatprep.subr.bf16.mxu0 0
      %3046 = vmatpush2.bf16.msra.mxu0 0
      %3047 = vmatprep.mubr.bf16.mxu0 0
      %3048 = vmatmul.mubr.bf16.gmra.mxu0 %v561
      %v3049 = vpop.f32.mrf.mxu0
      %v3050 = vadd.f32 0.0, %v3049
      %v3051 = vpop.f32.mrf.mxu0
      %v3052 = vpop.f32.mrf.mxu0
      %v3053 = vpop.f32.mrf.mxu0
      %3054 = vdwg.mxu0
      %3056 = vrot.lane.b32.xlu0 %v3050, 48
      %v3057 = vpop.permute.xlu0 %3056
      %3059 = vst.msk [vmem:[%s170 + $0x8] sm:$0xff] %vm1276, %v3057
      %3060 = vrot.lane.b32.xlu0 %v299, 64
      %v3061 = vpop.permute.xlu0 %3060
      %3062 = vrot.lane.b32.xlu0 %v301, 64
      %v3063 = vpop.permute.xlu0 %3062
      %v3065 = vsel %vm384, %v3061, 0
      %v3068 = vsel %vm384, %v3063, 0
      %3070 = vmatprep.subr.bf16.mxu0 0
      %3071 = vmatpush1.bf16.msra.mxu0 0
      %3072 = vmatprep.subr.bf16.mxu0 0
      %3073 = vmatpush1.bf16.msra.mxu0 0
      %3074 = vmatprep.subr.bf16.mxu0 0
      %3075 = vmatpush1.bf16.msra.mxu0 0
      %3076 = vmatprep.subr.bf16.mxu0 0
      %3077 = vmatpush1.bf16.msra.mxu0 0
      %3078 = vmatprep.subr.bf16.mxu0 0
      %3079 = vmatpush1.bf16.msra.mxu0 0
      %3080 = vmatprep.subr.bf16.mxu0 0
      %3081 = vmatpush1.bf16.msra.mxu0 0
      %3082 = vmatprep.subr.bf16.mxu0 0
      %3083 = vmatpush1.bf16.msra.mxu0 0
      %3084 = vmatprep.subr.bf16.mxu0 %v303
      %3085 = vmatpush1.bf16.msra.mxu0 %v302
      %3086 = vmatprep.subr.bf16.mxu0 0
      %3087 = vmatpush2.bf16.msra.mxu0 0
      %3088 = vmatprep.subr.bf16.mxu0 0
      %3089 = vmatpush2.bf16.msra.mxu0 0
      %3090 = vmatprep.subr.bf16.mxu0 0
      %3091 = vmatpush2.bf16.msra.mxu0 0
      %3092 = vmatprep.subr.bf16.mxu0 0
      %3093 = vmatpush2.bf16.msra.mxu0 0
      %3094 = vmatprep.subr.bf16.mxu0 0
      %3095 = vmatpush2.bf16.msra.mxu0 0
      %3096 = vmatprep.subr.bf16.mxu0 0
      %3097 = vmatpush2.bf16.msra.mxu0 0
      %3098 = vmatprep.subr.bf16.mxu0 0
      %3099 = vmatpush2.bf16.msra.mxu0 0
      %3100 = vmatprep.subr.bf16.mxu0 0
      %3101 = vmatpush2.bf16.msra.mxu0 0
      %3102 = vmatprep.mubr.bf16.mxu0 0
      %3103 = vmatmul.mubr.bf16.gmra.mxu0 %v3065
      %v3104 = vpop.f32.mrf.mxu0
      %v3105 = vadd.f32 0.0, %v3104
      %v3106 = vpop.f32.mrf.mxu0
      %v3107 = vadd.f32 0.0, %v3106
      %v3108 = vpop.f32.mrf.mxu0
      %v3109 = vadd.f32 0.0, %v3108
      %v3110 = vpop.f32.mrf.mxu0
      %v3111 = vadd.f32 0.0, %v3110
      %3112 = vmatprep.mubr.bf16.mxu0 0
      %3113 = vmatmul.mubr.bf16.gmra.mxu0 %v3068
      %v3114 = vpop.f32.mrf.mxu0
      %v3115 = vadd.f32 0.0, %v3114
      %v3116 = vpop.f32.mrf.mxu0
      %v3117 = vadd.f32 0.0, %v3116
      %v3118 = vpop.f32.mrf.mxu0
      %v3119 = vadd.f32 0.0, %v3118
      %v3120 = vpop.f32.mrf.mxu0
      %v3121 = vadd.f32 0.0, %v3120
      %3122 = vdwg.mxu0
      %v3123 = vmax.f32 %v3105, %v3107
      %3124 = vmax.xlane.f32.xlu0 %v3123
      %v3125 = vpop.xlane.xlu0 %3124
      %v3126 = vmax.f32 %v3109, %v3111
      %3127 = vmax.xlane.f32.xlu0 %v3126
      %v3128 = vpop.xlane.xlu0 %3127
      %v3129 = vmax.f32 %v3115, %v3117
      %3130 = vmax.xlane.f32.xlu0 %v3129
      %v3131 = vpop.xlane.xlu0 %3130
      %v3132 = vmax.f32 %v3119, %v3121
      %3133 = vmax.xlane.f32.xlu0 %v3132
      %v3134 = vpop.xlane.xlu0 %3133
      %v3135 = vsub.f32 %v3105, %v3125
      %v3136 = vsub.f32 %v3107, %v3125
      %v3137 = vsub.f32 %v3109, %v3128
      %v3138 = vsub.f32 %v3111, %v3128
      %v3139 = vsub.f32 %v3115, %v3131
      %v3140 = vsub.f32 %v3117, %v3131
      %v3141 = vsub.f32 %v3119, %v3134
      %v3142 = vsub.f32 %v3121, %v3134
      %v3143 = vmul.f32 %v3135, 1.442695
      %v3144 = vpow.pop %v3143
      %v3145 = vmul.f32 %v3136, 1.442695
      %v3146 = vpow.pop %v3145
      %v3147 = vmul.f32 %v3137, 1.442695
      %v3148 = vpow.pop %v3147
      %v3149 = vmul.f32 %v3138, 1.442695
      %v3150 = vpow.pop %v3149
      %v3151 = vmul.f32 %v3139, 1.442695
      %v3152 = vpow.pop %v3151
      %v3153 = vmul.f32 %v3140, 1.442695
      %v3154 = vpow.pop %v3153
      %v3155 = vmul.f32 %v3141, 1.442695
      %v3156 = vpow.pop %v3155
      %v3157 = vmul.f32 %v3142, 1.442695
      %v3158 = vpow.pop %v3157
      %v3159 = vadd.f32 %v3144, %v3146
      %3160 = vadd.xlane.f32.xlu0 %v3159
      %v3161 = vpop.xlane.xlu0 %3160
      %v3162 = vadd.f32 %v3148, %v3150
      %3163 = vadd.xlane.f32.xlu0 %v3162
      %v3164 = vpop.xlane.xlu0 %3163
      %v3165 = vadd.f32 %v3152, %v3154
      %3166 = vadd.xlane.f32.xlu0 %v3165
      %v3167 = vpop.xlane.xlu0 %3166
      %v3168 = vadd.f32 %v3156, %v3158
      %3169 = vadd.xlane.f32.xlu0 %v3168
      %v3170 = vpop.xlane.xlu0 %3169
      %v3171 = vrcp.pop %v3161
      %v3172 = vrcp.pop %v3164
      %v3173 = vrcp.pop %v3167
      %v3174 = vrcp.pop %v3170
      %v3175 = vmul.f32 %v3144, %v3171
      %v3176 = vmul.f32 %v3146, %v3171
      %v3177 = vmul.f32 %v3148, %v3172
      %v3178 = vmul.f32 %v3150, %v3172
      %v3179 = vmul.f32 %v3152, %v3173
      %v3180 = vmul.f32 %v3154, %v3173
      %v3181 = vmul.f32 %v3156, %v3174
      %v3182 = vmul.f32 %v3158, %v3174
      %v3183 = vpack.c.bf16 %v3177, %v3175
      %v3184 = vpack.c.bf16 %v3178, %v3176
      %v3185 = vpack.c.bf16 %v3181, %v3179
      %v3186 = vpack.c.bf16 %v3182, %v3180
      %3187 = vmatprep.subr.bf16.mxu0 0
      %3188 = vmatpush1.bf16.msra.mxu0 %v375
      %3189 = vmatprep.subr.bf16.mxu0 0
      %3190 = vmatpush1.bf16.msra.mxu0 %v374
      %3191 = vmatprep.subr.bf16.mxu0 0
      %3192 = vmatpush1.bf16.msra.mxu0 %v373
      %3193 = vmatprep.subr.bf16.mxu0 0
      %3194 = vmatpush1.bf16.msra.mxu0 %v372
      %3195 = vmatprep.subr.bf16.mxu0 0
      %3196 = vmatpush1.bf16.msra.mxu0 %v371
      %3197 = vmatprep.subr.bf16.mxu0 0
      %3198 = vmatpush1.bf16.msra.mxu0 %v370
      %3199 = vmatprep.subr.bf16.mxu0 0
      %3200 = vmatpush1.bf16.msra.mxu0 %v369
      %3201 = vmatprep.subr.bf16.mxu0 0
      %3202 = vmatpush1.bf16.msra.mxu0 %v368
      %3203 = vmatprep.subr.bf16.mxu0 0
      %3204 = vmatpush2.bf16.msra.mxu0 %v383
      %3205 = vmatprep.subr.bf16.mxu0 0
      %3206 = vmatpush2.bf16.msra.mxu0 %v382
      %3207 = vmatprep.subr.bf16.mxu0 0
      %3208 = vmatpush2.bf16.msra.mxu0 %v381
      %3209 = vmatprep.subr.bf16.mxu0 0
      %3210 = vmatpush2.bf16.msra.mxu0 %v380
      %3211 = vmatprep.subr.bf16.mxu0 0
      %3212 = vmatpush2.bf16.msra.mxu0 %v379
      %3213 = vmatprep.subr.bf16.mxu0 0
      %3214 = vmatpush2.bf16.msra.mxu0 %v378
      %3215 = vmatprep.subr.bf16.mxu0 0
      %3216 = vmatpush2.bf16.msra.mxu0 %v377
      %3217 = vmatprep.subr.bf16.mxu0 0
      %3218 = vmatpush2.bf16.msra.mxu0 %v376
      %3219 = vmatprep.mubr.bf16.mxu0 %v3184
      %3220 = vmatmul.mubr.bf16.gmra.mxu0 %v3183
      %v3221 = vpop.f32.mrf.mxu0
      %v3222 = vadd.f32 0.0, %v3221
      %v3223 = vpop.f32.mrf.mxu0
      %v3224 = vpop.f32.mrf.mxu0
      %v3225 = vadd.f32 0.0, %v3224
      %v3226 = vpop.f32.mrf.mxu0
      %3227 = vmatprep.mubr.bf16.mxu0 %v3186
      %3228 = vmatmul.mubr.bf16.gmra.mxu0 %v3185
      %v3229 = vpop.f32.mrf.mxu0
      %v3230 = vadd.f32 0.0, %v3229
      %v3231 = vpop.f32.mrf.mxu0
      %v3232 = vpop.f32.mrf.mxu0
      %v3233 = vadd.f32 0.0, %v3232
      %v3234 = vpop.f32.mrf.mxu0
      %3235 = vdwg.mxu0
      %v3236 = vpack.c.bf16 %v3225, %v3222
      %v3237 = vpack.c.bf16 %v3233, %v3230
      %3238 = vmatprep.subr.bf16.mxu0 0
      %3239 = vmatpush1.bf16.msra.mxu0 0
      %3240 = vmatprep.subr.bf16.mxu0 0
      %3241 = vmatpush1.bf16.msra.mxu0 0
      %3242 = vmatprep.subr.bf16.mxu0 0
      %3243 = vmatpush1.bf16.msra.mxu0 0
      %3244 = vmatprep.subr.bf16.mxu0 0
      %3245 = vmatpush1.bf16.msra.mxu0 0
      %3246 = vmatprep.subr.bf16.mxu0 0
      %3247 = vmatpush1.bf16.msra.mxu0 0
      %3248 = vmatprep.subr.bf16.mxu0 0
      %3249 = vmatpush1.bf16.msra.mxu0 0
      %3250 = vmatprep.subr.bf16.mxu0 0
      %3251 = vmatpush1.bf16.msra.mxu0 %v3237
      %3252 = vmatprep.subr.bf16.mxu0 0
      %3253 = vmatpush1.bf16.msra.mxu0 %v3236
      %3254 = vmatprep.subr.bf16.mxu0 0
      %3255 = vmatpush2.bf16.msra.mxu0 0
      %3256 = vmatprep.subr.bf16.mxu0 0
      %3257 = vmatpush2.bf16.msra.mxu0 0
      %3258 = vmatprep.subr.bf16.mxu0 0
      %3259 = vmatpush2.bf16.msra.mxu0 0
      %3260 = vmatprep.subr.bf16.mxu0 0
      %3261 = vmatpush2.bf16.msra.mxu0 0
      %3262 = vmatprep.subr.bf16.mxu0 0
      %3263 = vmatpush2.bf16.msra.mxu0 0
      %3264 = vmatprep.subr.bf16.mxu0 0
      %3265 = vmatpush2.bf16.msra.mxu0 0
      %3266 = vmatprep.subr.bf16.mxu0 0
      %3267 = vmatpush2.bf16.msra.mxu0 0
      %3268 = vmatprep.subr.bf16.mxu0 0
      %3269 = vmatpush2.bf16.msra.mxu0 0
      %3270 = vmatprep.mubr.bf16.mxu0 0
      %3271 = vmatmul.mubr.bf16.gmra.mxu0 %v561
      %v3272 = vpop.f32.mrf.mxu0
      %v3273 = vadd.f32 0.0, %v3272
      %v3274 = vpop.f32.mrf.mxu0
      %v3275 = vpop.f32.mrf.mxu0
      %v3276 = vpop.f32.mrf.mxu0
      %3277 = vdwg.mxu0
      %3279 = vrot.lane.b32.xlu0 %v3273, 64
      %v3280 = vpop.permute.xlu0 %3279
      %3282 = vst.msk [vmem:[%s170 + $0x8] sm:$0xff] %vm1500, %v3280
      %3283 = vrot.lane.b32.xlu0 %v299, 48
      %v3284 = vpop.permute.xlu0 %3283
      %3285 = vrot.lane.b32.xlu0 %v301, 48
      %v3286 = vpop.permute.xlu0 %3285
      %v3288 = vsel %vm384, %v3284, 0
      %v3291 = vsel %vm384, %v3286, 0
      %3293 = vmatprep.subr.bf16.mxu0 0
      %3294 = vmatpush1.bf16.msra.mxu0 0
      %3295 = vmatprep.subr.bf16.mxu0 0
      %3296 = vmatpush1.bf16.msra.mxu0 0
      %3297 = vmatprep.subr.bf16.mxu0 0
      %3298 = vmatpush1.bf16.msra.mxu0 0
      %3299 = vmatprep.subr.bf16.mxu0 0
      %3300 = vmatpush1.bf16.msra.mxu0 0
      %3301 = vmatprep.subr.bf16.mxu0 0
      %3302 = vmatpush1.bf16.msra.mxu0 0
      %3303 = vmatprep.subr.bf16.mxu0 0
      %3304 = vmatpush1.bf16.msra.mxu0 0
      %3305 = vmatprep.subr.bf16.mxu0 0
      %3306 = vmatpush1.bf16.msra.mxu0 0
      %3307 = vmatprep.subr.bf16.mxu0 %v303
      %3308 = vmatpush1.bf16.msra.mxu0 %v302
      %3309 = vmatprep.subr.bf16.mxu0 0
      %3310 = vmatpush2.bf16.msra.mxu0 0
      %3311 = vmatprep.subr.bf16.mxu0 0
      %3312 = vmatpush2.bf16.msra.mxu0 0
      %3313 = vmatprep.subr.bf16.mxu0 0
      %3314 = vmatpush2.bf16.msra.mxu0 0
      %3315 = vmatprep.subr.bf16.mxu0 0
      %3316 = vmatpush2.bf16.msra.mxu0 0
      %3317 = vmatprep.subr.bf16.mxu0 0
      %3318 = vmatpush2.bf16.msra.mxu0 0
      %3319 = vmatprep.subr.bf16.mxu0 0
      %3320 = vmatpush2.bf16.msra.mxu0 0
      %3321 = vmatprep.subr.bf16.mxu0 0
      %3322 = vmatpush2.bf16.msra.mxu0 0
      %3323 = vmatprep.subr.bf16.mxu0 0
      %3324 = vmatpush2.bf16.msra.mxu0 0
      %3325 = vmatprep.mubr.bf16.mxu0 0
      %3326 = vmatmul.mubr.bf16.gmra.mxu0 %v3288
      %v3327 = vpop.f32.mrf.mxu0
      %v3328 = vadd.f32 0.0, %v3327
      %v3329 = vpop.f32.mrf.mxu0
      %v3330 = vadd.f32 0.0, %v3329
      %v3331 = vpop.f32.mrf.mxu0
      %v3332 = vadd.f32 0.0, %v3331
      %v3333 = vpop.f32.mrf.mxu0
      %v3334 = vadd.f32 0.0, %v3333
      %3335 = vmatprep.mubr.bf16.mxu0 0
      %3336 = vmatmul.mubr.bf16.gmra.mxu0 %v3291
      %v3337 = vpop.f32.mrf.mxu0
      %v3338 = vadd.f32 0.0, %v3337
      %v3339 = vpop.f32.mrf.mxu0
      %v3340 = vadd.f32 0.0, %v3339
      %v3341 = vpop.f32.mrf.mxu0
      %v3342 = vadd.f32 0.0, %v3341
      %v3343 = vpop.f32.mrf.mxu0
      %v3344 = vadd.f32 0.0, %v3343
      %3345 = vdwg.mxu0
      %v3346 = vmax.f32 %v3328, %v3330
      %3347 = vmax.xlane.f32.xlu0 %v3346
      %v3348 = vpop.xlane.xlu0 %3347
      %v3349 = vmax.f32 %v3332, %v3334
      %3350 = vmax.xlane.f32.xlu0 %v3349
      %v3351 = vpop.xlane.xlu0 %3350
      %v3352 = vmax.f32 %v3338, %v3340
      %3353 = vmax.xlane.f32.xlu0 %v3352
      %v3354 = vpop.xlane.xlu0 %3353
      %v3355 = vmax.f32 %v3342, %v3344
      %3356 = vmax.xlane.f32.xlu0 %v3355
      %v3357 = vpop.xlane.xlu0 %3356
      %v3358 = vsub.f32 %v3328, %v3348
      %v3359 = vsub.f32 %v3330, %v3348
      %v3360 = vsub.f32 %v3332, %v3351
      %v3361 = vsub.f32 %v3334, %v3351
      %v3362 = vsub.f32 %v3338, %v3354
      %v3363 = vsub.f32 %v3340, %v3354
      %v3364 = vsub.f32 %v3342, %v3357
      %v3365 = vsub.f32 %v3344, %v3357
      %v3366 = vmul.f32 %v3358, 1.442695
      %v3367 = vpow.pop %v3366
      %v3368 = vmul.f32 %v3359, 1.442695
      %v3369 = vpow.pop %v3368
      %v3370 = vmul.f32 %v3360, 1.442695
      %v3371 = vpow.pop %v3370
      %v3372 = vmul.f32 %v3361, 1.442695
      %v3373 = vpow.pop %v3372
      %v3374 = vmul.f32 %v3362, 1.442695
      %v3375 = vpow.pop %v3374
      %v3376 = vmul.f32 %v3363, 1.442695
      %v3377 = vpow.pop %v3376
      %v3378 = vmul.f32 %v3364, 1.442695
      %v3379 = vpow.pop %v3378
      %v3380 = vmul.f32 %v3365, 1.442695
      %v3381 = vpow.pop %v3380
      %v3382 = vadd.f32 %v3367, %v3369
      %3383 = vadd.xlane.f32.xlu0 %v3382
      %v3384 = vpop.xlane.xlu0 %3383
      %v3385 = vadd.f32 %v3371, %v3373
      %3386 = vadd.xlane.f32.xlu0 %v3385
      %v3387 = vpop.xlane.xlu0 %3386
      %v3388 = vadd.f32 %v3375, %v3377
      %3389 = vadd.xlane.f32.xlu0 %v3388
      %v3390 = vpop.xlane.xlu0 %3389
      %v3391 = vadd.f32 %v3379, %v3381
      %3392 = vadd.xlane.f32.xlu0 %v3391
      %v3393 = vpop.xlane.xlu0 %3392
      %v3394 = vrcp.pop %v3384
      %v3395 = vrcp.pop %v3387
      %v3396 = vrcp.pop %v3390
      %v3397 = vrcp.pop %v3393
      %v3398 = vmul.f32 %v3367, %v3394
      %v3399 = vmul.f32 %v3369, %v3394
      %v3400 = vmul.f32 %v3371, %v3395
      %v3401 = vmul.f32 %v3373, %v3395
      %v3402 = vmul.f32 %v3375, %v3396
      %v3403 = vmul.f32 %v3377, %v3396
      %v3404 = vmul.f32 %v3379, %v3397
      %v3405 = vmul.f32 %v3381, %v3397
      %v3406 = vpack.c.bf16 %v3400, %v3398
      %v3407 = vpack.c.bf16 %v3401, %v3399
      %v3408 = vpack.c.bf16 %v3404, %v3402
      %v3409 = vpack.c.bf16 %v3405, %v3403
      %3410 = vmatprep.subr.bf16.mxu0 0
      %3411 = vmatpush1.bf16.msra.mxu0 %v375
      %3412 = vmatprep.subr.bf16.mxu0 0
      %3413 = vmatpush1.bf16.msra.mxu0 %v374
      %3414 = vmatprep.subr.bf16.mxu0 0
      %3415 = vmatpush1.bf16.msra.mxu0 %v373
      %3416 = vmatprep.subr.bf16.mxu0 0
      %3417 = vmatpush1.bf16.msra.mxu0 %v372
      %3418 = vmatprep.subr.bf16.mxu0 0
      %3419 = vmatpush1.bf16.msra.mxu0 %v371
      %3420 = vmatprep.subr.bf16.mxu0 0
      %3421 = vmatpush1.bf16.msra.mxu0 %v370
      %3422 = vmatprep.subr.bf16.mxu0 0
      %3423 = vmatpush1.bf16.msra.mxu0 %v369
      %3424 = vmatprep.subr.bf16.mxu0 0
      %3425 = vmatpush1.bf16.msra.mxu0 %v368
      %3426 = vmatprep.subr.bf16.mxu0 0
      %3427 = vmatpush2.bf16.msra.mxu0 %v383
      %3428 = vmatprep.subr.bf16.mxu0 0
      %3429 = vmatpush2.bf16.msra.mxu0 %v382
      %3430 = vmatprep.subr.bf16.mxu0 0
      %3431 = vmatpush2.bf16.msra.mxu0 %v381
      %3432 = vmatprep.subr.bf16.mxu0 0
      %3433 = vmatpush2.bf16.msra.mxu0 %v380
      %3434 = vmatprep.subr.bf16.mxu0 0
      %3435 = vmatpush2.bf16.msra.mxu0 %v379
      %3436 = vmatprep.subr.bf16.mxu0 0
      %3437 = vmatpush2.bf16.msra.mxu0 %v378
      %3438 = vmatprep.subr.bf16.mxu0 0
      %3439 = vmatpush2.bf16.msra.mxu0 %v377
      %3440 = vmatprep.subr.bf16.mxu0 0
      %3441 = vmatpush2.bf16.msra.mxu0 %v376
      %3442 = vmatprep.mubr.bf16.mxu0 %v3407
      %3443 = vmatmul.mubr.bf16.gmra.mxu0 %v3406
      %v3444 = vpop.f32.mrf.mxu0
      %v3445 = vadd.f32 0.0, %v3444
      %v3446 = vpop.f32.mrf.mxu0
      %v3447 = vpop.f32.mrf.mxu0
      %v3448 = vadd.f32 0.0, %v3447
      %v3449 = vpop.f32.mrf.mxu0
      %3450 = vmatprep.mubr.bf16.mxu0 %v3409
      %3451 = vmatmul.mubr.bf16.gmra.mxu0 %v3408
      %v3452 = vpop.f32.mrf.mxu0
      %v3453 = vadd.f32 0.0, %v3452
      %v3454 = vpop.f32.mrf.mxu0
      %v3455 = vpop.f32.mrf.mxu0
      %v3456 = vadd.f32 0.0, %v3455
      %v3457 = vpop.f32.mrf.mxu0
      %3458 = vdwg.mxu0
      %v3459 = vpack.c.bf16 %v3448, %v3445
      %v3460 = vpack.c.bf16 %v3456, %v3453
      %3461 = vmatprep.subr.bf16.mxu0 0
      %3462 = vmatpush1.bf16.msra.mxu0 0
      %3463 = vmatprep.subr.bf16.mxu0 0
      %3464 = vmatpush1.bf16.msra.mxu0 0
      %3465 = vmatprep.subr.bf16.mxu0 0
      %3466 = vmatpush1.bf16.msra.mxu0 0
      %3467 = vmatprep.subr.bf16.mxu0 0
      %3468 = vmatpush1.bf16.msra.mxu0 0
      %3469 = vmatprep.subr.bf16.mxu0 0
      %3470 = vmatpush1.bf16.msra.mxu0 0
      %3471 = vmatprep.subr.bf16.mxu0 0
      %3472 = vmatpush1.bf16.msra.mxu0 0
      %3473 = vmatprep.subr.bf16.mxu0 0
      %3474 = vmatpush1.bf16.msra.mxu0 %v3460
      %3475 = vmatprep.subr.bf16.mxu0 0
      %3476 = vmatpush1.bf16.msra.mxu0 %v3459
      %3477 = vmatprep.subr.bf16.mxu0 0
      %3478 = vmatpush2.bf16.msra.mxu0 0
      %3479 = vmatprep.subr.bf16.mxu0 0
      %3480 = vmatpush2.bf16.msra.mxu0 0
      %3481 = vmatprep.subr.bf16.mxu0 0
      %3482 = vmatpush2.bf16.msra.mxu0 0
      %3483 = vmatprep.subr.bf16.mxu0 0
      %3484 = vmatpush2.bf16.msra.mxu0 0
      %3485 = vmatprep.subr.bf16.mxu0 0
      %3486 = vmatpush2.bf16.msra.mxu0 0
      %3487 = vmatprep.subr.bf16.mxu0 0
      %3488 = vmatpush2.bf16.msra.mxu0 0
      %3489 = vmatprep.subr.bf16.mxu0 0
      %3490 = vmatpush2.bf16.msra.mxu0 0
      %3491 = vmatprep.subr.bf16.mxu0 0
      %3492 = vmatpush2.bf16.msra.mxu0 0
      %3493 = vmatprep.mubr.bf16.mxu0 0
      %3494 = vmatmul.mubr.bf16.gmra.mxu0 %v561
      %v3495 = vpop.f32.mrf.mxu0
      %v3496 = vadd.f32 0.0, %v3495
      %v3497 = vpop.f32.mrf.mxu0
      %v3498 = vpop.f32.mrf.mxu0
      %v3499 = vpop.f32.mrf.mxu0
      %3500 = vdwg.mxu0
      %3502 = vrot.lane.b32.xlu0 %v3496, 80
      %v3503 = vpop.permute.xlu0 %3502
      %3505 = vst.msk [vmem:[%s170 + $0x8] sm:$0xff] %vm1724, %v3503
      %3506 = vrot.lane.b32.xlu0 %v299, 32
      %v3507 = vpop.permute.xlu0 %3506
      %3508 = vrot.lane.b32.xlu0 %v301, 32
      %v3509 = vpop.permute.xlu0 %3508
      %v3511 = vsel %vm384, %v3507, 0
      %v3514 = vsel %vm384, %v3509, 0
      %3516 = vmatprep.subr.bf16.mxu0 0
      %3517 = vmatpush1.bf16.msra.mxu0 0
      %3518 = vmatprep.subr.bf16.mxu0 0
      %3519 = vmatpush1.bf16.msra.mxu0 0
      %3520 = vmatprep.subr.bf16.mxu0 0
      %3521 = vmatpush1.bf16.msra.mxu0 0
      %3522 = vmatprep.subr.bf16.mxu0 0
      %3523 = vmatpush1.bf16.msra.mxu0 0
      %3524 = vmatprep.subr.bf16.mxu0 0
      %3525 = vmatpush1.bf16.msra.mxu0 0
      %3526 = vmatprep.subr.bf16.mxu0 0
      %3527 = vmatpush1.bf16.msra.mxu0 0
      %3528 = vmatprep.subr.bf16.mxu0 0
      %3529 = vmatpush1.bf16.msra.mxu0 0
      %3530 = vmatprep.subr.bf16.mxu0 %v303
      %3531 = vmatpush1.bf16.msra.mxu0 %v302
      %3532 = vmatprep.subr.bf16.mxu0 0
      %3533 = vmatpush2.bf16.msra.mxu0 0
      %3534 = vmatprep.subr.bf16.mxu0 0
      %3535 = vmatpush2.bf16.msra.mxu0 0
      %3536 = vmatprep.subr.bf16.mxu0 0
      %3537 = vmatpush2.bf16.msra.mxu0 0
      %3538 = vmatprep.subr.bf16.mxu0 0
      %3539 = vmatpush2.bf16.msra.mxu0 0
      %3540 = vmatprep.subr.bf16.mxu0 0
      %3541 = vmatpush2.bf16.msra.mxu0 0
      %3542 = vmatprep.subr.bf16.mxu0 0
      %3543 = vmatpush2.bf16.msra.mxu0 0
      %3544 = vmatprep.subr.bf16.mxu0 0
      %3545 = vmatpush2.bf16.msra.mxu0 0
      %3546 = vmatprep.subr.bf16.mxu0 0
      %3547 = vmatpush2.bf16.msra.mxu0 0
      %3548 = vmatprep.mubr.bf16.mxu0 0
      %3549 = vmatmul.mubr.bf16.gmra.mxu0 %v3511
      %v3550 = vpop.f32.mrf.mxu0
      %v3551 = vadd.f32 0.0, %v3550
      %v3552 = vpop.f32.mrf.mxu0
      %v3553 = vadd.f32 0.0, %v3552
      %v3554 = vpop.f32.mrf.mxu0
      %v3555 = vadd.f32 0.0, %v3554
      %v3556 = vpop.f32.mrf.mxu0
      %v3557 = vadd.f32 0.0, %v3556
      %3558 = vmatprep.mubr.bf16.mxu0 0
      %3559 = vmatmul.mubr.bf16.gmra.mxu0 %v3514
      %v3560 = vpop.f32.mrf.mxu0
      %v3561 = vadd.f32 0.0, %v3560
      %v3562 = vpop.f32.mrf.mxu0
      %v3563 = vadd.f32 0.0, %v3562
      %v3564 = vpop.f32.mrf.mxu0
      %v3565 = vadd.f32 0.0, %v3564
      %v3566 = vpop.f32.mrf.mxu0
      %v3567 = vadd.f32 0.0, %v3566
      %3568 = vdwg.mxu0
      %v3569 = vmax.f32 %v3551, %v3553
      %3570 = vmax.xlane.f32.xlu0 %v3569
      %v3571 = vpop.xlane.xlu0 %3570
      %v3572 = vmax.f32 %v3555, %v3557
      %3573 = vmax.xlane.f32.xlu0 %v3572
      %v3574 = vpop.xlane.xlu0 %3573
      %v3575 = vmax.f32 %v3561, %v3563
      %3576 = vmax.xlane.f32.xlu0 %v3575
      %v3577 = vpop.xlane.xlu0 %3576
      %v3578 = vmax.f32 %v3565, %v3567
      %3579 = vmax.xlane.f32.xlu0 %v3578
      %v3580 = vpop.xlane.xlu0 %3579
      %v3581 = vsub.f32 %v3551, %v3571
      %v3582 = vsub.f32 %v3553, %v3571
      %v3583 = vsub.f32 %v3555, %v3574
      %v3584 = vsub.f32 %v3557, %v3574
      %v3585 = vsub.f32 %v3561, %v3577
      %v3586 = vsub.f32 %v3563, %v3577
      %v3587 = vsub.f32 %v3565, %v3580
      %v3588 = vsub.f32 %v3567, %v3580
      %v3589 = vmul.f32 %v3581, 1.442695
      %v3590 = vpow.pop %v3589
      %v3591 = vmul.f32 %v3582, 1.442695
      %v3592 = vpow.pop %v3591
      %v3593 = vmul.f32 %v3583, 1.442695
      %v3594 = vpow.pop %v3593
      %v3595 = vmul.f32 %v3584, 1.442695
      %v3596 = vpow.pop %v3595
      %v3597 = vmul.f32 %v3585, 1.442695
      %v3598 = vpow.pop %v3597
      %v3599 = vmul.f32 %v3586, 1.442695
      %v3600 = vpow.pop %v3599
      %v3601 = vmul.f32 %v3587, 1.442695
      %v3602 = vpow.pop %v3601
      %v3603 = vmul.f32 %v3588, 1.442695
      %v3604 = vpow.pop %v3603
      %v3605 = vadd.f32 %v3590, %v3592
      %3606 = vadd.xlane.f32.xlu0 %v3605
      %v3607 = vpop.xlane.xlu0 %3606
      %v3608 = vadd.f32 %v3594, %v3596
      %3609 = vadd.xlane.f32.xlu0 %v3608
      %v3610 = vpop.xlane.xlu0 %3609
      %v3611 = vadd.f32 %v3598, %v3600
      %3612 = vadd.xlane.f32.xlu0 %v3611
      %v3613 = vpop.xlane.xlu0 %3612
      %v3614 = vadd.f32 %v3602, %v3604
      %3615 = vadd.xlane.f32.xlu0 %v3614
      %v3616 = vpop.xlane.xlu0 %3615
      %v3617 = vrcp.pop %v3607
      %v3618 = vrcp.pop %v3610
      %v3619 = vrcp.pop %v3613
      %v3620 = vrcp.pop %v3616
      %v3621 = vmul.f32 %v3590, %v3617
      %v3622 = vmul.f32 %v3592, %v3617
      %v3623 = vmul.f32 %v3594, %v3618
      %v3624 = vmul.f32 %v3596, %v3618
      %v3625 = vmul.f32 %v3598, %v3619
      %v3626 = vmul.f32 %v3600, %v3619
      %v3627 = vmul.f32 %v3602, %v3620
      %v3628 = vmul.f32 %v3604, %v3620
      %v3629 = vpack.c.bf16 %v3623, %v3621
      %v3630 = vpack.c.bf16 %v3624, %v3622
      %v3631 = vpack.c.bf16 %v3627, %v3625
      %v3632 = vpack.c.bf16 %v3628, %v3626
      %3633 = vmatprep.subr.bf16.mxu0 0
      %3634 = vmatpush1.bf16.msra.mxu0 %v375
      %3635 = vmatprep.subr.bf16.mxu0 0
      %3636 = vmatpush1.bf16.msra.mxu0 %v374
      %3637 = vmatprep.subr.bf16.mxu0 0
      %3638 = vmatpush1.bf16.msra.mxu0 %v373
      %3639 = vmatprep.subr.bf16.mxu0 0
      %3640 = vmatpush1.bf16.msra.mxu0 %v372
      %3641 = vmatprep.subr.bf16.mxu0 0
      %3642 = vmatpush1.bf16.msra.mxu0 %v371
      %3643 = vmatprep.subr.bf16.mxu0 0
      %3644 = vmatpush1.bf16.msra.mxu0 %v370
      %3645 = vmatprep.subr.bf16.mxu0 0
      %3646 = vmatpush1.bf16.msra.mxu0 %v369
      %3647 = vmatprep.subr.bf16.mxu0 0
      %3648 = vmatpush1.bf16.msra.mxu0 %v368
      %3649 = vmatprep.subr.bf16.mxu0 0
      %3650 = vmatpush2.bf16.msra.mxu0 %v383
      %3651 = vmatprep.subr.bf16.mxu0 0
      %3652 = vmatpush2.bf16.msra.mxu0 %v382
      %3653 = vmatprep.subr.bf16.mxu0 0
      %3654 = vmatpush2.bf16.msra.mxu0 %v381
      %3655 = vmatprep.subr.bf16.mxu0 0
      %3656 = vmatpush2.bf16.msra.mxu0 %v380
      %3657 = vmatprep.subr.bf16.mxu0 0
      %3658 = vmatpush2.bf16.msra.mxu0 %v379
      %3659 = vmatprep.subr.bf16.mxu0 0
      %3660 = vmatpush2.bf16.msra.mxu0 %v378
      %3661 = vmatprep.subr.bf16.mxu0 0
      %3662 = vmatpush2.bf16.msra.mxu0 %v377
      %3663 = vmatprep.subr.bf16.mxu0 0
      %3664 = vmatpush2.bf16.msra.mxu0 %v376
      %3665 = vmatprep.mubr.bf16.mxu0 %v3630
      %3666 = vmatmul.mubr.bf16.gmra.mxu0 %v3629
      %v3667 = vpop.f32.mrf.mxu0
      %v3668 = vadd.f32 0.0, %v3667
      %v3669 = vpop.f32.mrf.mxu0
      %v3670 = vpop.f32.mrf.mxu0
      %v3671 = vadd.f32 0.0, %v3670
      %v3672 = vpop.f32.mrf.mxu0
      %3673 = vmatprep.mubr.bf16.mxu0 %v3632
      %3674 = vmatmul.mubr.bf16.gmra.mxu0 %v3631
      %v3675 = vpop.f32.mrf.mxu0
      %v3676 = vadd.f32 0.0, %v3675
      %v3677 = vpop.f32.mrf.mxu0
      %v3678 = vpop.f32.mrf.mxu0
      %v3679 = vadd.f32 0.0, %v3678
      %v3680 = vpop.f32.mrf.mxu0
      %3681 = vdwg.mxu0
      %v3682 = vpack.c.bf16 %v3671, %v3668
      %v3683 = vpack.c.bf16 %v3679, %v3676
      %3684 = vmatprep.subr.bf16.mxu0 0
      %3685 = vmatpush1.bf16.msra.mxu0 0
      %3686 = vmatprep.subr.bf16.mxu0 0
      %3687 = vmatpush1.bf16.msra.mxu0 0
      %3688 = vmatprep.subr.bf16.mxu0 0
      %3689 = vmatpush1.bf16.msra.mxu0 0
      %3690 = vmatprep.subr.bf16.mxu0 0
      %3691 = vmatpush1.bf16.msra.mxu0 0
      %3692 = vmatprep.subr.bf16.mxu0 0
      %3693 = vmatpush1.bf16.msra.mxu0 0
      %3694 = vmatprep.subr.bf16.mxu0 0
      %3695 = vmatpush1.bf16.msra.mxu0 0
      %3696 = vmatprep.subr.bf16.mxu0 0
      %3697 = vmatpush1.bf16.msra.mxu0 %v3683
      %3698 = vmatprep.subr.bf16.mxu0 0
      %3699 = vmatpush1.bf16.msra.mxu0 %v3682
      %3700 = vmatprep.subr.bf16.mxu0 0
      %3701 = vmatpush2.bf16.msra.mxu0 0
      %3702 = vmatprep.subr.bf16.mxu0 0
      %3703 = vmatpush2.bf16.msra.mxu0 0
      %3704 = vmatprep.subr.bf16.mxu0 0
      %3705 = vmatpush2.bf16.msra.mxu0 0
      %3706 = vmatprep.subr.bf16.mxu0 0
      %3707 = vmatpush2.bf16.msra.mxu0 0
      %3708 = vmatprep.subr.bf16.mxu0 0
      %3709 = vmatpush2.bf16.msra.mxu0 0
      %3710 = vmatprep.subr.bf16.mxu0 0
      %3711 = vmatpush2.bf16.msra.mxu0 0
      %3712 = vmatprep.subr.bf16.mxu0 0
      %3713 = vmatpush2.bf16.msra.mxu0 0
      %3714 = vmatprep.subr.bf16.mxu0 0
      %3715 = vmatpush2.bf16.msra.mxu0 0
      %3716 = vmatprep.mubr.bf16.mxu0 0
      %3717 = vmatmul.mubr.bf16.gmra.mxu0 %v561
      %v3718 = vpop.f32.mrf.mxu0
      %v3719 = vadd.f32 0.0, %v3718
      %v3720 = vpop.f32.mrf.mxu0
      %v3721 = vpop.f32.mrf.mxu0
      %v3722 = vpop.f32.mrf.mxu0
      %3723 = vdwg.mxu0
      %3725 = vrot.lane.b32.xlu0 %v3719, 96
      %v3726 = vpop.permute.xlu0 %3725
      %3728 = vst.msk [vmem:[%s170 + $0x8] sm:$0xff] %vm1948, %v3726
      %3729 = vrot.lane.b32.xlu0 %v299, 16
      %v3730 = vpop.permute.xlu0 %3729
      %3731 = vrot.lane.b32.xlu0 %v301, 16
      %v3732 = vpop.permute.xlu0 %3731
      %v3734 = vsel %vm384, %v3730, 0
      %v3737 = vsel %vm384, %v3732, 0
      %3739 = vmatprep.subr.bf16.mxu0 0
      %3740 = vmatpush1.bf16.msra.mxu0 0
      %3741 = vmatprep.subr.bf16.mxu0 0
      %3742 = vmatpush1.bf16.msra.mxu0 0
      %3743 = vmatprep.subr.bf16.mxu0 0
      %3744 = vmatpush1.bf16.msra.mxu0 0
      %3745 = vmatprep.subr.bf16.mxu0 0
      %3746 = vmatpush1.bf16.msra.mxu0 0
      %3747 = vmatprep.subr.bf16.mxu0 0
      %3748 = vmatpush1.bf16.msra.mxu0 0
      %3749 = vmatprep.subr.bf16.mxu0 0
      %3750 = vmatpush1.bf16.msra.mxu0 0
      %3751 = vmatprep.subr.bf16.mxu0 0
      %3752 = vmatpush1.bf16.msra.mxu0 0
      %3753 = vmatprep.subr.bf16.mxu0 %v303
      %3754 = vmatpush1.bf16.msra.mxu0 %v302
      %3755 = vmatprep.subr.bf16.mxu0 0
      %3756 = vmatpush2.bf16.msra.mxu0 0
      %3757 = vmatprep.subr.bf16.mxu0 0
      %3758 = vmatpush2.bf16.msra.mxu0 0
      %3759 = vmatprep.subr.bf16.mxu0 0
      %3760 = vmatpush2.bf16.msra.mxu0 0
      %3761 = vmatprep.subr.bf16.mxu0 0
      %3762 = vmatpush2.bf16.msra.mxu0 0
      %3763 = vmatprep.subr.bf16.mxu0 0
      %3764 = vmatpush2.bf16.msra.mxu0 0
      %3765 = vmatprep.subr.bf16.mxu0 0
      %3766 = vmatpush2.bf16.msra.mxu0 0
      %3767 = vmatprep.subr.bf16.mxu0 0
      %3768 = vmatpush2.bf16.msra.mxu0 0
      %3769 = vmatprep.subr.bf16.mxu0 0
      %3770 = vmatpush2.bf16.msra.mxu0 0
      %3771 = vmatprep.mubr.bf16.mxu0 0
      %3772 = vmatmul.mubr.bf16.gmra.mxu0 %v3734
      %v3773 = vpop.f32.mrf.mxu0
      %v3774 = vadd.f32 0.0, %v3773
      %v3775 = vpop.f32.mrf.mxu0
      %v3776 = vadd.f32 0.0, %v3775
      %v3777 = vpop.f32.mrf.mxu0
      %v3778 = vadd.f32 0.0, %v3777
      %v3779 = vpop.f32.mrf.mxu0
      %v3780 = vadd.f32 0.0, %v3779
      %3781 = vmatprep.mubr.bf16.mxu0 0
      %3782 = vmatmul.mubr.bf16.gmra.mxu0 %v3737
      %v3783 = vpop.f32.mrf.mxu0
      %v3784 = vadd.f32 0.0, %v3783
      %v3785 = vpop.f32.mrf.mxu0
      %v3786 = vadd.f32 0.0, %v3785
      %v3787 = vpop.f32.mrf.mxu0
      %v3788 = vadd.f32 0.0, %v3787
      %v3789 = vpop.f32.mrf.mxu0
      %v3790 = vadd.f32 0.0, %v3789
      %3791 = vdwg.mxu0
      %v3792 = vmax.f32 %v3774, %v3776
      %3793 = vmax.xlane.f32.xlu0 %v3792
      %v3794 = vpop.xlane.xlu0 %3793
      %v3795 = vmax.f32 %v3778, %v3780
      %3796 = vmax.xlane.f32.xlu0 %v3795
      %v3797 = vpop.xlane.xlu0 %3796
      %v3798 = vmax.f32 %v3784, %v3786
      %3799 = vmax.xlane.f32.xlu0 %v3798
      %v3800 = vpop.xlane.xlu0 %3799
      %v3801 = vmax.f32 %v3788, %v3790
      %3802 = vmax.xlane.f32.xlu0 %v3801
      %v3803 = vpop.xlane.xlu0 %3802
      %v3804 = vsub.f32 %v3774, %v3794
      %v3805 = vsub.f32 %v3776, %v3794
      %v3806 = vsub.f32 %v3778, %v3797
      %v3807 = vsub.f32 %v3780, %v3797
      %v3808 = vsub.f32 %v3784, %v3800
      %v3809 = vsub.f32 %v3786, %v3800
      %v3810 = vsub.f32 %v3788, %v3803
      %v3811 = vsub.f32 %v3790, %v3803
      %v3812 = vmul.f32 %v3804, 1.442695
      %v3813 = vpow.pop %v3812
      %v3814 = vmul.f32 %v3805, 1.442695
      %v3815 = vpow.pop %v3814
      %v3816 = vmul.f32 %v3806, 1.442695
      %v3817 = vpow.pop %v3816
      %v3818 = vmul.f32 %v3807, 1.442695
      %v3819 = vpow.pop %v3818
      %v3820 = vmul.f32 %v3808, 1.442695
      %v3821 = vpow.pop %v3820
      %v3822 = vmul.f32 %v3809, 1.442695
      %v3823 = vpow.pop %v3822
      %v3824 = vmul.f32 %v3810, 1.442695
      %v3825 = vpow.pop %v3824
      %v3826 = vmul.f32 %v3811, 1.442695
      %v3827 = vpow.pop %v3826
      %v3828 = vadd.f32 %v3813, %v3815
      %3829 = vadd.xlane.f32.xlu0 %v3828
      %v3830 = vpop.xlane.xlu0 %3829
      %v3831 = vadd.f32 %v3817, %v3819
      %3832 = vadd.xlane.f32.xlu0 %v3831
      %v3833 = vpop.xlane.xlu0 %3832
      %v3834 = vadd.f32 %v3821, %v3823
      %3835 = vadd.xlane.f32.xlu0 %v3834
      %v3836 = vpop.xlane.xlu0 %3835
      %v3837 = vadd.f32 %v3825, %v3827
      %3838 = vadd.xlane.f32.xlu0 %v3837
      %v3839 = vpop.xlane.xlu0 %3838
      %v3840 = vrcp.pop %v3830
      %v3841 = vrcp.pop %v3833
      %v3842 = vrcp.pop %v3836
      %v3843 = vrcp.pop %v3839
      %v3844 = vmul.f32 %v3813, %v3840
      %v3845 = vmul.f32 %v3815, %v3840
      %v3846 = vmul.f32 %v3817, %v3841
      %v3847 = vmul.f32 %v3819, %v3841
      %v3848 = vmul.f32 %v3821, %v3842
      %v3849 = vmul.f32 %v3823, %v3842
      %v3850 = vmul.f32 %v3825, %v3843
      %v3851 = vmul.f32 %v3827, %v3843
      %v3852 = vpack.c.bf16 %v3846, %v3844
      %v3853 = vpack.c.bf16 %v3847, %v3845
      %v3854 = vpack.c.bf16 %v3850, %v3848
      %v3855 = vpack.c.bf16 %v3851, %v3849
      %3856 = vmatprep.subr.bf16.mxu0 0
      %3857 = vmatpush1.bf16.msra.mxu0 %v375
      %3858 = vmatprep.subr.bf16.mxu0 0
      %3859 = vmatpush1.bf16.msra.mxu0 %v374
      %3860 = vmatprep.subr.bf16.mxu0 0
      %3861 = vmatpush1.bf16.msra.mxu0 %v373
      %3862 = vmatprep.subr.bf16.mxu0 0
      %3863 = vmatpush1.bf16.msra.mxu0 %v372
      %3864 = vmatprep.subr.bf16.mxu0 0
      %3865 = vmatpush1.bf16.msra.mxu0 %v371
      %3866 = vmatprep.subr.bf16.mxu0 0
      %3867 = vmatpush1.bf16.msra.mxu0 %v370
      %3868 = vmatprep.subr.bf16.mxu0 0
      %3869 = vmatpush1.bf16.msra.mxu0 %v369
      %3870 = vmatprep.subr.bf16.mxu0 0
      %3871 = vmatpush1.bf16.msra.mxu0 %v368
      %3872 = vmatprep.subr.bf16.mxu0 0
      %3873 = vmatpush2.bf16.msra.mxu0 %v383
      %3874 = vmatprep.subr.bf16.mxu0 0
      %3875 = vmatpush2.bf16.msra.mxu0 %v382
      %3876 = vmatprep.subr.bf16.mxu0 0
      %3877 = vmatpush2.bf16.msra.mxu0 %v381
      %3878 = vmatprep.subr.bf16.mxu0 0
      %3879 = vmatpush2.bf16.msra.mxu0 %v380
      %3880 = vmatprep.subr.bf16.mxu0 0
      %3881 = vmatpush2.bf16.msra.mxu0 %v379
      %3882 = vmatprep.subr.bf16.mxu0 0
      %3883 = vmatpush2.bf16.msra.mxu0 %v378
      %3884 = vmatprep.subr.bf16.mxu0 0
      %3885 = vmatpush2.bf16.msra.mxu0 %v377
      %3886 = vmatprep.subr.bf16.mxu0 0
      %3887 = vmatpush2.bf16.msra.mxu0 %v376
      %3888 = vmatprep.mubr.bf16.mxu0 %v3853
      %3889 = vmatmul.mubr.bf16.gmra.mxu0 %v3852
      %v3890 = vpop.f32.mrf.mxu0
      %v3891 = vadd.f32 0.0, %v3890
      %v3892 = vpop.f32.mrf.mxu0
      %v3893 = vpop.f32.mrf.mxu0
      %v3894 = vadd.f32 0.0, %v3893
      %v3895 = vpop.f32.mrf.mxu0
      %3896 = vmatprep.mubr.bf16.mxu0 %v3855
      %3897 = vmatmul.mubr.bf16.gmra.mxu0 %v3854
      %v3898 = vpop.f32.mrf.mxu0
      %v3899 = vadd.f32 0.0, %v3898
      %v3900 = vpop.f32.mrf.mxu0
      %v3901 = vpop.f32.mrf.mxu0
      %v3902 = vadd.f32 0.0, %v3901
      %v3903 = vpop.f32.mrf.mxu0
      %3904 = vdwg.mxu0
      %v3905 = vpack.c.bf16 %v3894, %v3891
      %v3906 = vpack.c.bf16 %v3902, %v3899
      %3907 = vmatprep.subr.bf16.mxu0 0
      %3908 = vmatpush1.bf16.msra.mxu0 0
      %3909 = vmatprep.subr.bf16.mxu0 0
      %3910 = vmatpush1.bf16.msra.mxu0 0
      %3911 = vmatprep.subr.bf16.mxu0 0
      %3912 = vmatpush1.bf16.msra.mxu0 0
      %3913 = vmatprep.subr.bf16.mxu0 0
      %3914 = vmatpush1.bf16.msra.mxu0 0
      %3915 = vmatprep.subr.bf16.mxu0 0
      %3916 = vmatpush1.bf16.msra.mxu0 0
      %3917 = vmatprep.subr.bf16.mxu0 0
      %3918 = vmatpush1.bf16.msra.mxu0 0
      %3919 = vmatprep.subr.bf16.mxu0 0
      %3920 = vmatpush1.bf16.msra.mxu0 %v3906
      %3921 = vmatprep.subr.bf16.mxu0 0
      %3922 = vmatpush1.bf16.msra.mxu0 %v3905
      %3923 = vmatprep.subr.bf16.mxu0 0
      %3924 = vmatpush2.bf16.msra.mxu0 0
      %3925 = vmatprep.subr.bf16.mxu0 0
      %3926 = vmatpush2.bf16.msra.mxu0 0
      %3927 = vmatprep.subr.bf16.mxu0 0
      %3928 = vmatpush2.bf16.msra.mxu0 0
      %3929 = vmatprep.subr.bf16.mxu0 0
      %3930 = vmatpush2.bf16.msra.mxu0 0
      %3931 = vmatprep.subr.bf16.mxu0 0
      %3932 = vmatpush2.bf16.msra.mxu0 0
      %3933 = vmatprep.subr.bf16.mxu0 0
      %3934 = vmatpush2.bf16.msra.mxu0 0
      %3935 = vmatprep.subr.bf16.mxu0 0
      %3936 = vmatpush2.bf16.msra.mxu0 0
      %3937 = vmatprep.subr.bf16.mxu0 0
      %3938 = vmatpush2.bf16.msra.mxu0 0
      %3939 = vmatprep.mubr.bf16.mxu0 0
      %3940 = vmatmul.mubr.bf16.gmra.mxu0 %v561
      %v3941 = vpop.f32.mrf.mxu0
      %v3942 = vadd.f32 0.0, %v3941
      %v3943 = vpop.f32.mrf.mxu0
      %v3944 = vpop.f32.mrf.mxu0
      %v3945 = vpop.f32.mrf.mxu0
      %3946 = vdwg.mxu0
      %3948 = vrot.lane.b32.xlu0 %v3942, 112
      %v3949 = vpop.permute.xlu0 %3948
      %3951 = vst.msk [vmem:[%s170 + $0x8] sm:$0xff] %vm2172, %v3949
      %p3952 = scmp.lt.s32.totalorder %s14, 1
      %s3953 = scalar_select %p3952, %s14, 1
      %s3954 = smul.addr %s3953, 2
      %s3955 = smul.addr %s3954, 8
      %s3956 = scalar_lea.vmem %s3, %s3955
      // Predicated region
      $region33: #{mqa_with_downsampling.1} parent=31 // pred_check
        %p3957 = pneg %p100
      $region34: #{mqa_with_downsampling.1} parent=31 // pred_check_branch
        %3959 = sbr.rel (%p3957) target = $region36
      $region35: #{mqa_with_downsampling.1} parent=31 // pred_region
        _
      $region36: #{mqa_with_downsampling.1} parent=31 // pred_fallthru
        _
    $region32: #{mqa_with_downsampling.1} parent=5 // pred_fallthru
      _
    %p3960 = scmp.le.s32.totalorder 2, %s9
    // Predicated region
    $region37: #{mqa_with_downsampling.1} parent=5 // pred_check
      %p3961 = pneg %p3960
    $region38: #{mqa_with_downsampling.1} parent=5 // pred_check_branch
      %3963 = sbr.rel (%p3961) target = $region40
    $region39: #{mqa_with_downsampling.1} parent=5 // pred_region
      %s3964 = ssub.s32 %s9, 2
      // Predicated region
      $region41: #{mqa_with_downsampling.1} parent=39 // pred_check
        %p3965 = pneg %p106
      $region42: #{mqa_with_downsampling.1} parent=39 // pred_check_branch
        %3967 = sbr.rel (%p3965) target = $region44
      $region43: #{mqa_with_downsampling.1} parent=39 // pred_region
        %p3968 = scmp.lt.s32.totalorder %s15, 1
        %s3969 = scalar_select %p3968, %s15, 1
        %s3970 = smul.addr %s3969, 2
        %s3971 = smul.addr %s3970, 8
        %s3972 = scalar_lea.vmem %s3, %s3971
      $region44: #{mqa_with_downsampling.1} parent=39 // pred_fallthru
        _
    $region40: #{mqa_with_downsampling.1} parent=5 // pred_fallthru
      _
  $region6: #{mqa_with_downsampling.1} parent=0 // loop_footer
    %s13 = sadd.s32 1, %s9
  $region7: #{mqa_with_downsampling.1} parent=0 // loop_footer_branch
    %8 = sbr.rel target = $region3
  $region8: #{mqa_with_downsampling.1} parent=0 // loop_exit
    _

</llo_original>
